<compile_context>
chip_gen: v7x
topology: tpu7x:2x2x1
jax: 0.10.0
libtpu: 0.0.40
codegen_flags: <defaults>
</compile_context>

<pallas_src>
import functools

import jax
import jax.numpy as jnp
from jax import lax
from jax.experimental import pallas as pl
from jax.experimental.pallas import tpu as pltpu


def _round_up(x, m):
    return ((x + m - 1) // m) * m


def _vmem_limit_bytes():
    """Generation-dependent scoped-VMEM limit (None -> compiler default)."""
    kind = jax.devices()[0].device_kind.lower()
    if "v7" in kind or "7x" in kind:
        return 56 * 1024 * 1024          # v7x: 64 MiB physical, leave headroom
    if ("v4" in kind) or ("v5" in kind) or ("v6" in kind):
        return 100 * 1024 * 1024         # 128 MiB physical
    return None


# ----------------------------------------------------------------------------
# Fused C3 kernel (one batch element per grid step).
# ----------------------------------------------------------------------------
def c3_kernel(x_ref, w12_ref, b12_ref, wb1_ref, bb1_ref, wb2_ref, bb2_ref,
              w3_ref, b3_ref, o_ref, tpad_ref, *, n_bn, shortcut):
    # x_ref   : (1, H, W, C1)           f32
    # w12_ref : (C1, 2*CP)              [cv1 | cv2] 1x1 weights, BN folded (wdt)
    # b12_ref : (1, 2*CP)               f32
    # wb1_ref : (n, CP, CP)             bottleneck cv1 (1x1), folded (wdt)
    # bb1_ref : (n, 1, CP)              f32
    # wb2_ref : (n, 3*CP, 3*CP)         bottleneck cv2 (3x3): rows = (dy, ci),
    #                                   cols = (dx, co), folded (wdt)
    # bb2_ref : (n, 1, CP)              f32
    # w3_ref  : (2*CP, C2P)             cv3 on the channel concat (wdt)
    # b3_ref  : (1, C2P)                f32
    # o_ref   : (1, H, W, C2P)          f32 (lane-dense, padded channels)
    # tpad_ref: VMEM scratch (H+2, WP, CP), dtype wdt, zero SAME border
    H, W, C2P = o_ref.shape[1], o_ref.shape[2], o_ref.shape[3]
    C1 = x_ref.shape[3]
    CP = wb1_ref.shape[-1]
    HP, WP, _ = tpad_ref.shape
    wdt = w12_ref.dtype                  # MXU operand dtype (f32 or bf16)

    def silu(v):
        # v * sigmoid(v) with the divide on the EUP (approx reciprocal).
        return v * pl.reciprocal(1.0 + jnp.exp(-v), approx=True)

    # --- zero ONLY the SAME-padding border, once per grid step --------------
    # (interior [1:H+1, :W] is fully overwritten every bottleneck iteration;
    #  do NOT guard on program_id: each TensorCore has its own scratch)
    tpad_ref[0:1, :, :] = jnp.zeros((1, WP, CP), wdt)
    tpad_ref[H + 1:H + 2, :, :] = jnp.zeros((1, WP, CP), wdt)
    tpad_ref[1:H + 1, W:WP, :] = jnp.zeros((H, WP - W, CP), wdt)

    x2d = x_ref[...].reshape(H * W, C1).astype(wdt)

    # --- C3.cv1 and C3.cv2 (both 1x1) as one matmul over concatenated cols ---
    s12 = jnp.dot(x2d, w12_ref[...], preferred_element_type=jnp.float32)
    s12 = silu(s12 + b12_ref[...])
    y1 = s12[:, :CP]          # bottleneck chain input (cv1 branch), f32
    y2 = s12[:, CP:]          # cv2 branch (kept in VMEM for cv3), f32

    # --- one Bottleneck block ------------------------------------------------
    def bottleneck(i, y1):
        # bottleneck cv1 (1x1)
        t = jnp.dot(y1.astype(wdt), wb1_ref[i],
                    preferred_element_type=jnp.float32)
        t = silu(t + bb1_ref[i])

        # write t into the zero-bordered spatial scratch (interior only)
        tpad_ref[1:H + 1, 0:W, :] = t.reshape(H, W, CP).astype(wdt)

        # bottleneck cv2 (3x3, SAME): ONE (H*WP, 3*CP) @ (3*CP, 3*CP) matmul
        # (dy folded into the contraction dim); dx alignment via two XLU
        # rolls, dx=1 slice initializes the accumulator.
        lhs = jnp.concatenate(
            [tpad_ref[dy:dy + H, :, :].reshape(H * WP, CP) for dy in range(3)],
            axis=-1)                                       # (H*WP, 3*CP)
        p3 = jnp.dot(lhs, wb2_ref[i],
                     preferred_element_type=jnp.float32)   # (H*WP, 3*CP)
        acc = p3[:, CP:2 * CP]                                       # dx = 1
        acc = acc + pltpu.roll(p3[:, 0:CP], 1, axis=0)               # dx = 0
        acc = acc + pltpu.roll(p3[:, 2 * CP:3 * CP], H * WP - 1, axis=0)  # dx=2

        # compact padded rows back to W columns (cheap at small W)
        z = acc.reshape(H, WP, CP)[:, :W, :].reshape(H * W, CP)
        z = silu(z + bb2_ref[i])
        return (y1 + z) if shortcut else z      # residual (c_ == c_)

    if n_bn <= 2:
        for i in range(n_bn):
            y1 = bottleneck(i, y1)
    else:
        # fori_loop bounds live ranges for deep chains; weights are indexed
        # dynamically along their leading (bottleneck) axis.
        y1 = lax.fori_loop(0, n_bn, bottleneck, y1)

    # --- C3.cv3 as a single K = 2*CP matmul on the channel concat -----------
    cat = jnp.concatenate([y1, y2], axis=-1).astype(wdt)   # (H*W, 2*CP)
    out = jnp.dot(cat, w3_ref[...], preferred_element_type=jnp.float32)
    out = silu(out + b3_ref[...])
    o_ref[...] = out.reshape(1, H, W, C2P).astype(o_ref.dtype)


# ----------------------------------------------------------------------------
# Wrapper
# ----------------------------------------------------------------------------
def c3_forward(x_nchw, kp, *, n=1, shortcut=True):
    N, C1, H, W = x_nchw.shape
    CP = kp["wb1"].shape[-1]
    C2P = kp["b3"].shape[-1]
    c2 = kp["c2"]
    HP = H + 2
    WP = _round_up(W + 2, 8)
    assert WP >= W + 2, "roll-wrap trick needs >= 2 zero columns"
    wdt = kp["w12"].dtype

    x = jnp.transpose(x_nchw, (0, 2, 3, 1)).astype(jnp.float32)   # NHWC

    kernel = functools.partial(c3_kernel, n_bn=n, shortcut=shortcut)
    cp_kwargs = dict(dimension_semantics=("parallel",))
    lim = _vmem_limit_bytes()
    if lim is not None:
        cp_kwargs["vmem_limit_bytes"] = lim

    out_nhwc = pl.pallas_call(
        kernel,
        out_shape=jax.ShapeDtypeStruct((N, H, W, C2P), jnp.float32),
        grid=(N,),
        in_specs=[
            pl.BlockSpec((1, H, W, C1), lambda b: (b, 0, 0, 0)),
            pl.BlockSpec(kp["w12"].shape, lambda b: (0, 0)),
            pl.BlockSpec(kp["b12"].shape, lambda b: (0, 0)),
            pl.BlockSpec(kp["wb1"].shape, lambda b: (0, 0, 0)),
            pl.BlockSpec(kp["bb1"].shape, lambda b: (0, 0, 0)),
            pl.BlockSpec(kp["wb2"].shape, lambda b: (0, 0, 0)),
            pl.BlockSpec(kp["bb2"].shape, lambda b: (0, 0, 0)),
            pl.BlockSpec(kp["w3"].shape, lambda b: (0, 0)),
            pl.BlockSpec(kp["b3"].shape, lambda b: (0, 0)),
        ],
        out_specs=pl.BlockSpec((1, H, W, C2P), lambda b: (b, 0, 0, 0)),
        scratch_shapes=[pltpu.VMEM((HP, WP, CP), wdt)],
        compiler_params=pltpu.CompilerParams(**cp_kwargs),
    )(x, kp["w12"], kp["b12"], kp["wb1"], kp["bb1"], kp["wb2"], kp["bb2"],
      kp["w3"], kp["b3"])

    out = out_nhwc[..., :c2]                       # drop lane padding
    return jnp.transpose(out, (0, 3, 1, 2))        # back to NCHW


# ----------------------------------------------------------------------------
# Parameter construction (synthetic, deterministic) + packing for the kernel
# ----------------------------------------------------------------------------
def make_params(key, c1, c2, n=1, e=0.5):
    c_ = int(c2 * e)
    eps = 1e-5
    keys = iter(jax.random.split(key, 64))

    def conv_bn(co, ci, k):
        w = jax.random.normal(next(keys), (co, ci, k, k), jnp.float32)
        w = w * (0.5 / (ci * k * k) ** 0.5)
        gamma = 1.0 + 0.1 * jax.random.normal(next(keys), (co,), jnp.float32)
        beta = 0.1 * jax.random.normal(next(keys), (co,), jnp.float32)
        mean = 0.1 * jax.random.normal(next(keys), (co,), jnp.float32)
        var = jnp.abs(1.0 + 0.1 * jax.random.normal(next(keys), (co,), jnp.float32))
        scale = gamma / jnp.sqrt(var + eps)          # inference-mode BN fold
        bias = beta - mean * scale
        return {"w": w, "scale": scale, "bias": bias}

    return {
        "cv1": conv_bn(c_, c1, 1),
        "cv2": conv_bn(c_, c1, 1),
        "cv3": conv_bn(c2, 2 * c_, 1),
        "m": [{"cv1": conv_bn(c_, c_, 1), "cv2": conv_bn(c_, c_, 3)}
              for _ in range(n)],
        "c_": c_,
    }


def pack_params(p, c1, c2, n, mxu_dtype=jnp.bfloat16):
    """Fold BN scale into weights, pad channels to 128 lanes, pack.

    Weights are stored in `mxu_dtype` (bf16 recommended on v6e/v7x); biases
    stay f32 (VPU math is f32).
    """
    c_ = p["c_"]
    CP = max(128, _round_up(c_, 128))
    C2P = _round_up(c2, 128)

    def fold_1x1(conv):                      # -> (ci, co), BN scale folded
        w = conv["w"][:, :, 0, 0] * conv["scale"][:, None]     # (co, ci)
        return jnp.transpose(w, (1, 0))

    w12 = jnp.zeros((c1, 2 * CP), jnp.float32)
    w12 = w12.at[:, :c_].set(fold_1x1(p["cv1"]))
    w12 = w12.at[:, CP:CP + c_].set(fold_1x1(p["cv2"]))
    b12 = jnp.zeros((1, 2 * CP), jnp.float32)
    b12 = b12.at[0, :c_].set(p["cv1"]["bias"])
    b12 = b12.at[0, CP:CP + c_].set(p["cv2"]["bias"])

    wb1 = jnp.zeros((n, CP, CP), jnp.float32)
    bb1 = jnp.zeros((n, 1, CP), jnp.float32)
    # 3x3 weights packed so rows index (dy, ci) and cols index (dx, co):
    wb2 = jnp.zeros((n, 3 * CP, 3 * CP), jnp.float32)
    bb2 = jnp.zeros((n, 1, CP), jnp.float32)
    for i, m in enumerate(p["m"]):
        wb1 = wb1.at[i, :c_, :c_].set(fold_1x1(m["cv1"]))
        bb1 = bb1.at[i, 0, :c_].set(m["cv1"]["bias"])
        w2 = m["cv2"]["w"] * m["cv2"]["scale"][:, None, None, None]  # (co,ci,3,3)
        for dy in range(3):
            for dx in range(3):
                wb2 = wb2.at[i, dy * CP:dy * CP + c_,
                             dx * CP:dx * CP + c_].set(
                    jnp.transpose(w2[:, :, dy, dx], (1, 0)))
        bb2 = bb2.at[i, 0, :c_].set(m["cv2"]["bias"])

    w3_full = fold_1x1(p["cv3"])                          # (2*c_, c2)
    w3 = jnp.zeros((2 * CP, C2P), jnp.float32)
    w3 = w3.at[:c_, :c2].set(w3_full[:c_])                # m-branch (y1)
    w3 = w3.at[CP:CP + c_, :c2].set(w3_full[c_:])         # cv2-branch (y2)
    b3 = jnp.zeros((1, C2P), jnp.float32).at[0, :c2].set(p["cv3"]["bias"])

    cast = lambda a: a.astype(mxu_dtype)
    return {"w12": cast(w12), "b12": b12,
            "wb1": cast(wb1), "bb1": bb1,
            "wb2": cast(wb2), "bb2": bb2,
            "w3": cast(w3), "b3": b3,
            "c2": c2}


# ----------------------------------------------------------------------------
# Pure-JAX reference (same inference-mode BN folding) for correctness check
# ----------------------------------------------------------------------------
def c3_reference(x, p, *, n=1, shortcut=True):
    dn = ("NCHW", "OIHW", "NCHW")

    def cbs(x, conv, pad):
        y = lax.conv_general_dilated(x, conv["w"], (1, 1), pad,
                                     dimension_numbers=dn)
        y = y * conv["scale"][None, :, None, None] + conv["bias"][None, :, None, None]
        return y * jax.nn.sigmoid(y)

    y1 = cbs(x, p["cv1"], "VALID")
    y2 = cbs(x, p["cv2"], "VALID")
    m = y1
    for i in range(n):
        t = cbs(m, p["m"][i]["cv1"], "VALID")
        z = cbs(t, p["m"][i]["cv2"], ((1, 1), (1, 1)))
        m = m + z if shortcut else z
    cat = jnp.concatenate([m, y2], axis=1)
    return cbs(cat, p["cv3"], "VALID")


if __name__ == "__main__":
    key = jax.random.PRNGKey(0)
    kx, kp1, kp2 = jax.random.split(key, 3)

    N, C1, H, W = 2, 4, 16, 16         # C3(c1=4, c2=4, e=0.5) -> c_ = 2
    C2 = 4
    x = jax.random.normal(kx, (N, C1, H, W), jnp.float32)

    # --- check 1: f32 MXU operands, n=1 (static unroll path), tight tol -----
    n1 = 1
    params1 = make_params(kp1, C1, C2, n=n1, e=0.5)
    packed1 = pack_params(params1, C1, C2, n1, mxu_dtype=jnp.float32)
    out1 = jax.block_until_ready(c3_forward(x, packed1, n=n1, shortcut=True))
    ref1 = jax.block_until_ready(c3_reference(x, params1, n=n1, shortcut=True))
    assert out1.shape == (N, C2, H, W)
    err1 = float(jnp.max(jnp.abs(out1 - ref1)))
    # approx-reciprocal SiLU -> slightly looser than exact-f32 tolerance
    assert jnp.allclose(out1, ref1, atol=5e-3, rtol=5e-3), err1

    # --- check 2: bf16 MXU operands, n=3 (fori_loop path), bf16 tolerance ----
    n3 = 3
    params3 = make_params(kp2, C1, C2, n=n3, e=0.5)
    packed3 = pack_params(params3, C1, C2, n3, mxu_dtype=jnp.bfloat16)
    out3 = jax.block_until_ready(c3_forward(x, packed3, n=n3, shortcut=True))
    ref3 = jax.block_until_ready(c3_reference(x, params3, n=n3, shortcut=True))
    assert out3.shape == (N, C2, H, W)
    err3 = float(jnp.max(jnp.abs(out3 - ref3)))
    assert jnp.allclose(out3, ref3, atol=5e-2, rtol=5e-2), err3

    print("KERNEL_OK")
</pallas_src>

<mosaic_0001>
module attributes {stable_mosaic.version = 11 : i64} {
  func.func @c3_kernel(%arg0: i32, %arg1: memref<1x16x16x4xf32, #tpu.memory_space<vmem>>, %arg2: memref<4x256xf32, #tpu.memory_space<vmem>>, %arg3: memref<1x256xf32, #tpu.memory_space<vmem>>, %arg4: memref<1x128x128xf32, #tpu.memory_space<vmem>>, %arg5: memref<1x1x128xf32, #tpu.memory_space<vmem>>, %arg6: memref<1x384x384xf32, #tpu.memory_space<vmem>>, %arg7: memref<1x1x128xf32, #tpu.memory_space<vmem>>, %arg8: memref<256x128xf32, #tpu.memory_space<vmem>>, %arg9: memref<1x128xf32, #tpu.memory_space<vmem>>, %arg10: memref<1x16x16x128xf32, #tpu.memory_space<vmem>>, %arg11: memref<18x24x128xf32, #tpu.memory_space<vmem>>) attributes {dimension_semantics = [#tpu.dimension_semantics<parallel>], iteration_bounds = array<i64: 2>, scalar_prefetch = 0 : i64, scratch_operands = 1 : i64, tpu.core_type = #tpu.core_type<tc>, window_params = [{transform_indices = @transform_0, window_bounds = array<i64: 1, 16, 16, 4>}, {pipeline_mode = #tpu.pipeline_mode<synchronous>, transform_indices = @transform_1, window_bounds = array<i64: 4, 256>}, {pipeline_mode = #tpu.pipeline_mode<synchronous>, transform_indices = @transform_2, window_bounds = array<i64: 1, 256>}, {pipeline_mode = #tpu.pipeline_mode<synchronous>, transform_indices = @transform_3, window_bounds = array<i64: 1, 128, 128>}, {pipeline_mode = #tpu.pipeline_mode<synchronous>, transform_indices = @transform_4, window_bounds = array<i64: 1, 1, 128>}, {pipeline_mode = #tpu.pipeline_mode<synchronous>, transform_indices = @transform_5, window_bounds = array<i64: 1, 384, 384>}, {pipeline_mode = #tpu.pipeline_mode<synchronous>, transform_indices = @transform_6, window_bounds = array<i64: 1, 1, 128>}, {pipeline_mode = #tpu.pipeline_mode<synchronous>, transform_indices = @transform_7, window_bounds = array<i64: 256, 128>}, {pipeline_mode = #tpu.pipeline_mode<synchronous>, transform_indices = @transform_8, window_bounds = array<i64: 1, 128>}, {transform_indices = @transform_9, window_bounds = array<i64: 1, 16, 16, 128>}]} {
    %cst = arith.constant 0.000000e+00 : f32
    %0 = vector.broadcast %cst : f32 to vector<1x24x128xf32>
    %c0 = arith.constant 0 : index
    %c0_0 = arith.constant 0 : index
    %c0_1 = arith.constant 0 : index
    %1 = vector.load %arg11[%c0, %c0_0, %c0_1] : memref<18x24x128xf32, #tpu.memory_space<vmem>>, vector<1x24x128xf32>
    tpu.vector_store %arg11[%c0, %c0_0, %c0_1], %0 {strides = array<i32>} : memref<18x24x128xf32, #tpu.memory_space<vmem>>, vector<1x24x128xf32>,
    %cst_2 = arith.constant 0.000000e+00 : f32
    %2 = vector.broadcast %cst_2 : f32 to vector<1x24x128xf32>
    %c17 = arith.constant 17 : index
    %c0_3 = arith.constant 0 : index
    %c0_4 = arith.constant 0 : index
    %3 = vector.load %arg11[%c17, %c0_3, %c0_4] : memref<18x24x128xf32, #tpu.memory_space<vmem>>, vector<1x24x128xf32>
    tpu.vector_store %arg11[%c17, %c0_3, %c0_4], %2 {strides = array<i32>} : memref<18x24x128xf32, #tpu.memory_space<vmem>>, vector<1x24x128xf32>,
    %cst_5 = arith.constant 0.000000e+00 : f32
    %4 = vector.broadcast %cst_5 : f32 to vector<16x8x128xf32>
    %c1 = arith.constant 1 : index
    %c16 = arith.constant 16 : index
    %c0_6 = arith.constant 0 : index
    %5 = vector.load %arg11[%c1, %c16, %c0_6] : memref<18x24x128xf32, #tpu.memory_space<vmem>>, vector<16x8x128xf32>
    tpu.vector_store %arg11[%c1, %c16, %c0_6], %4 {strides = array<i32>} : memref<18x24x128xf32, #tpu.memory_space<vmem>>, vector<16x8x128xf32>,
    %c0_7 = arith.constant 0 : index
    %c0_8 = arith.constant 0 : index
    %c0_9 = arith.constant 0 : index
    %c0_10 = arith.constant 0 : index
    %6 = vector.load %arg1[%c0_7, %c0_8, %c0_9, %c0_10] : memref<1x16x16x4xf32, #tpu.memory_space<vmem>>, vector<1x16x16x4xf32>
    %7 = vector.shape_cast %6 : vector<1x16x16x4xf32> to vector<256x4xf32>
    %c0_11 = arith.constant 0 : index
    %c0_12 = arith.constant 0 : index
    %8 = vector.load %arg2[%c0_11, %c0_12] : memref<4x256xf32, #tpu.memory_space<vmem>>, vector<4x256xf32>
    %cst_13 = arith.constant dense<0.000000e+00> : vector<256x256xf32>
    %9 = tpu.matmul %7, %8, %cst_13 {dimension_numbers = #tpu.dot_dimension_numbers<[1], [0], [0], [1], [0, 0, 1, 1], [], []>} : vector<256x4xf32>, vector<4x256xf32>, vector<256x256xf32> -> vector<256x256xf32>
    %c0_14 = arith.constant 0 : index
    %c0_15 = arith.constant 0 : index
    %10 = vector.load %arg3[%c0_14, %c0_15] : memref<1x256xf32, #tpu.memory_space<vmem>>, vector<1x256xf32>
    %11 = vector.broadcast %10 : vector<1x256xf32> to vector<256x256xf32>
    %12 = arith.addf %9, %11 : vector<256x256xf32>
    %cst_16 = arith.constant 0.000000e+00 : f32
    %13 = vector.broadcast %cst_16 : f32 to vector<256x256xf32>
    %14 = arith.subf %13, %12 : vector<256x256xf32>
    %15 = math.exp %14 : vector<256x256xf32>
    %cst_17 = arith.constant 1.000000e+00 : f32
    %16 = vector.broadcast %cst_17 : f32 to vector<256x256xf32>
    %17 = arith.addf %16, %15 : vector<256x256xf32>
    %18 = tpu.reciprocal %17 {approx = true} : vector<256x256xf32> -> vector<256x256xf32>
    %19 = arith.mulf %12, %18 : vector<256x256xf32>
    %20 = vector.extract_strided_slice %19 {offsets = [0, 0], sizes = [256, 128], strides = [1, 1]} : vector<256x256xf32> to vector<256x128xf32>
    %21 = vector.extract_strided_slice %19 {offsets = [0, 128], sizes = [256, 128], strides = [1, 1]} : vector<256x256xf32> to vector<256x128xf32>
    %c0_18 = arith.constant 0 : index
    %c0_19 = arith.constant 0 : index
    %c0_20 = arith.constant 0 : index
    %22 = vector.load %arg4[%c0_18, %c0_19, %c0_20] : memref<1x128x128xf32, #tpu.memory_space<vmem>>, vector<1x128x128xf32>
    %23 = vector.shape_cast %22 : vector<1x128x128xf32> to vector<128x128xf32>
    %cst_21 = arith.constant dense<0.000000e+00> : vector<256x128xf32>
    %24 = tpu.matmul %20, %23, %cst_21 {dimension_numbers = #tpu.dot_dimension_numbers<[1], [0], [0], [1], [0, 0, 1, 1], [], []>} : vector<256x128xf32>, vector<128x128xf32>, vector<256x128xf32> -> vector<256x128xf32>
    %c0_22 = arith.constant 0 : index
    %c0_23 = arith.constant 0 : index
    %c0_24 = arith.constant 0 : index
    %25 = vector.load %arg5[%c0_22, %c0_23, %c0_24] : memref<1x1x128xf32, #tpu.memory_space<vmem>>, vector<1x1x128xf32>
    %26 = vector.shape_cast %25 : vector<1x1x128xf32> to vector<1x128xf32>
    %27 = vector.broadcast %26 : vector<1x128xf32> to vector<256x128xf32>
    %28 = arith.addf %24, %27 : vector<256x128xf32>
    %cst_25 = arith.constant 0.000000e+00 : f32
    %29 = vector.broadcast %cst_25 : f32 to vector<256x128xf32>
    %30 = arith.subf %29, %28 : vector<256x128xf32>
    %31 = math.exp %30 : vector<256x128xf32>
    %cst_26 = arith.constant 1.000000e+00 : f32
    %32 = vector.broadcast %cst_26 : f32 to vector<256x128xf32>
    %33 = arith.addf %32, %31 : vector<256x128xf32>
    %34 = tpu.reciprocal %33 {approx = true} : vector<256x128xf32> -> vector<256x128xf32>
    %35 = arith.mulf %28, %34 : vector<256x128xf32>
    %36 = vector.shape_cast %35 : vector<256x128xf32> to vector<16x16x128xf32>
    %c1_27 = arith.constant 1 : index
    %c0_28 = arith.constant 0 : index
    %c0_29 = arith.constant 0 : index
    %37 = vector.load %arg11[%c1_27, %c0_28, %c0_29] : memref<18x24x128xf32, #tpu.memory_space<vmem>>, vector<16x16x128xf32>
    tpu.vector_store %arg11[%c1_27, %c0_28, %c0_29], %36 {strides = array<i32>} : memref<18x24x128xf32, #tpu.memory_space<vmem>>, vector<16x16x128xf32>,
    %c0_30 = arith.constant 0 : index
    %c0_31 = arith.constant 0 : index
    %c0_32 = arith.constant 0 : index
    %38 = vector.load %arg11[%c0_30, %c0_31, %c0_32] : memref<18x24x128xf32, #tpu.memory_space<vmem>>, vector<16x24x128xf32>
    %39 = vector.shape_cast %38 : vector<16x24x128xf32> to vector<384x128xf32>
    %c1_33 = arith.constant 1 : index
    %c0_34 = arith.constant 0 : index
    %c0_35 = arith.constant 0 : index
    %40 = vector.load %arg11[%c1_33, %c0_34, %c0_35] : memref<18x24x128xf32, #tpu.memory_space<vmem>>, vector<16x24x128xf32>
    %41 = vector.shape_cast %40 : vector<16x24x128xf32> to vector<384x128xf32>
    %c2 = arith.constant 2 : index
    %c0_36 = arith.constant 0 : index
    %c0_37 = arith.constant 0 : index
    %42 = vector.load %arg11[%c2, %c0_36, %c0_37] : memref<18x24x128xf32, #tpu.memory_space<vmem>>, vector<16x24x128xf32>
    %43 = vector.shape_cast %42 : vector<16x24x128xf32> to vector<384x128xf32>
    %44 = tpu.concatenate %39, %41, %43 in 1 : vector<384x128xf32>, vector<384x128xf32>, vector<384x128xf32> -> vector<384x384xf32>
    %c0_38 = arith.constant 0 : index
    %c0_39 = arith.constant 0 : index
    %c0_40 = arith.constant 0 : index
    %45 = vector.load %arg6[%c0_38, %c0_39, %c0_40] : memref<1x384x384xf32, #tpu.memory_space<vmem>>, vector<1x384x384xf32>
    %46 = vector.shape_cast %45 : vector<1x384x384xf32> to vector<384x384xf32>
    %cst_41 = arith.constant dense<0.000000e+00> : vector<384x384xf32>
    %47 = tpu.matmul %44, %46, %cst_41 {dimension_numbers = #tpu.dot_dimension_numbers<[1], [0], [0], [1], [0, 0, 1, 1], [], []>} : vector<384x384xf32>, vector<384x384xf32>, vector<384x384xf32> -> vector<384x384xf32>
    %48 = vector.extract_strided_slice %47 {offsets = [0, 128], sizes = [384, 128], strides = [1, 1]} : vector<384x384xf32> to vector<384x128xf32>
    %49 = vector.extract_strided_slice %47 {offsets = [0, 0], sizes = [384, 128], strides = [1, 1]} : vector<384x384xf32> to vector<384x128xf32>
    %c1_i32 = arith.constant 1 : i32
    %50 = tpu.dynamic_rotate %49 by %c1_i32 dim 0 : vector<384x128xf32>, i32 -> vector<384x128xf32>
    %51 = arith.addf %48, %50 : vector<384x128xf32>
    %52 = vector.extract_strided_slice %47 {offsets = [0, 256], sizes = [384, 128], strides = [1, 1]} : vector<384x384xf32> to vector<384x128xf32>
    %c383_i32 = arith.constant 383 : i32
    %53 = tpu.dynamic_rotate %52 by %c383_i32 dim 0 : vector<384x128xf32>, i32 -> vector<384x128xf32>
    %54 = arith.addf %51, %53 : vector<384x128xf32>
    %55 = vector.shape_cast %54 : vector<384x128xf32> to vector<16x24x128xf32>
    %56 = vector.extract_strided_slice %55 {offsets = [0, 0, 0], sizes = [16, 16, 128], strides = [1, 1, 1]} : vector<16x24x128xf32> to vector<16x16x128xf32>
    %57 = vector.shape_cast %56 : vector<16x16x128xf32> to vector<256x128xf32>
    %c0_42 = arith.constant 0 : index
    %c0_43 = arith.constant 0 : index
    %c0_44 = arith.constant 0 : index
    %58 = vector.load %arg7[%c0_42, %c0_43, %c0_44] : memref<1x1x128xf32, #tpu.memory_space<vmem>>, vector<1x1x128xf32>
    %59 = vector.shape_cast %58 : vector<1x1x128xf32> to vector<1x128xf32>
    %60 = vector.broadcast %59 : vector<1x128xf32> to vector<256x128xf32>
    %61 = arith.addf %57, %60 : vector<256x128xf32>
    %cst_45 = arith.constant 0.000000e+00 : f32
    %62 = vector.broadcast %cst_45 : f32 to vector<256x128xf32>
    %63 = arith.subf %62, %61 : vector<256x128xf32>
    %64 = math.exp %63 : vector<256x128xf32>
    %cst_46 = arith.constant 1.000000e+00 : f32
    %65 = vector.broadcast %cst_46 : f32 to vector<256x128xf32>
    %66 = arith.addf %65, %64 : vector<256x128xf32>
    %67 = tpu.reciprocal %66 {approx = true} : vector<256x128xf32> -> vector<256x128xf32>
    %68 = arith.mulf %61, %67 : vector<256x128xf32>
    %69 = arith.addf %20, %68 : vector<256x128xf32>
    %70 = tpu.concatenate %69, %21 in 1 : vector<256x128xf32>, vector<256x128xf32> -> vector<256x256xf32>
    %c0_47 = arith.constant 0 : index
    %c0_48 = arith.constant 0 : index
    %71 = vector.load %arg8[%c0_47, %c0_48] : memref<256x128xf32, #tpu.memory_space<vmem>>, vector<256x128xf32>
    %cst_49 = arith.constant dense<0.000000e+00> : vector<256x128xf32>
    %72 = tpu.matmul %70, %71, %cst_49 {dimension_numbers = #tpu.dot_dimension_numbers<[1], [0], [0], [1], [0, 0, 1, 1], [], []>} : vector<256x256xf32>, vector<256x128xf32>, vector<256x128xf32> -> vector<256x128xf32>
    %c0_50 = arith.constant 0 : index
    %c0_51 = arith.constant 0 : index
    %73 = vector.load %arg9[%c0_50, %c0_51] : memref<1x128xf32, #tpu.memory_space<vmem>>, vector<1x128xf32>
    %74 = vector.broadcast %73 : vector<1x128xf32> to vector<256x128xf32>
    %75 = arith.addf %72, %74 : vector<256x128xf32>
    %cst_52 = arith.constant 0.000000e+00 : f32
    %76 = vector.broadcast %cst_52 : f32 to vector<256x128xf32>
    %77 = arith.subf %76, %75 : vector<256x128xf32>
    %78 = math.exp %77 : vector<256x128xf32>
    %cst_53 = arith.constant 1.000000e+00 : f32
    %79 = vector.broadcast %cst_53 : f32 to vector<256x128xf32>
    %80 = arith.addf %79, %78 : vector<256x128xf32>
    %81 = tpu.reciprocal %80 {approx = true} : vector<256x128xf32> -> vector<256x128xf32>
    %82 = arith.mulf %75, %81 : vector<256x128xf32>
    %83 = vector.shape_cast %82 : vector<256x128xf32> to vector<1x16x16x128xf32>
    %c0_54 = arith.constant 0 : index
    %c0_55 = arith.constant 0 : index
    %c0_56 = arith.constant 0 : index
    %c0_57 = arith.constant 0 : index
    %84 = vector.load %arg10[%c0_54, %c0_55, %c0_56, %c0_57] : memref<1x16x16x128xf32, #tpu.memory_space<vmem>>, vector<1x16x16x128xf32>
    tpu.vector_store %arg10[%c0_54, %c0_55, %c0_56, %c0_57], %83 {strides = array<i32>} : memref<1x16x16x128xf32, #tpu.memory_space<vmem>>, vector<1x16x16x128xf32>,
    return
  }
  func.func @transform_0(%arg0: i32) -> (i32, i32, i32, i32) {
    %c0_i32 = arith.constant 0 : i32
    %c0_i32_0 = arith.constant 0 : i32
    %c0_i32_1 = arith.constant 0 : i32
    %c0_i32_2 = arith.constant 0 : i32
    return %arg0, %c0_i32, %c0_i32_0, %c0_i32_1 : i32, i32, i32, i32
  }
  func.func @transform_1(%arg0: i32) -> (i32, i32) {
    %c0_i32 = arith.constant 0 : i32
    %c0_i32_0 = arith.constant 0 : i32
    %c0_i32_1 = arith.constant 0 : i32
    return %c0_i32, %c0_i32_0 : i32, i32
  }
  func.func @transform_2(%arg0: i32) -> (i32, i32) {
    %c0_i32 = arith.constant 0 : i32
    %c0_i32_0 = arith.constant 0 : i32
    %c0_i32_1 = arith.constant 0 : i32
    return %c0_i32, %c0_i32_0 : i32, i32
  }
  func.func @transform_3(%arg0: i32) -> (i32, i32, i32) {
    %c0_i32 = arith.constant 0 : i32
    %c0_i32_0 = arith.constant 0 : i32
    %c0_i32_1 = arith.constant 0 : i32
    %c0_i32_2 = arith.constant 0 : i32
    return %c0_i32, %c0_i32_0, %c0_i32_1 : i32, i32, i32
  }
  func.func @transform_4(%arg0: i32) -> (i32, i32, i32) {
    %c0_i32 = arith.constant 0 : i32
    %c0_i32_0 = arith.constant 0 : i32
    %c0_i32_1 = arith.constant 0 : i32
    %c0_i32_2 = arith.constant 0 : i32
    return %c0_i32, %c0_i32_0, %c0_i32_1 : i32, i32, i32
  }
  func.func @transform_5(%arg0: i32) -> (i32, i32, i32) {
    %c0_i32 = arith.constant 0 : i32
    %c0_i32_0 = arith.constant 0 : i32
    %c0_i32_1 = arith.constant 0 : i32
    %c0_i32_2 = arith.constant 0 : i32
    return %c0_i32, %c0_i32_0, %c0_i32_1 : i32, i32, i32
  }
  func.func @transform_6(%arg0: i32) -> (i32, i32, i32) {
    %c0_i32 = arith.constant 0 : i32
    %c0_i32_0 = arith.constant 0 : i32
    %c0_i32_1 = arith.constant 0 : i32
    %c0_i32_2 = arith.constant 0 : i32
    return %c0_i32, %c0_i32_0, %c0_i32_1 : i32, i32, i32
  }
  func.func @transform_7(%arg0: i32) -> (i32, i32) {
    %c0_i32 = arith.constant 0 : i32
    %c0_i32_0 = arith.constant 0 : i32
    %c0_i32_1 = arith.constant 0 : i32
    return %c0_i32, %c0_i32_0 : i32, i32
  }
  func.func @transform_8(%arg0: i32) -> (i32, i32) {
    %c0_i32 = arith.constant 0 : i32
    %c0_i32_0 = arith.constant 0 : i32
    %c0_i32_1 = arith.constant 0 : i32
    return %c0_i32, %c0_i32_0 : i32, i32
  }
  func.func @transform_9(%arg0: i32) -> (i32, i32, i32, i32) {
    %c0_i32 = arith.constant 0 : i32
    %c0_i32_0 = arith.constant 0 : i32
    %c0_i32_1 = arith.constant 0 : i32
    %c0_i32_2 = arith.constant 0 : i32
    return %arg0, %c0_i32, %c0_i32_0, %c0_i32_1 : i32, i32, i32, i32
  }
}

</mosaic_0001>

<llo_original>
// kernel: tpu_custom_call.1
$region0: #{tpu_custom_call.1}
  #allocation0 [shape = 'u32[]', space=smem, size = 0x4, offset = 0x4, fixed_abs, tag = 'smem constant byte address 0x4 - core index']
  #allocation1 [shape = 'u32[144,128]{1,0:T(1,128)}', space=vmem, size = 0x12000, scoped, tag = 'internal scratch']
  #allocation2 [shape = 'f32[18,24,128]{2,1,0:T(8,128)}', space=vmem, size = 0x36000, scoped, tag = 'scratch operand']
  %s0 = inlined_call_operand.vmem [shape: f32[2,16,16,4], index: 0, kind: input, shape index: {}]
  %s1 = inlined_call_operand.vmem [shape: f32[4,256], index: 1, kind: input, shape index: {}]
  %s2 = inlined_call_operand.vmem [shape: f32[1,256], index: 2, kind: input, shape index: {}]
  %s3 = inlined_call_operand.vmem [shape: f32[1,128,128], index: 3, kind: input, shape index: {}]
  %s4 = inlined_call_operand.vmem [shape: f32[1,1,128], index: 4, kind: input, shape index: {}]
  %s5 = inlined_call_operand.hbm [shape: f32[1,384,384], index: 5, kind: input, shape index: {}]
  %s6 = inlined_call_operand.vmem [shape: f32[1,1,128], index: 6, kind: input, shape index: {}]
  %s7 = inlined_call_operand.vmem [shape: f32[256,128], index: 7, kind: input, shape index: {}]
  %s8 = inlined_call_operand.vmem [shape: f32[1,128], index: 8, kind: input, shape index: {}]
  %s9 = inlined_call_operand.hbm [shape: f32[2,16,16,128], index: 9, kind: output, shape index: {}]
  %s10 = sld [smem:[#allocation0]]
  $region73: #{tpu_custom_call.1} parent=0
    _
  %s12 = ssub.s32 1, %s10
  %s13 = scalar_select 0, %s12, %s10
  $region1: #{tpu_custom_call.1} parent=0
    #allocation3 [shape = 'u8[589824]{0}', space=vmem, size = 0x90000, scoped, tag = 'input window, operand 5, single buffered']
    #allocation4 [shape = 's32[2]{0}', space=sflag, size = 0x8, scoped, tag = 'scoped memory for tpu_custom_call.1']
    #allocation5 [shape = 's32[2]{0}', space=sflag, size = 0x8, scoped, tag = 'scoped memory for tpu_custom_call.1']
    #allocation6 [shape = 'u8[262144]{0}', space=vmem, size = 0x40000, scoped, tag = 'output window, operand 0']
    %14 = vsyncpa [#allocation4], 0
    %15 = vsyncpa [#allocation5], 0
    %s16 = scalar_lea.sflag [#allocation5], 1
    %17 = vsyncpa %s16, 0
    loop: start=0, step=1, limit=4
    $region2: #{tpu_custom_call.1} parent=1 // loop_pre_header
      _
    $region3: #{tpu_custom_call.1} parent=1 // loop_header
      %s19 = sphi 0, %s23
      %p20 = scmp.ge.s32.totalorder %s19, 4
      %s29 = sphi 0, %s31
      %s32 = sphi 0, %s29
      %s33 = sphi 0, %s32
      %s49 = sphi 0, %s33
      %s53 = sphi 0, %s53
      %s55 = sphi 0, %s53
      %s56 = sphi 0, %s55
      %s70 = sphi 0, %s56
      %s74 = sphi 0, %s74
      %s76 = sphi 0, %s74
      %s77 = sphi 0, %s76
      %s91 = sphi 0, %s77
      %s95 = sphi 0, %s95
      %s97 = sphi 0, %s95
      %s98 = sphi 0, %s97
      %s112 = sphi 0, %s98
      %s116 = sphi 0, %s116
      %s118 = sphi 0, %s116
      %s119 = sphi 0, %s118
      %s133 = sphi 0, %s119
      %s137 = sphi 0, %s137
      %s139 = sphi 0, %s137
      %s140 = sphi 0, %s139
      %s154 = sphi 0, %s140
      %s158 = sphi 0, %s158
      %s160 = sphi 0, %s158
      %s161 = sphi 0, %s160
      %s175 = sphi 0, %s161
      %s179 = sphi 0, %s179
      %s181 = sphi 0, %s179
      %s182 = sphi 0, %s181
      %s196 = sphi 0, %s182
      %s200 = sphi 0, %s200
      %s202 = sphi 0, %s200
      %s203 = sphi 0, %s202
      %s217 = sphi 0, %s203
      %s223 = sphi 0, %s225
      %s226 = sphi 0, %s223
      %s227 = sphi 0, %s226
      %s243 = sphi 0, %s227
    $region4: #{tpu_custom_call.1} parent=1 // loop_header_branch
      %22 = sbr.rel (%p20) target = $region8
    $region5: #{tpu_custom_call.1} parent=1 // loop_body
      %s24 = ssub.s32 %s19, 1
      %s25 = ssub.s32 %s19, 2
      %s26 = sadd.s32 %s19, 1
      %s27 = ssub.s32 %s19, %s26
      %p28 = scmp.eq.s32.totalorder %s27, 0
      %s30 = sadd.s32 %s29, 1
      %s31 = scalar_select %p28, %s29, %s30
      %p34 = pneg %p28
      %p35 = scmp.eq.s32.totalorder %s19, 1
      %p36 = por %p34, %p35
      %p37 = scmp.ne.s32.totalorder %s29, %s32
      %p38 = scmp.eq.s32.totalorder %s19, 0
      %p39 = por %p37, %p38
      %p40 = scmp.ne.s32.totalorder %s29, %s32
      %p41 = scmp.eq.s32.totalorder %s24, 1
      %p42 = por %p40, %p41
      %p43 = scmp.ne.s32.totalorder %s32, %s33
      %p44 = scmp.eq.s32.totalorder %s24, 0
      %p45 = por %p43, %p44
      %p46 = scmp.ne.s32.totalorder %s32, %s33
      %p47 = scmp.eq.s32.totalorder %s25, 1
      %p48 = por %p46, %p47
      %p50 = scmp.ne.s32.totalorder %s33, %s49
      %p51 = scmp.eq.s32.totalorder %s25, 0
      %p52 = por %p50, %p51
      %s54 = sadd.s32 %s53, 1
      %p57 = scmp.eq.s32.totalorder %s19, 1
      %p58 = scmp.ne.s32.totalorder %s53, %s55
      %p59 = scmp.eq.s32.totalorder %s19, 0
      %p60 = por %p58, %p59
      %p61 = scmp.ne.s32.totalorder %s53, %s55
      %p62 = scmp.eq.s32.totalorder %s24, 1
      %p63 = por %p61, %p62
      %p64 = scmp.ne.s32.totalorder %s55, %s56
      %p65 = scmp.eq.s32.totalorder %s24, 0
      %p66 = por %p64, %p65
      %p67 = scmp.ne.s32.totalorder %s55, %s56
      %p68 = scmp.eq.s32.totalorder %s25, 1
      %p69 = por %p67, %p68
      %p71 = scmp.ne.s32.totalorder %s56, %s70
      %p72 = scmp.eq.s32.totalorder %s25, 0
      %p73 = por %p71, %p72
      %s75 = sadd.s32 %s74, 1
      %p78 = scmp.eq.s32.totalorder %s19, 1
      %p79 = scmp.ne.s32.totalorder %s74, %s76
      %p80 = scmp.eq.s32.totalorder %s19, 0
      %p81 = por %p79, %p80
      %p82 = scmp.ne.s32.totalorder %s74, %s76
      %p83 = scmp.eq.s32.totalorder %s24, 1
      %p84 = por %p82, %p83
      %p85 = scmp.ne.s32.totalorder %s76, %s77
      %p86 = scmp.eq.s32.totalorder %s24, 0
      %p87 = por %p85, %p86
      %p88 = scmp.ne.s32.totalorder %s76, %s77
      %p89 = scmp.eq.s32.totalorder %s25, 1
      %p90 = por %p88, %p89
      %p92 = scmp.ne.s32.totalorder %s77, %s91
      %p93 = scmp.eq.s32.totalorder %s25, 0
      %p94 = por %p92, %p93
      %s96 = sadd.s32 %s95, 1
      %p99 = scmp.eq.s32.totalorder %s19, 1
      %p100 = scmp.ne.s32.totalorder %s95, %s97
      %p101 = scmp.eq.s32.totalorder %s19, 0
      %p102 = por %p100, %p101
      %p103 = scmp.ne.s32.totalorder %s95, %s97
      %p104 = scmp.eq.s32.totalorder %s24, 1
      %p105 = por %p103, %p104
      %p106 = scmp.ne.s32.totalorder %s97, %s98
      %p107 = scmp.eq.s32.totalorder %s24, 0
      %p108 = por %p106, %p107
      %p109 = scmp.ne.s32.totalorder %s97, %s98
      %p110 = scmp.eq.s32.totalorder %s25, 1
      %p111 = por %p109, %p110
      %p113 = scmp.ne.s32.totalorder %s98, %s112
      %p114 = scmp.eq.s32.totalorder %s25, 0
      %p115 = por %p113, %p114
      %s117 = sadd.s32 %s116, 1
      %p120 = scmp.eq.s32.totalorder %s19, 1
      %p121 = scmp.ne.s32.totalorder %s116, %s118
      %p122 = scmp.eq.s32.totalorder %s19, 0
      %p123 = por %p121, %p122
      %p124 = scmp.ne.s32.totalorder %s116, %s118
      %p125 = scmp.eq.s32.totalorder %s24, 1
      %p126 = por %p124, %p125
      %p127 = scmp.ne.s32.totalorder %s118, %s119
      %p128 = scmp.eq.s32.totalorder %s24, 0
      %p129 = por %p127, %p128
      %p130 = scmp.ne.s32.totalorder %s118, %s119
      %p131 = scmp.eq.s32.totalorder %s25, 1
      %p132 = por %p130, %p131
      %p134 = scmp.ne.s32.totalorder %s119, %s133
      %p135 = scmp.eq.s32.totalorder %s25, 0
      %p136 = por %p134, %p135
      %s138 = sadd.s32 %s137, 1
      %p141 = scmp.eq.s32.totalorder %s19, 1
      %p142 = scmp.ne.s32.totalorder %s137, %s139
      %p143 = scmp.eq.s32.totalorder %s19, 0
      %p144 = por %p142, %p143
      %p145 = scmp.ne.s32.totalorder %s137, %s139
      %p146 = scmp.eq.s32.totalorder %s24, 1
      %p147 = por %p145, %p146
      %p148 = scmp.ne.s32.totalorder %s139, %s140
      %p149 = scmp.eq.s32.totalorder %s24, 0
      %p150 = por %p148, %p149
      %p151 = scmp.ne.s32.totalorder %s139, %s140
      %p152 = scmp.eq.s32.totalorder %s25, 1
      %p153 = por %p151, %p152
      %p155 = scmp.ne.s32.totalorder %s140, %s154
      %p156 = scmp.eq.s32.totalorder %s25, 0
      %p157 = por %p155, %p156
      %s159 = sadd.s32 %s158, 1
      %p162 = scmp.eq.s32.totalorder %s19, 1
      %p163 = scmp.ne.s32.totalorder %s158, %s160
      %p164 = scmp.eq.s32.totalorder %s19, 0
      %p165 = por %p163, %p164
      %p166 = scmp.ne.s32.totalorder %s158, %s160
      %p167 = scmp.eq.s32.totalorder %s24, 1
      %p168 = por %p166, %p167
      %p169 = scmp.ne.s32.totalorder %s160, %s161
      %p170 = scmp.eq.s32.totalorder %s24, 0
      %p171 = por %p169, %p170
      %p172 = scmp.ne.s32.totalorder %s160, %s161
      %p173 = scmp.eq.s32.totalorder %s25, 1
      %p174 = por %p172, %p173
      %p176 = scmp.ne.s32.totalorder %s161, %s175
      %p177 = scmp.eq.s32.totalorder %s25, 0
      %p178 = por %p176, %p177
      %s180 = sadd.s32 %s179, 1
      %p183 = scmp.eq.s32.totalorder %s19, 1
      %p184 = scmp.ne.s32.totalorder %s179, %s181
      %p185 = scmp.eq.s32.totalorder %s19, 0
      %p186 = por %p184, %p185
      %p187 = scmp.ne.s32.totalorder %s179, %s181
      %p188 = scmp.eq.s32.totalorder %s24, 1
      %p189 = por %p187, %p188
      %p190 = scmp.ne.s32.totalorder %s181, %s182
      %p191 = scmp.eq.s32.totalorder %s24, 0
      %p192 = por %p190, %p191
      %p193 = scmp.ne.s32.totalorder %s181, %s182
      %p194 = scmp.eq.s32.totalorder %s25, 1
      %p195 = por %p193, %p194
      %p197 = scmp.ne.s32.totalorder %s182, %s196
      %p198 = scmp.eq.s32.totalorder %s25, 0
      %p199 = por %p197, %p198
      %s201 = sadd.s32 %s200, 1
      %p204 = scmp.eq.s32.totalorder %s19, 1
      %p205 = scmp.ne.s32.totalorder %s200, %s202
      %p206 = scmp.eq.s32.totalorder %s19, 0
      %p207 = por %p205, %p206
      %p208 = scmp.ne.s32.totalorder %s200, %s202
      %p209 = scmp.eq.s32.totalorder %s24, 1
      %p210 = por %p208, %p209
      %p211 = scmp.ne.s32.totalorder %s202, %s203
      %p212 = scmp.eq.s32.totalorder %s24, 0
      %p213 = por %p211, %p212
      %p214 = scmp.ne.s32.totalorder %s202, %s203
      %p215 = scmp.eq.s32.totalorder %s25, 1
      %p216 = por %p214, %p215
      %p218 = scmp.ne.s32.totalorder %s203, %s217
      %p219 = scmp.eq.s32.totalorder %s25, 0
      %p220 = por %p218, %p219
      %s221 = ssub.s32 %s19, %s26
      %p222 = scmp.eq.s32.totalorder %s221, 0
      %s224 = sadd.s32 %s223, 1
      %s225 = scalar_select %p222, %s223, %s224
      %p228 = pneg %p222
      %p229 = scmp.eq.s32.totalorder %s19, 1
      %p230 = por %p228, %p229
      %p231 = scmp.ne.s32.totalorder %s223, %s226
      %p232 = scmp.eq.s32.totalorder %s19, 0
      %p233 = por %p231, %p232
      %p234 = scmp.ne.s32.totalorder %s223, %s226
      %p235 = scmp.eq.s32.totalorder %s24, 1
      %p236 = por %p234, %p235
      %p237 = scmp.ne.s32.totalorder %s226, %s227
      %p238 = scmp.eq.s32.totalorder %s24, 0
      %p239 = por %p237, %p238
      %p240 = scmp.ne.s32.totalorder %s226, %s227
      %p241 = scmp.eq.s32.totalorder %s25, 1
      %p242 = por %p240, %p241
      %p244 = scmp.ne.s32.totalorder %s227, %s243
      %p245 = scmp.eq.s32.totalorder %s25, 0
      %p246 = por %p244, %p245
      %p247 = scmp.le.s32.totalorder 1, %s19
      %p248 = scmp.lt.s32.totalorder %s19, 3
      %p249 = pnand %p247, %p248
      %p250 = pneg %p249
      // Predicated region
      $region9: #{tpu_custom_call.1} parent=5 // pred_check
        _
      $region10: #{tpu_custom_call.1} parent=5 // pred_check_branch
        %252 = sbr.rel (%p249) target = $region12
      $region11: #{tpu_custom_call.1} parent=5 // pred_region
        %s253 = ssub.s32 %s19, 1
        // Predicated region
        $region13: #{tpu_custom_call.1} parent=11 // pred_check
          %p254 = pneg %p66
        $region14: #{tpu_custom_call.1} parent=11 // pred_check_branch
          %256 = sbr.rel (%p254) target = $region16
        $region15: #{tpu_custom_call.1} parent=11 // pred_region
          _
        $region16: #{tpu_custom_call.1} parent=11 // pred_fallthru
          _
        // Predicated region
        $region17: #{tpu_custom_call.1} parent=11 // pred_check
          %p257 = pneg %p87
        $region18: #{tpu_custom_call.1} parent=11 // pred_check_branch
          %259 = sbr.rel (%p257) target = $region20
        $region19: #{tpu_custom_call.1} parent=11 // pred_region
          _
        $region20: #{tpu_custom_call.1} parent=11 // pred_fallthru
          _
        // Predicated region
        $region21: #{tpu_custom_call.1} parent=11 // pred_check
          %p260 = pneg %p108
        $region22: #{tpu_custom_call.1} parent=11 // pred_check_branch
          %262 = sbr.rel (%p260) target = $region24
        $region23: #{tpu_custom_call.1} parent=11 // pred_region
          _
        $region24: #{tpu_custom_call.1} parent=11 // pred_fallthru
          _
        // Predicated region
        $region25: #{tpu_custom_call.1} parent=11 // pred_check
          %p263 = pneg %p129
        $region26: #{tpu_custom_call.1} parent=11 // pred_check_branch
          %265 = sbr.rel (%p263) target = $region28
        $region27: #{tpu_custom_call.1} parent=11 // pred_region
          _
        $region28: #{tpu_custom_call.1} parent=11 // pred_fallthru
          _
        // Predicated region
        $region29: #{tpu_custom_call.1} parent=11 // pred_check
          %p266 = pneg %p150
        $region30: #{tpu_custom_call.1} parent=11 // pred_check_branch
          %268 = sbr.rel (%p266) target = $region32
        $region31: #{tpu_custom_call.1} parent=11 // pred_region
          %s270 = ssub.s32 18432, 18432
          %271 = vsyncadd [#allocation4], %s270
          %s272 = sshll.u32 [#allocation3], 4
          %s273 = int_to_ptr.vmem [resolvable:$true] %s272
          %278 = dma.hbm_to_vmem [thread:$0]  %s5, 18432, %s273, [#allocation4], 384, 384, 24
        $region32: #{tpu_custom_call.1} parent=11 // pred_fallthru
          _
        // Predicated region
        $region33: #{tpu_custom_call.1} parent=11 // pred_check
          %p279 = pneg %p171
        $region34: #{tpu_custom_call.1} parent=11 // pred_check_branch
          %281 = sbr.rel (%p279) target = $region36
        $region35: #{tpu_custom_call.1} parent=11 // pred_region
          _
        $region36: #{tpu_custom_call.1} parent=11 // pred_fallthru
          _
        // Predicated region
        $region37: #{tpu_custom_call.1} parent=11 // pred_check
          %p282 = pneg %p192
        $region38: #{tpu_custom_call.1} parent=11 // pred_check_branch
          %284 = sbr.rel (%p282) target = $region40
        $region39: #{tpu_custom_call.1} parent=11 // pred_region
          _
        $region40: #{tpu_custom_call.1} parent=11 // pred_fallthru
          _
        // Predicated region
        $region41: #{tpu_custom_call.1} parent=11 // pred_check
          %p285 = pneg %p213
        $region42: #{tpu_custom_call.1} parent=11 // pred_check_branch
          %287 = sbr.rel (%p285) target = $region44
        $region43: #{tpu_custom_call.1} parent=11 // pred_region
          _
        $region44: #{tpu_custom_call.1} parent=11 // pred_fallthru
          _
      $region12: #{tpu_custom_call.1} parent=5 // pred_fallthru
        _
      %p288 = scmp.lt.s32.totalorder %s19, 2
      // Predicated region
      $region45: #{tpu_custom_call.1} parent=5 // pred_check
        %p289 = pneg %p288
      $region46: #{tpu_custom_call.1} parent=5 // pred_check_branch
        %291 = sbr.rel (%p289) target = $region48
      $region47: #{tpu_custom_call.1} parent=5 // pred_region
        // Predicated region
        $region49: #{tpu_custom_call.1} parent=47 // pred_check
          %p292 = pneg %p39
        $region50: #{tpu_custom_call.1} parent=47 // pred_check_branch
          %294 = sbr.rel (%p292) target = $region52
        $region51: #{tpu_custom_call.1} parent=47 // pred_region
          %p295 = scmp.lt.s32.totalorder %s19, 1
          %s296 = scalar_select %p295, %s19, 1
          %s297 = smul.addr %s296, 32
          %s298 = smul.addr %s297, 8
          %s299 = scalar_lea.vmem %s0, %s298
        $region52: #{tpu_custom_call.1} parent=47 // pred_fallthru
          _
      $region48: #{tpu_custom_call.1} parent=5 // pred_fallthru
        _
      %p300 = scmp.le.s32.totalorder 1, %s19
      %p301 = scmp.lt.s32.totalorder %s19, 3
      %p302 = pnand %p300, %p301
      %p303 = pneg %p302
      // Predicated region
      $region53: #{tpu_custom_call.1} parent=5 // pred_check
        _
      $region54: #{tpu_custom_call.1} parent=5 // pred_check_branch
        %305 = sbr.rel (%p302) target = $region56
      $region55: #{tpu_custom_call.1} parent=5 // pred_region
        %s306 = ssub.s32 %s19, 1
        // Predicated region
        $region57: #{tpu_custom_call.1} parent=55 // pred_check
          %p307 = pneg %p150
        $region58: #{tpu_custom_call.1} parent=55 // pred_check_branch
          %309 = sbr.rel (%p307) target = $region60
        $region59: #{tpu_custom_call.1} parent=55 // pred_region
          %310 = dma.done [#allocation4], 18432
        $region60: #{tpu_custom_call.1} parent=55 // pred_fallthru
          _
        %p311 = scmp.lt.s32.totalorder %s24, 1
        %s312 = scalar_select %p311, %s24, 1
        %s313 = smul.addr %s312, 32
        %s314 = smul.addr %s313, 8
        %s315 = scalar_lea.vmem %s0, %s314
        %p316 = pneg %p45
        %p317 = pneg %p42
        %p318 = pneg %p66
        %p319 = pneg %p63
        %p320 = pneg %p87
        %p321 = pneg %p84
        %p322 = pneg %p108
        %p323 = pneg %p105
        %p324 = pneg %p129
        %p325 = pneg %p126
        %p326 = pneg %p150
        %p327 = pneg %p147
        %p328 = pneg %p171
        %p329 = pneg %p168
        %p330 = pneg %p192
        %p331 = pneg %p189
        %p332 = pneg %p213
        %p333 = pneg %p210
        %p334 = pneg %p239
        %p335 = pneg %p236
        %s336 = sand.u32 %s226, 1
        %s337 = scalar_lea.sflag [#allocation5], %s336
        %s338 = sand.u32 %s226, 1
        %s339 = smul.addr %s338, 256
        %s340 = scalar_lea.vmem [#allocation6], %s339
        %p341 = scmp.lt.s32.totalorder %s24, 1
        %s342 = scalar_select %p341, %s24, 1
        %s343 = smul.addr %s342, 32
        %s344 = smul.addr %s343, 8
        %s345 = scalar_lea.vmem %s0, %s344
        %346 = vst [vmem:[#allocation2] sm:$0xff] 0.0
        %347 = vst [vmem:[#allocation2 + $0x8] sm:$0xff] 0.0
        %348 = vst [vmem:[#allocation2 + $0x10] sm:$0xff] 0.0
        %s349 = scalar_lea.vmem [#allocation2], 408
        %350 = vst [vmem:[%s349] sm:$0xff] 0.0
        %351 = vst [vmem:[%s349 + $0x8] sm:$0xff] 0.0
        %352 = vst [vmem:[%s349 + $0x10] sm:$0xff] 0.0
        %s353 = scalar_lea.vmem [#allocation2], 24
        %354 = vst [vmem:[%s353 + $0x10] sm:$0xff] 0.0
        %355 = vst [vmem:[%s353 + $0x28] sm:$0xff] 0.0
        %356 = vst [vmem:[%s353 + $0x40] sm:$0xff] 0.0
        %357 = vst [vmem:[%s353 + $0x58] sm:$0xff] 0.0
        %358 = vst [vmem:[%s353 + $0x70] sm:$0xff] 0.0
        %359 = vst [vmem:[%s353 + $0x88] sm:$0xff] 0.0
        %360 = vst [vmem:[%s353 + $0xa0] sm:$0xff] 0.0
        %361 = vst [vmem:[%s353 + $0xb8] sm:$0xff] 0.0
        %362 = vst [vmem:[%s353 + $0xd0] sm:$0xff] 0.0
        %363 = vst [vmem:[%s353 + $0xe8] sm:$0xff] 0.0
        %364 = vst [vmem:[%s353 + $0x100] sm:$0xff] 0.0
        %365 = vst [vmem:[%s353 + $0x118] sm:$0xff] 0.0
        %366 = vst [vmem:[%s353 + $0x130] sm:$0xff] 0.0
        %367 = vst [vmem:[%s353 + $0x148] sm:$0xff] 0.0
        %368 = vst [vmem:[%s353 + $0x160] sm:$0xff] 0.0
        %369 = vst [vmem:[%s353 + $0x178] sm:$0xff] 0.0
        %v370 = vld [vmem:[%s345] sm:$0xff]
        %v371 = vld [vmem:[%s345 + $0x8] sm:$0xff]
        %v372 = vld [vmem:[%s345 + $0x10] sm:$0xff]
        %v373 = vld [vmem:[%s345 + $0x18] sm:$0xff]
        %v374 = vld [vmem:[%s345 + $0x20] sm:$0xff]
        %v375 = vld [vmem:[%s345 + $0x28] sm:$0xff]
        %v376 = vld [vmem:[%s345 + $0x30] sm:$0xff]
        %v377 = vld [vmem:[%s345 + $0x38] sm:$0xff]
        %v378 = vld [vmem:[%s345 + $0x40] sm:$0xff]
        %v379 = vld [vmem:[%s345 + $0x48] sm:$0xff]
        %v380 = vld [vmem:[%s345 + $0x50] sm:$0xff]
        %v381 = vld [vmem:[%s345 + $0x58] sm:$0xff]
        %v382 = vld [vmem:[%s345 + $0x60] sm:$0xff]
        %v383 = vld [vmem:[%s345 + $0x68] sm:$0xff]
        %v384 = vld [vmem:[%s345 + $0x70] sm:$0xff]
        %v385 = vld [vmem:[%s345 + $0x78] sm:$0xff]
        %v386 = vld [vmem:[%s345 + $0x80] sm:$0xff]
        %v387 = vld [vmem:[%s345 + $0x88] sm:$0xff]
        %v388 = vld [vmem:[%s345 + $0x90] sm:$0xff]
        %v389 = vld [vmem:[%s345 + $0x98] sm:$0xff]
        %v390 = vld [vmem:[%s345 + $0xa0] sm:$0xff]
        %v391 = vld [vmem:[%s345 + $0xa8] sm:$0xff]
        %v392 = vld [vmem:[%s345 + $0xb0] sm:$0xff]
        %v393 = vld [vmem:[%s345 + $0xb8] sm:$0xff]
        %v394 = vld [vmem:[%s345 + $0xc0] sm:$0xff]
        %v395 = vld [vmem:[%s345 + $0xc8] sm:$0xff]
        %v396 = vld [vmem:[%s345 + $0xd0] sm:$0xff]
        %v397 = vld [vmem:[%s345 + $0xd8] sm:$0xff]
        %v398 = vld [vmem:[%s345 + $0xe0] sm:$0xff]
        %v399 = vld [vmem:[%s345 + $0xe8] sm:$0xff]
        %v400 = vld [vmem:[%s345 + $0xf0] sm:$0xff]
        %v401 = vld [vmem:[%s345 + $0xf8] sm:$0xff]
        %v402 = vld [vmem:[%s1] sm:$0xff]
        %v403 = vld [vmem:[%s2] sm:$0x3]
        %v405 = vlaneseq
        %v406 = vshrl.u32 %v405, 7
        %v407 = vsub.s32 0, %v406
        %v408 = vrot.slane %v403, %v407
        %v409 = vlaneseq
        %v410 = vshrl.u32 %v409, 7
        %v411 = vsub.s32 1, %v410
        %v412 = vrot.slane %v403, %v411
        %v416 = vcombine.high %v402, %v402
        %vm417 = vcmask 31744
        %v419 = vsel %vm417, %v370, 0
        %v422 = vsel %vm417, %v371, 0
        %v425 = vsel %vm417, %v372, 0
        %v428 = vsel %vm417, %v373, 0
        %v431 = vsel %vm417, %v374, 0
        %v434 = vsel %vm417, %v375, 0
        %v437 = vsel %vm417, %v376, 0
        %v440 = vsel %vm417, %v377, 0
        %v443 = vsel %vm417, %v378, 0
        %v446 = vsel %vm417, %v379, 0
        %v449 = vsel %vm417, %v380, 0
        %v452 = vsel %vm417, %v381, 0
        %v455 = vsel %vm417, %v382, 0
        %v458 = vsel %vm417, %v383, 0
        %v461 = vsel %vm417, %v384, 0
        %v464 = vsel %vm417, %v385, 0
        %v467 = vsel %vm417, %v386, 0
        %v470 = vsel %vm417, %v387, 0
        %v473 = vsel %vm417, %v388, 0
        %v476 = vsel %vm417, %v389, 0
        %v479 = vsel %vm417, %v390, 0
        %v482 = vsel %vm417, %v391, 0
        %v485 = vsel %vm417, %v392, 0
        %v488 = vsel %vm417, %v393, 0
        %v491 = vsel %vm417, %v394, 0
        %v494 = vsel %vm417, %v395, 0
        %v497 = vsel %vm417, %v396, 0
        %v500 = vsel %vm417, %v397, 0
        %v503 = vsel %vm417, %v398, 0
        %v506 = vsel %vm417, %v399, 0
        %v509 = vsel %vm417, %v400, 0
        %v512 = vsel %vm417, %v401, 0
        %vm514 = vcmask 1043456
        %v515 = vsel %vm514, %v402, 0
        %v517 = vsel %vm514, %v416, 0
        %519 = vmatprep.subr.mxu0 %v517
        %520 = vmatpush1.msra.mxu0 %v515
        %521 = vmatprep.subr.mxu0 0.0
        %522 = vmatpush1.msra.mxu0 0.0
        %523 = vmatprep.subr.mxu0 0.0
        %524 = vmatpush1.msra.mxu0 0.0
        %525 = vmatprep.subr.mxu0 0.0
        %526 = vmatpush1.msra.mxu0 0.0
        %527 = vmatprep.subr.mxu0 0.0
        %528 = vmatpush1.msra.mxu0 0.0
        %529 = vmatprep.subr.mxu0 0.0
        %530 = vmatpush1.msra.mxu0 0.0
        %531 = vmatprep.subr.mxu0 0.0
        %532 = vmatpush1.msra.mxu0 0.0
        %533 = vmatprep.subr.mxu0 0.0
        %534 = vmatpush1.msra.mxu0 0.0
        %535 = vmatprep.subr.mxu0 0.0
        %536 = vmatpush1.msra.mxu0 0.0
        %537 = vmatprep.subr.mxu0 0.0
        %538 = vmatpush1.msra.mxu0 0.0
        %539 = vmatprep.subr.mxu0 0.0
        %540 = vmatpush1.msra.mxu0 0.0
        %541 = vmatprep.subr.mxu0 0.0
        %542 = vmatpush1.msra.mxu0 0.0
        %543 = vmatprep.subr.mxu0 0.0
        %544 = vmatpush1.msra.mxu0 0.0
        %545 = vmatprep.subr.mxu0 0.0
        %546 = vmatpush1.msra.mxu0 0.0
        %547 = vmatprep.subr.mxu0 0.0
        %548 = vmatpush1.msra.mxu0 0.0
        %549 = vmatprep.subr.mxu0 0.0
        %550 = vmatpush1.msra.mxu0 0.0
        %551 = vmatprep.subr.mxu0 0.0
        %552 = vmatpush1.msra.mxu0 0.0
        %553 = vmatprep.subr.mxu0 0.0
        %554 = vmatpush1.msra.mxu0 0.0
        %555 = vmatprep.subr.mxu0 0.0
        %556 = vmatpush1.msra.mxu0 0.0
        %557 = vmatprep.subr.mxu0 0.0
        %558 = vmatpush1.msra.mxu0 0.0
        %559 = vmatprep.subr.mxu0 0.0
        %560 = vmatpush1.msra.mxu0 0.0
        %561 = vmatprep.subr.mxu0 0.0
        %562 = vmatpush1.msra.mxu0 0.0
        %563 = vmatprep.subr.mxu0 0.0
        %564 = vmatpush1.msra.mxu0 0.0
        %565 = vmatprep.subr.mxu0 0.0
        %566 = vmatpush1.msra.mxu0 0.0
        %567 = vmatprep.subr.mxu0 0.0
        %568 = vmatpush1.msra.mxu0 0.0
        %569 = vmatprep.subr.mxu0 0.0
        %570 = vmatpush1.msra.mxu0 0.0
        %571 = vmatprep.subr.mxu0 0.0
        %572 = vmatpush1.msra.mxu0 0.0
        %573 = vmatprep.subr.mxu0 0.0
        %574 = vmatpush1.msra.mxu0 0.0
        %575 = vmatprep.subr.mxu0 0.0
        %576 = vmatpush1.msra.mxu0 0.0
        %577 = vmatprep.subr.mxu0 0.0
        %578 = vmatpush1.msra.mxu0 0.0
        %579 = vmatprep.subr.mxu0 0.0
        %580 = vmatpush1.msra.mxu0 0.0
        %581 = vmatprep.subr.mxu0 0.0
        %582 = vmatpush1.msra.mxu0 0.0
        %583 = vmatprep.mubr.f32.mxu0 0.0
        %584 = vmatmul.mubr.f32.gmra.mrb[0].mxu0 %v419
        %v585 = vpop.f32.mrb[0].mxu0
        %v586 = vadd.f32 %v408, %v585
        %v587 = vpop.f32.mrb[0].mxu0
        %v588 = vadd.f32 %v412, %v587
        %589 = vmatprep.mubr.f32.mxu0 0.0
        %590 = vmatmul.mubr.f32.gmra.mrb[0].mxu0 %v422
        %v591 = vpop.f32.mrb[0].mxu0
        %v592 = vadd.f32 %v408, %v591
        %v593 = vpop.f32.mrb[0].mxu0
        %v594 = vadd.f32 %v412, %v593
        %595 = vmatprep.mubr.f32.mxu0 0.0
        %596 = vmatmul.mubr.f32.gmra.mrb[0].mxu0 %v425
        %v597 = vpop.f32.mrb[0].mxu0
        %v598 = vadd.f32 %v408, %v597
        %v599 = vpop.f32.mrb[0].mxu0
        %v600 = vadd.f32 %v412, %v599
        %601 = vmatprep.mubr.f32.mxu0 0.0
        %602 = vmatmul.mubr.f32.gmra.mrb[0].mxu0 %v428
        %v603 = vpop.f32.mrb[0].mxu0
        %v604 = vadd.f32 %v408, %v603
        %v605 = vpop.f32.mrb[0].mxu0
        %v606 = vadd.f32 %v412, %v605
        %607 = vmatprep.mubr.f32.mxu0 0.0
        %608 = vmatmul.mubr.f32.gmra.mrb[0].mxu0 %v431
        %v609 = vpop.f32.mrb[0].mxu0
        %v610 = vadd.f32 %v408, %v609
        %v611 = vpop.f32.mrb[0].mxu0
        %v612 = vadd.f32 %v412, %v611
        %613 = vmatprep.mubr.f32.mxu0 0.0
        %614 = vmatmul.mubr.f32.gmra.mrb[0].mxu0 %v434
        %v615 = vpop.f32.mrb[0].mxu0
        %v616 = vadd.f32 %v408, %v615
        %v617 = vpop.f32.mrb[0].mxu0
        %v618 = vadd.f32 %v412, %v617
        %619 = vmatprep.mubr.f32.mxu0 0.0
        %620 = vmatmul.mubr.f32.gmra.mrb[0].mxu0 %v437
        %v621 = vpop.f32.mrb[0].mxu0
        %v622 = vadd.f32 %v408, %v621
        %v623 = vpop.f32.mrb[0].mxu0
        %v624 = vadd.f32 %v412, %v623
        %625 = vmatprep.mubr.f32.mxu0 0.0
        %626 = vmatmul.mubr.f32.gmra.mrb[0].mxu0 %v440
        %v627 = vpop.f32.mrb[0].mxu0
        %v628 = vadd.f32 %v408, %v627
        %v629 = vpop.f32.mrb[0].mxu0
        %v630 = vadd.f32 %v412, %v629
        %631 = vmatprep.mubr.f32.mxu0 0.0
        %632 = vmatmul.mubr.f32.gmra.mrb[0].mxu0 %v443
        %v633 = vpop.f32.mrb[0].mxu0
        %v634 = vadd.f32 %v408, %v633
        %v635 = vpop.f32.mrb[0].mxu0
        %v636 = vadd.f32 %v412, %v635
        %637 = vmatprep.mubr.f32.mxu0 0.0
        %638 = vmatmul.mubr.f32.gmra.mrb[0].mxu0 %v446
        %v639 = vpop.f32.mrb[0].mxu0
        %v640 = vadd.f32 %v408, %v639
        %v641 = vpop.f32.mrb[0].mxu0
        %v642 = vadd.f32 %v412, %v641
        %643 = vmatprep.mubr.f32.mxu0 0.0
        %644 = vmatmul.mubr.f32.gmra.mrb[0].mxu0 %v449
        %v645 = vpop.f32.mrb[0].mxu0
        %v646 = vadd.f32 %v408, %v645
        %v647 = vpop.f32.mrb[0].mxu0
        %v648 = vadd.f32 %v412, %v647
        %649 = vmatprep.mubr.f32.mxu0 0.0
        %650 = vmatmul.mubr.f32.gmra.mrb[0].mxu0 %v452
        %v651 = vpop.f32.mrb[0].mxu0
        %v652 = vadd.f32 %v408, %v651
        %v653 = vpop.f32.mrb[0].mxu0
        %v654 = vadd.f32 %v412, %v653
        %655 = vmatprep.mubr.f32.mxu0 0.0
        %656 = vmatmul.mubr.f32.gmra.mrb[0].mxu0 %v455
        %v657 = vpop.f32.mrb[0].mxu0
        %v658 = vadd.f32 %v408, %v657
        %v659 = vpop.f32.mrb[0].mxu0
        %v660 = vadd.f32 %v412, %v659
        %661 = vmatprep.mubr.f32.mxu0 0.0
        %662 = vmatmul.mubr.f32.gmra.mrb[0].mxu0 %v458
        %v663 = vpop.f32.mrb[0].mxu0
        %v664 = vadd.f32 %v408, %v663
        %v665 = vpop.f32.mrb[0].mxu0
        %v666 = vadd.f32 %v412, %v665
        %667 = vmatprep.mubr.f32.mxu0 0.0
        %668 = vmatmul.mubr.f32.gmra.mrb[0].mxu0 %v461
        %v669 = vpop.f32.mrb[0].mxu0
        %v670 = vadd.f32 %v408, %v669
        %v671 = vpop.f32.mrb[0].mxu0
        %v672 = vadd.f32 %v412, %v671
        %673 = vmatprep.mubr.f32.mxu0 0.0
        %674 = vmatmul.mubr.f32.gmra.mrb[0].mxu0 %v464
        %v675 = vpop.f32.mrb[0].mxu0
        %v676 = vadd.f32 %v408, %v675
        %v677 = vpop.f32.mrb[0].mxu0
        %v678 = vadd.f32 %v412, %v677
        %679 = vmatprep.mubr.f32.mxu0 0.0
        %680 = vmatmul.mubr.f32.gmra.mrb[0].mxu0 %v467
        %v681 = vpop.f32.mrb[0].mxu0
        %v682 = vadd.f32 %v408, %v681
        %v683 = vpop.f32.mrb[0].mxu0
        %v684 = vadd.f32 %v412, %v683
        %685 = vmatprep.mubr.f32.mxu0 0.0
        %686 = vmatmul.mubr.f32.gmra.mrb[0].mxu0 %v470
        %v687 = vpop.f32.mrb[0].mxu0
        %v688 = vadd.f32 %v408, %v687
        %v689 = vpop.f32.mrb[0].mxu0
        %v690 = vadd.f32 %v412, %v689
        %691 = vmatprep.mubr.f32.mxu0 0.0
        %692 = vmatmul.mubr.f32.gmra.mrb[0].mxu0 %v473
        %v693 = vpop.f32.mrb[0].mxu0
        %v694 = vadd.f32 %v408, %v693
        %v695 = vpop.f32.mrb[0].mxu0
        %v696 = vadd.f32 %v412, %v695
        %697 = vmatprep.mubr.f32.mxu0 0.0
        %698 = vmatmul.mubr.f32.gmra.mrb[0].mxu0 %v476
        %v699 = vpop.f32.mrb[0].mxu0
        %v700 = vadd.f32 %v408, %v699
        %v701 = vpop.f32.mrb[0].mxu0
        %v702 = vadd.f32 %v412, %v701
        %703 = vmatprep.mubr.f32.mxu0 0.0
        %704 = vmatmul.mubr.f32.gmra.mrb[0].mxu0 %v479
        %v705 = vpop.f32.mrb[0].mxu0
        %v706 = vadd.f32 %v408, %v705
        %v707 = vpop.f32.mrb[0].mxu0
        %v708 = vadd.f32 %v412, %v707
        %709 = vmatprep.mubr.f32.mxu0 0.0
        %710 = vmatmul.mubr.f32.gmra.mrb[0].mxu0 %v482
        %v711 = vpop.f32.mrb[0].mxu0
        %v712 = vadd.f32 %v408, %v711
        %v713 = vpop.f32.mrb[0].mxu0
        %v714 = vadd.f32 %v412, %v713
        %715 = vmatprep.mubr.f32.mxu0 0.0
        %716 = vmatmul.mubr.f32.gmra.mrb[0].mxu0 %v485
        %v717 = vpop.f32.mrb[0].mxu0
        %v718 = vadd.f32 %v408, %v717
        %v719 = vpop.f32.mrb[0].mxu0
        %v720 = vadd.f32 %v412, %v719
        %721 = vmatprep.mubr.f32.mxu0 0.0
        %722 = vmatmul.mubr.f32.gmra.mrb[0].mxu0 %v488
        %v723 = vpop.f32.mrb[0].mxu0
        %v724 = vadd.f32 %v408, %v723
        %v725 = vpop.f32.mrb[0].mxu0
        %v726 = vadd.f32 %v412, %v725
        %727 = vmatprep.mubr.f32.mxu0 0.0
        %728 = vmatmul.mubr.f32.gmra.mrb[0].mxu0 %v491
        %v729 = vpop.f32.mrb[0].mxu0
        %v730 = vadd.f32 %v408, %v729
        %v731 = vpop.f32.mrb[0].mxu0
        %v732 = vadd.f32 %v412, %v731
        %733 = vmatprep.mubr.f32.mxu0 0.0
        %734 = vmatmul.mubr.f32.gmra.mrb[0].mxu0 %v494
        %v735 = vpop.f32.mrb[0].mxu0
        %v736 = vadd.f32 %v408, %v735
        %v737 = vpop.f32.mrb[0].mxu0
        %v738 = vadd.f32 %v412, %v737
        %739 = vmatprep.mubr.f32.mxu0 0.0
        %740 = vmatmul.mubr.f32.gmra.mrb[0].mxu0 %v497
        %v741 = vpop.f32.mrb[0].mxu0
        %v742 = vadd.f32 %v408, %v741
        %v743 = vpop.f32.mrb[0].mxu0
        %v744 = vadd.f32 %v412, %v743
        %745 = vmatprep.mubr.f32.mxu0 0.0
        %746 = vmatmul.mubr.f32.gmra.mrb[0].mxu0 %v500
        %v747 = vpop.f32.mrb[0].mxu0
        %v748 = vadd.f32 %v408, %v747
        %v749 = vpop.f32.mrb[0].mxu0
        %v750 = vadd.f32 %v412, %v749
        %751 = vmatprep.mubr.f32.mxu0 0.0
        %752 = vmatmul.mubr.f32.gmra.mrb[0].mxu0 %v503
        %v753 = vpop.f32.mrb[0].mxu0
        %v754 = vadd.f32 %v408, %v753
        %v755 = vpop.f32.mrb[0].mxu0
        %v756 = vadd.f32 %v412, %v755
        %757 = vmatprep.mubr.f32.mxu0 0.0
        %758 = vmatmul.mubr.f32.gmra.mrb[0].mxu0 %v506
        %v759 = vpop.f32.mrb[0].mxu0
        %v760 = vadd.f32 %v408, %v759
        %v761 = vpop.f32.mrb[0].mxu0
        %v762 = vadd.f32 %v412, %v761
        %763 = vmatprep.mubr.f32.mxu0 0.0
        %764 = vmatmul.mubr.f32.gmra.mrb[0].mxu0 %v509
        %v765 = vpop.f32.mrb[0].mxu0
        %v766 = vadd.f32 %v408, %v765
        %v767 = vpop.f32.mrb[0].mxu0
        %v768 = vadd.f32 %v412, %v767
        %769 = vmatprep.mubr.f32.mxu0 0.0
        %770 = vmatmul.mubr.f32.gmra.mrb[0].mxu0 %v512
        %v771 = vpop.f32.mrb[0].mxu0
        %v772 = vadd.f32 %v408, %v771
        %v773 = vpop.f32.mrb[0].mxu0
        %v774 = vadd.f32 %v412, %v773
        %775 = vdwg.mxu0
        %v776 = vsub.f32 0.0, %v586
        %v777 = vsub.f32 0.0, %v588
        %v778 = vsub.f32 0.0, %v592
        %v779 = vsub.f32 0.0, %v594
        %v780 = vsub.f32 0.0, %v598
        %v781 = vsub.f32 0.0, %v600
        %v782 = vsub.f32 0.0, %v604
        %v783 = vsub.f32 0.0, %v606
        %v784 = vsub.f32 0.0, %v610
        %v785 = vsub.f32 0.0, %v612
        %v786 = vsub.f32 0.0, %v616
        %v787 = vsub.f32 0.0, %v618
        %v788 = vsub.f32 0.0, %v622
        %v789 = vsub.f32 0.0, %v624
        %v790 = vsub.f32 0.0, %v628
        %v791 = vsub.f32 0.0, %v630
        %v792 = vsub.f32 0.0, %v634
        %v793 = vsub.f32 0.0, %v636
        %v794 = vsub.f32 0.0, %v640
        %v795 = vsub.f32 0.0, %v642
        %v796 = vsub.f32 0.0, %v646
        %v797 = vsub.f32 0.0, %v648
        %v798 = vsub.f32 0.0, %v652
        %v799 = vsub.f32 0.0, %v654
        %v800 = vsub.f32 0.0, %v658
        %v801 = vsub.f32 0.0, %v660
        %v802 = vsub.f32 0.0, %v664
        %v803 = vsub.f32 0.0, %v666
        %v804 = vsub.f32 0.0, %v670
        %v805 = vsub.f32 0.0, %v672
        %v806 = vsub.f32 0.0, %v676
        %v807 = vsub.f32 0.0, %v678
        %v808 = vsub.f32 0.0, %v682
        %v809 = vsub.f32 0.0, %v684
        %v810 = vsub.f32 0.0, %v688
        %v811 = vsub.f32 0.0, %v690
        %v812 = vsub.f32 0.0, %v694
        %v813 = vsub.f32 0.0, %v696
        %v814 = vsub.f32 0.0, %v700
        %v815 = vsub.f32 0.0, %v702
        %v816 = vsub.f32 0.0, %v706
        %v817 = vsub.f32 0.0, %v708
        %v818 = vsub.f32 0.0, %v712
        %v819 = vsub.f32 0.0, %v714
        %v820 = vsub.f32 0.0, %v718
        %v821 = vsub.f32 0.0, %v720
        %v822 = vsub.f32 0.0, %v724
        %v823 = vsub.f32 0.0, %v726
        %v824 = vsub.f32 0.0, %v730
        %v825 = vsub.f32 0.0, %v732
        %v826 = vsub.f32 0.0, %v736
        %v827 = vsub.f32 0.0, %v738
        %v828 = vsub.f32 0.0, %v742
        %v829 = vsub.f32 0.0, %v744
        %v830 = vsub.f32 0.0, %v748
        %v831 = vsub.f32 0.0, %v750
        %v832 = vsub.f32 0.0, %v754
        %v833 = vsub.f32 0.0, %v756
        %v834 = vsub.f32 0.0, %v760
        %v835 = vsub.f32 0.0, %v762
        %v836 = vsub.f32 0.0, %v766
        %v837 = vsub.f32 0.0, %v768
        %v838 = vsub.f32 0.0, %v772
        %v839 = vsub.f32 0.0, %v774
        %v840 = vmul.f32 %v776, 1.442695
        %v841 = vpow.pop %v840
        %v842 = vmul.f32 %v777, 1.442695
        %v843 = vpow.pop %v842
        %v844 = vmul.f32 %v778, 1.442695
        %v845 = vpow.pop %v844
        %v846 = vmul.f32 %v779, 1.442695
        %v847 = vpow.pop %v846
        %v848 = vmul.f32 %v780, 1.442695
        %v849 = vpow.pop %v848
        %v850 = vmul.f32 %v781, 1.442695
        %v851 = vpow.pop %v850
        %v852 = vmul.f32 %v782, 1.442695
        %v853 = vpow.pop %v852
        %v854 = vmul.f32 %v783, 1.442695
        %v855 = vpow.pop %v854
        %v856 = vmul.f32 %v784, 1.442695
        %v857 = vpow.pop %v856
        %v858 = vmul.f32 %v785, 1.442695
        %v859 = vpow.pop %v858
        %v860 = vmul.f32 %v786, 1.442695
        %v861 = vpow.pop %v860
        %v862 = vmul.f32 %v787, 1.442695
        %v863 = vpow.pop %v862
        %v864 = vmul.f32 %v788, 1.442695
        %v865 = vpow.pop %v864
        %v866 = vmul.f32 %v789, 1.442695
        %v867 = vpow.pop %v866
        %v868 = vmul.f32 %v790, 1.442695
        %v869 = vpow.pop %v868
        %v870 = vmul.f32 %v791, 1.442695
        %v871 = vpow.pop %v870
        %v872 = vmul.f32 %v792, 1.442695
        %v873 = vpow.pop %v872
        %v874 = vmul.f32 %v793, 1.442695
        %v875 = vpow.pop %v874
        %v876 = vmul.f32 %v794, 1.442695
        %v877 = vpow.pop %v876
        %v878 = vmul.f32 %v795, 1.442695
        %v879 = vpow.pop %v878
        %v880 = vmul.f32 %v796, 1.442695
        %v881 = vpow.pop %v880
        %v882 = vmul.f32 %v797, 1.442695
        %v883 = vpow.pop %v882
        %v884 = vmul.f32 %v798, 1.442695
        %v885 = vpow.pop %v884
        %v886 = vmul.f32 %v799, 1.442695
        %v887 = vpow.pop %v886
        %v888 = vmul.f32 %v800, 1.442695
        %v889 = vpow.pop %v888
        %v890 = vmul.f32 %v801, 1.442695
        %v891 = vpow.pop %v890
        %v892 = vmul.f32 %v802, 1.442695
        %v893 = vpow.pop %v892
        %v894 = vmul.f32 %v803, 1.442695
        %v895 = vpow.pop %v894
        %v896 = vmul.f32 %v804, 1.442695
        %v897 = vpow.pop %v896
        %v898 = vmul.f32 %v805, 1.442695
        %v899 = vpow.pop %v898
        %v900 = vmul.f32 %v806, 1.442695
        %v901 = vpow.pop %v900
        %v902 = vmul.f32 %v807, 1.442695
        %v903 = vpow.pop %v902
        %v904 = vmul.f32 %v808, 1.442695
        %v905 = vpow.pop %v904
        %v906 = vmul.f32 %v809, 1.442695
        %v907 = vpow.pop %v906
        %v908 = vmul.f32 %v810, 1.442695
        %v909 = vpow.pop %v908
        %v910 = vmul.f32 %v811, 1.442695
        %v911 = vpow.pop %v910
        %v912 = vmul.f32 %v812, 1.442695
        %v913 = vpow.pop %v912
        %v914 = vmul.f32 %v813, 1.442695
        %v915 = vpow.pop %v914
        %v916 = vmul.f32 %v814, 1.442695
        %v917 = vpow.pop %v916
        %v918 = vmul.f32 %v815, 1.442695
        %v919 = vpow.pop %v918
        %v920 = vmul.f32 %v816, 1.442695
        %v921 = vpow.pop %v920
        %v922 = vmul.f32 %v817, 1.442695
        %v923 = vpow.pop %v922
        %v924 = vmul.f32 %v818, 1.442695
        %v925 = vpow.pop %v924
        %v926 = vmul.f32 %v819, 1.442695
        %v927 = vpow.pop %v926
        %v928 = vmul.f32 %v820, 1.442695
        %v929 = vpow.pop %v928
        %v930 = vmul.f32 %v821, 1.442695
        %v931 = vpow.pop %v930
        %v932 = vmul.f32 %v822, 1.442695
        %v933 = vpow.pop %v932
        %v934 = vmul.f32 %v823, 1.442695
        %v935 = vpow.pop %v934
        %v936 = vmul.f32 %v824, 1.442695
        %v937 = vpow.pop %v936
        %v938 = vmul.f32 %v825, 1.442695
        %v939 = vpow.pop %v938
        %v940 = vmul.f32 %v826, 1.442695
        %v941 = vpow.pop %v940
        %v942 = vmul.f32 %v827, 1.442695
        %v943 = vpow.pop %v942
        %v944 = vmul.f32 %v828, 1.442695
        %v945 = vpow.pop %v944
        %v946 = vmul.f32 %v829, 1.442695
        %v947 = vpow.pop %v946
        %v948 = vmul.f32 %v830, 1.442695
        %v949 = vpow.pop %v948
        %v950 = vmul.f32 %v831, 1.442695
        %v951 = vpow.pop %v950
        %v952 = vmul.f32 %v832, 1.442695
        %v953 = vpow.pop %v952
        %v954 = vmul.f32 %v833, 1.442695
        %v955 = vpow.pop %v954
        %v956 = vmul.f32 %v834, 1.442695
        %v957 = vpow.pop %v956
        %v958 = vmul.f32 %v835, 1.442695
        %v959 = vpow.pop %v958
        %v960 = vmul.f32 %v836, 1.442695
        %v961 = vpow.pop %v960
        %v962 = vmul.f32 %v837, 1.442695
        %v963 = vpow.pop %v962
        %v964 = vmul.f32 %v838, 1.442695
        %v965 = vpow.pop %v964
        %v966 = vmul.f32 %v839, 1.442695
        %v967 = vpow.pop %v966
        %v968 = vadd.f32 %v841, 1.0
        %v969 = vadd.f32 %v843, 1.0
        %v970 = vadd.f32 %v845, 1.0
        %v971 = vadd.f32 %v847, 1.0
        %v972 = vadd.f32 %v849, 1.0
        %v973 = vadd.f32 %v851, 1.0
        %v974 = vadd.f32 %v853, 1.0
        %v975 = vadd.f32 %v855, 1.0
        %v976 = vadd.f32 %v857, 1.0
        %v977 = vadd.f32 %v859, 1.0
        %v978 = vadd.f32 %v861, 1.0
        %v979 = vadd.f32 %v863, 1.0
        %v980 = vadd.f32 %v865, 1.0
        %v981 = vadd.f32 %v867, 1.0
        %v982 = vadd.f32 %v869, 1.0
        %v983 = vadd.f32 %v871, 1.0
        %v984 = vadd.f32 %v873, 1.0
        %v985 = vadd.f32 %v875, 1.0
        %v986 = vadd.f32 %v877, 1.0
        %v987 = vadd.f32 %v879, 1.0
        %v988 = vadd.f32 %v881, 1.0
        %v989 = vadd.f32 %v883, 1.0
        %v990 = vadd.f32 %v885, 1.0
        %v991 = vadd.f32 %v887, 1.0
        %v992 = vadd.f32 %v889, 1.0
        %v993 = vadd.f32 %v891, 1.0
        %v994 = vadd.f32 %v893, 1.0
        %v995 = vadd.f32 %v895, 1.0
        %v996 = vadd.f32 %v897, 1.0
        %v997 = vadd.f32 %v899, 1.0
        %v998 = vadd.f32 %v901, 1.0
        %v999 = vadd.f32 %v903, 1.0
        %v1000 = vadd.f32 %v905, 1.0
        %v1001 = vadd.f32 %v907, 1.0
        %v1002 = vadd.f32 %v909, 1.0
        %v1003 = vadd.f32 %v911, 1.0
        %v1004 = vadd.f32 %v913, 1.0
        %v1005 = vadd.f32 %v915, 1.0
        %v1006 = vadd.f32 %v917, 1.0
        %v1007 = vadd.f32 %v919, 1.0
        %v1008 = vadd.f32 %v921, 1.0
        %v1009 = vadd.f32 %v923, 1.0
        %v1010 = vadd.f32 %v925, 1.0
        %v1011 = vadd.f32 %v927, 1.0
        %v1012 = vadd.f32 %v929, 1.0
        %v1013 = vadd.f32 %v931, 1.0
        %v1014 = vadd.f32 %v933, 1.0
        %v1015 = vadd.f32 %v935, 1.0
        %v1016 = vadd.f32 %v937, 1.0
        %v1017 = vadd.f32 %v939, 1.0
        %v1018 = vadd.f32 %v941, 1.0
        %v1019 = vadd.f32 %v943, 1.0
        %v1020 = vadd.f32 %v945, 1.0
        %v1021 = vadd.f32 %v947, 1.0
        %v1022 = vadd.f32 %v949, 1.0
        %v1023 = vadd.f32 %v951, 1.0
        %v1024 = vadd.f32 %v953, 1.0
        %v1025 = vadd.f32 %v955, 1.0
        %v1026 = vadd.f32 %v957, 1.0
        %v1027 = vadd.f32 %v959, 1.0
        %v1028 = vadd.f32 %v961, 1.0
        %v1029 = vadd.f32 %v963, 1.0
        %v1030 = vadd.f32 %v965, 1.0
        %v1031 = vadd.f32 %v967, 1.0
        %v1032 = vrcp.pop %v968
        %v1033 = vrcp.pop %v969
        %v1034 = vrcp.pop %v970
        %v1035 = vrcp.pop %v971
        %v1036 = vrcp.pop %v972
        %v1037 = vrcp.pop %v973
        %v1038 = vrcp.pop %v974
        %v1039 = vrcp.pop %v975
        %v1040 = vrcp.pop %v976
        %v1041 = vrcp.pop %v977
        %v1042 = vrcp.pop %v978
        %v1043 = vrcp.pop %v979
        %v1044 = vrcp.pop %v980
        %v1045 = vrcp.pop %v981
        %v1046 = vrcp.pop %v982
        %v1047 = vrcp.pop %v983
        %v1048 = vrcp.pop %v984
        %v1049 = vrcp.pop %v985
        %v1050 = vrcp.pop %v986
        %v1051 = vrcp.pop %v987
        %v1052 = vrcp.pop %v988
        %v1053 = vrcp.pop %v989
        %v1054 = vrcp.pop %v990
        %v1055 = vrcp.pop %v991
        %v1056 = vrcp.pop %v992
        %v1057 = vrcp.pop %v993
        %v1058 = vrcp.pop %v994
        %v1059 = vrcp.pop %v995
        %v1060 = vrcp.pop %v996
        %v1061 = vrcp.pop %v997
        %v1062 = vrcp.pop %v998
        %v1063 = vrcp.pop %v999
        %v1064 = vrcp.pop %v1000
        %v1065 = vrcp.pop %v1001
        %v1066 = vrcp.pop %v1002
        %v1067 = vrcp.pop %v1003
        %v1068 = vrcp.pop %v1004
        %v1069 = vrcp.pop %v1005
        %v1070 = vrcp.pop %v1006
        %v1071 = vrcp.pop %v1007
        %v1072 = vrcp.pop %v1008
        %v1073 = vrcp.pop %v1009
        %v1074 = vrcp.pop %v1010
        %v1075 = vrcp.pop %v1011
        %v1076 = vrcp.pop %v1012
        %v1077 = vrcp.pop %v1013
        %v1078 = vrcp.pop %v1014
        %v1079 = vrcp.pop %v1015
        %v1080 = vrcp.pop %v1016
        %v1081 = vrcp.pop %v1017
        %v1082 = vrcp.pop %v1018
        %v1083 = vrcp.pop %v1019
        %v1084 = vrcp.pop %v1020
        %v1085 = vrcp.pop %v1021
        %v1086 = vrcp.pop %v1022
        %v1087 = vrcp.pop %v1023
        %v1088 = vrcp.pop %v1024
        %v1089 = vrcp.pop %v1025
        %v1090 = vrcp.pop %v1026
        %v1091 = vrcp.pop %v1027
        %v1092 = vrcp.pop %v1028
        %v1093 = vrcp.pop %v1029
        %v1094 = vrcp.pop %v1030
        %v1095 = vrcp.pop %v1031
        %v1096 = vmul.f32 %v586, %v1032
        %v1097 = vmul.f32 %v588, %v1033
        %v1098 = vmul.f32 %v592, %v1034
        %v1099 = vmul.f32 %v594, %v1035
        %v1100 = vmul.f32 %v598, %v1036
        %v1101 = vmul.f32 %v600, %v1037
        %v1102 = vmul.f32 %v604, %v1038
        %v1103 = vmul.f32 %v606, %v1039
        %v1104 = vmul.f32 %v610, %v1040
        %v1105 = vmul.f32 %v612, %v1041
        %v1106 = vmul.f32 %v616, %v1042
        %v1107 = vmul.f32 %v618, %v1043
        %v1108 = vmul.f32 %v622, %v1044
        %v1109 = vmul.f32 %v624, %v1045
        %v1110 = vmul.f32 %v628, %v1046
        %v1111 = vmul.f32 %v630, %v1047
        %v1112 = vmul.f32 %v634, %v1048
        %v1113 = vmul.f32 %v636, %v1049
        %v1114 = vmul.f32 %v640, %v1050
        %v1115 = vmul.f32 %v642, %v1051
        %v1116 = vmul.f32 %v646, %v1052
        %v1117 = vmul.f32 %v648, %v1053
        %v1118 = vmul.f32 %v652, %v1054
        %v1119 = vmul.f32 %v654, %v1055
        %v1120 = vmul.f32 %v658, %v1056
        %v1121 = vmul.f32 %v660, %v1057
        %v1122 = vmul.f32 %v664, %v1058
        %v1123 = vmul.f32 %v666, %v1059
        %v1124 = vmul.f32 %v670, %v1060
        %v1125 = vmul.f32 %v672, %v1061
        %v1126 = vmul.f32 %v676, %v1062
        %v1127 = vmul.f32 %v678, %v1063
        %v1128 = vmul.f32 %v682, %v1064
        %v1129 = vmul.f32 %v684, %v1065
        %v1130 = vmul.f32 %v688, %v1066
        %v1131 = vmul.f32 %v690, %v1067
        %v1132 = vmul.f32 %v694, %v1068
        %v1133 = vmul.f32 %v696, %v1069
        %v1134 = vmul.f32 %v700, %v1070
        %v1135 = vmul.f32 %v702, %v1071
        %v1136 = vmul.f32 %v706, %v1072
        %v1137 = vmul.f32 %v708, %v1073
        %v1138 = vmul.f32 %v712, %v1074
        %v1139 = vmul.f32 %v714, %v1075
        %v1140 = vmul.f32 %v718, %v1076
        %v1141 = vmul.f32 %v720, %v1077
        %v1142 = vmul.f32 %v724, %v1078
        %v1143 = vmul.f32 %v726, %v1079
        %v1144 = vmul.f32 %v730, %v1080
        %v1145 = vmul.f32 %v732, %v1081
        %v1146 = vmul.f32 %v736, %v1082
        %v1147 = vmul.f32 %v738, %v1083
        %v1148 = vmul.f32 %v742, %v1084
        %v1149 = vmul.f32 %v744, %v1085
        %v1150 = vmul.f32 %v748, %v1086
        %v1151 = vmul.f32 %v750, %v1087
        %v1152 = vmul.f32 %v754, %v1088
        %v1153 = vmul.f32 %v756, %v1089
        %v1154 = vmul.f32 %v760, %v1090
        %v1155 = vmul.f32 %v762, %v1091
        %v1156 = vmul.f32 %v766, %v1092
        %v1157 = vmul.f32 %v768, %v1093
        %v1158 = vmul.f32 %v772, %v1094
        %v1159 = vmul.f32 %v774, %v1095
        %v1160 = vld [vmem:[%s3] sm:$0xff]
        %v1161 = vld [vmem:[%s3 + $0x8] sm:$0xff]
        %v1162 = vld [vmem:[%s3 + $0x10] sm:$0xff]
        %v1163 = vld [vmem:[%s3 + $0x18] sm:$0xff]
        %v1164 = vld [vmem:[%s3 + $0x20] sm:$0xff]
        %v1165 = vld [vmem:[%s3 + $0x28] sm:$0xff]
        %v1166 = vld [vmem:[%s3 + $0x30] sm:$0xff]
        %v1167 = vld [vmem:[%s3 + $0x38] sm:$0xff]
        %v1168 = vld [vmem:[%s3 + $0x40] sm:$0xff]
        %v1169 = vld [vmem:[%s3 + $0x48] sm:$0xff]
        %v1170 = vld [vmem:[%s3 + $0x50] sm:$0xff]
        %v1171 = vld [vmem:[%s3 + $0x58] sm:$0xff]
        %v1172 = vld [vmem:[%s3 + $0x60] sm:$0xff]
        %v1173 = vld [vmem:[%s3 + $0x68] sm:$0xff]
        %v1174 = vld [vmem:[%s3 + $0x70] sm:$0xff]
        %v1175 = vld [vmem:[%s3 + $0x78] sm:$0xff]
        %v1176 = vld [vmem:[%s4] sm:$0x1]
        %v1178 = vlaneseq
        %v1179 = vshrl.u32 %v1178, 7
        %v1180 = vsub.s32 0, %v1179
        %v1181 = vrot.slane %v1176, %v1180
        %1183 = vmatprep.subr.mxu0 0.0
        %1184 = vmatpush1.msra.mxu0 %v1160
        %1185 = vmatprep.subr.mxu0 0.0
        %1186 = vmatpush1.msra.mxu0 %v1161
        %1187 = vmatprep.subr.mxu0 0.0
        %1188 = vmatpush1.msra.mxu0 %v1162
        %1189 = vmatprep.subr.mxu0 0.0
        %1190 = vmatpush1.msra.mxu0 %v1163
        %1191 = vmatprep.subr.mxu0 0.0
        %1192 = vmatpush1.msra.mxu0 %v1164
        %1193 = vmatprep.subr.mxu0 0.0
        %1194 = vmatpush1.msra.mxu0 %v1165
        %1195 = vmatprep.subr.mxu0 0.0
        %1196 = vmatpush1.msra.mxu0 %v1166
        %1197 = vmatprep.subr.mxu0 0.0
        %1198 = vmatpush1.msra.mxu0 %v1167
        %1199 = vmatprep.subr.mxu0 0.0
        %1200 = vmatpush1.msra.mxu0 %v1168
        %1201 = vmatprep.subr.mxu0 0.0
        %1202 = vmatpush1.msra.mxu0 %v1169
        %1203 = vmatprep.subr.mxu0 0.0
        %1204 = vmatpush1.msra.mxu0 %v1170
        %1205 = vmatprep.subr.mxu0 0.0
        %1206 = vmatpush1.msra.mxu0 %v1171
        %1207 = vmatprep.subr.mxu0 0.0
        %1208 = vmatpush1.msra.mxu0 %v1172
        %1209 = vmatprep.subr.mxu0 0.0
        %1210 = vmatpush1.msra.mxu0 %v1173
        %1211 = vmatprep.subr.mxu0 0.0
        %1212 = vmatpush1.msra.mxu0 %v1174
        %1213 = vmatprep.subr.mxu0 0.0
        %1214 = vmatpush1.msra.mxu0 %v1175
        %1215 = vmatprep.subr.mxu0 0.0
        %1216 = vmatpush1.msra.mxu0 0.0
        %1217 = vmatprep.subr.mxu0 0.0
        %1218 = vmatpush1.msra.mxu0 0.0
        %1219 = vmatprep.subr.mxu0 0.0
        %1220 = vmatpush1.msra.mxu0 0.0
        %1221 = vmatprep.subr.mxu0 0.0
        %1222 = vmatpush1.msra.mxu0 0.0
        %1223 = vmatprep.subr.mxu0 0.0
        %1224 = vmatpush1.msra.mxu0 0.0
        %1225 = vmatprep.subr.mxu0 0.0
        %1226 = vmatpush1.msra.mxu0 0.0
        %1227 = vmatprep.subr.mxu0 0.0
        %1228 = vmatpush1.msra.mxu0 0.0
        %1229 = vmatprep.subr.mxu0 0.0
        %1230 = vmatpush1.msra.mxu0 0.0
        %1231 = vmatprep.subr.mxu0 0.0
        %1232 = vmatpush1.msra.mxu0 0.0
        %1233 = vmatprep.subr.mxu0 0.0
        %1234 = vmatpush1.msra.mxu0 0.0
        %1235 = vmatprep.subr.mxu0 0.0
        %1236 = vmatpush1.msra.mxu0 0.0
        %1237 = vmatprep.subr.mxu0 0.0
        %1238 = vmatpush1.msra.mxu0 0.0
        %1239 = vmatprep.subr.mxu0 0.0
        %1240 = vmatpush1.msra.mxu0 0.0
        %1241 = vmatprep.subr.mxu0 0.0
        %1242 = vmatpush1.msra.mxu0 0.0
        %1243 = vmatprep.subr.mxu0 0.0
        %1244 = vmatpush1.msra.mxu0 0.0
        %1245 = vmatprep.subr.mxu0 0.0
        %1246 = vmatpush1.msra.mxu0 0.0
        %1247 = vmatprep.mubr.f32.mxu0 0.0
        %1248 = vmatmul.mubr.f32.gmra.mrb[0].mxu0 %v1096
        %v1249 = vpop.f32.mrb[0].mxu0
        %v1250 = vadd.f32 %v1181, %v1249
        %v1251 = vpop.f32.mrb[0].mxu0
        %1252 = vmatprep.mubr.f32.mxu0 0.0
        %1253 = vmatmul.mubr.f32.gmra.mrb[0].mxu0 %v1098
        %v1254 = vpop.f32.mrb[0].mxu0
        %v1255 = vadd.f32 %v1181, %v1254
        %v1256 = vpop.f32.mrb[0].mxu0
        %1257 = vmatprep.mubr.f32.mxu0 0.0
        %1258 = vmatmul.mubr.f32.gmra.mrb[0].mxu0 %v1100
        %v1259 = vpop.f32.mrb[0].mxu0
        %v1260 = vadd.f32 %v1181, %v1259
        %v1261 = vpop.f32.mrb[0].mxu0
        %1262 = vmatprep.mubr.f32.mxu0 0.0
        %1263 = vmatmul.mubr.f32.gmra.mrb[0].mxu0 %v1102
        %v1264 = vpop.f32.mrb[0].mxu0
        %v1265 = vadd.f32 %v1181, %v1264
        %v1266 = vpop.f32.mrb[0].mxu0
        %1267 = vmatprep.mubr.f32.mxu0 0.0
        %1268 = vmatmul.mubr.f32.gmra.mrb[0].mxu0 %v1104
        %v1269 = vpop.f32.mrb[0].mxu0
        %v1270 = vadd.f32 %v1181, %v1269
        %v1271 = vpop.f32.mrb[0].mxu0
        %1272 = vmatprep.mubr.f32.mxu0 0.0
        %1273 = vmatmul.mubr.f32.gmra.mrb[0].mxu0 %v1106
        %v1274 = vpop.f32.mrb[0].mxu0
        %v1275 = vadd.f32 %v1181, %v1274
        %v1276 = vpop.f32.mrb[0].mxu0
        %1277 = vmatprep.mubr.f32.mxu0 0.0
        %1278 = vmatmul.mubr.f32.gmra.mrb[0].mxu0 %v1108
        %v1279 = vpop.f32.mrb[0].mxu0
        %v1280 = vadd.f32 %v1181, %v1279
        %v1281 = vpop.f32.mrb[0].mxu0
        %1282 = vmatprep.mubr.f32.mxu0 0.0
        %1283 = vmatmul.mubr.f32.gmra.mrb[0].mxu0 %v1110
        %v1284 = vpop.f32.mrb[0].mxu0
        %v1285 = vadd.f32 %v1181, %v1284
        %v1286 = vpop.f32.mrb[0].mxu0
        %1287 = vmatprep.mubr.f32.mxu0 0.0
        %1288 = vmatmul.mubr.f32.gmra.mrb[0].mxu0 %v1112
        %v1289 = vpop.f32.mrb[0].mxu0
        %v1290 = vadd.f32 %v1181, %v1289
        %v1291 = vpop.f32.mrb[0].mxu0
        %1292 = vmatprep.mubr.f32.mxu0 0.0
        %1293 = vmatmul.mubr.f32.gmra.mrb[0].mxu0 %v1114
        %v1294 = vpop.f32.mrb[0].mxu0
        %v1295 = vadd.f32 %v1181, %v1294
        %v1296 = vpop.f32.mrb[0].mxu0
        %1297 = vmatprep.mubr.f32.mxu0 0.0
        %1298 = vmatmul.mubr.f32.gmra.mrb[0].mxu0 %v1116
        %v1299 = vpop.f32.mrb[0].mxu0
        %v1300 = vadd.f32 %v1181, %v1299
        %v1301 = vpop.f32.mrb[0].mxu0
        %1302 = vmatprep.mubr.f32.mxu0 0.0
        %1303 = vmatmul.mubr.f32.gmra.mrb[0].mxu0 %v1118
        %v1304 = vpop.f32.mrb[0].mxu0
        %v1305 = vadd.f32 %v1181, %v1304
        %v1306 = vpop.f32.mrb[0].mxu0
        %1307 = vmatprep.mubr.f32.mxu0 0.0
        %1308 = vmatmul.mubr.f32.gmra.mrb[0].mxu0 %v1120
        %v1309 = vpop.f32.mrb[0].mxu0
        %v1310 = vadd.f32 %v1181, %v1309
        %v1311 = vpop.f32.mrb[0].mxu0
        %1312 = vmatprep.mubr.f32.mxu0 0.0
        %1313 = vmatmul.mubr.f32.gmra.mrb[0].mxu0 %v1122
        %v1314 = vpop.f32.mrb[0].mxu0
        %v1315 = vadd.f32 %v1181, %v1314
        %v1316 = vpop.f32.mrb[0].mxu0
        %1317 = vmatprep.mubr.f32.mxu0 0.0
        %1318 = vmatmul.mubr.f32.gmra.mrb[0].mxu0 %v1124
        %v1319 = vpop.f32.mrb[0].mxu0
        %v1320 = vadd.f32 %v1181, %v1319
        %v1321 = vpop.f32.mrb[0].mxu0
        %1322 = vmatprep.mubr.f32.mxu0 0.0
        %1323 = vmatmul.mubr.f32.gmra.mrb[0].mxu0 %v1126
        %v1324 = vpop.f32.mrb[0].mxu0
        %v1325 = vadd.f32 %v1181, %v1324
        %v1326 = vpop.f32.mrb[0].mxu0
        %1327 = vmatprep.mubr.f32.mxu0 0.0
        %1328 = vmatmul.mubr.f32.gmra.mrb[0].mxu0 %v1128
        %v1329 = vpop.f32.mrb[0].mxu0
        %v1330 = vadd.f32 %v1181, %v1329
        %v1331 = vpop.f32.mrb[0].mxu0
        %1332 = vmatprep.mubr.f32.mxu0 0.0
        %1333 = vmatmul.mubr.f32.gmra.mrb[0].mxu0 %v1130
        %v1334 = vpop.f32.mrb[0].mxu0
        %v1335 = vadd.f32 %v1181, %v1334
        %v1336 = vpop.f32.mrb[0].mxu0
        %1337 = vmatprep.mubr.f32.mxu0 0.0
        %1338 = vmatmul.mubr.f32.gmra.mrb[0].mxu0 %v1132
        %v1339 = vpop.f32.mrb[0].mxu0
        %v1340 = vadd.f32 %v1181, %v1339
        %v1341 = vpop.f32.mrb[0].mxu0
        %1342 = vmatprep.mubr.f32.mxu0 0.0
        %1343 = vmatmul.mubr.f32.gmra.mrb[0].mxu0 %v1134
        %v1344 = vpop.f32.mrb[0].mxu0
        %v1345 = vadd.f32 %v1181, %v1344
        %v1346 = vpop.f32.mrb[0].mxu0
        %1347 = vmatprep.mubr.f32.mxu0 0.0
        %1348 = vmatmul.mubr.f32.gmra.mrb[0].mxu0 %v1136
        %v1349 = vpop.f32.mrb[0].mxu0
        %v1350 = vadd.f32 %v1181, %v1349
        %v1351 = vpop.f32.mrb[0].mxu0
        %1352 = vmatprep.mubr.f32.mxu0 0.0
        %1353 = vmatmul.mubr.f32.gmra.mrb[0].mxu0 %v1138
        %v1354 = vpop.f32.mrb[0].mxu0
        %v1355 = vadd.f32 %v1181, %v1354
        %v1356 = vpop.f32.mrb[0].mxu0
        %1357 = vmatprep.mubr.f32.mxu0 0.0
        %1358 = vmatmul.mubr.f32.gmra.mrb[0].mxu0 %v1140
        %v1359 = vpop.f32.mrb[0].mxu0
        %v1360 = vadd.f32 %v1181, %v1359
        %v1361 = vpop.f32.mrb[0].mxu0
        %1362 = vmatprep.mubr.f32.mxu0 0.0
        %1363 = vmatmul.mubr.f32.gmra.mrb[0].mxu0 %v1142
        %v1364 = vpop.f32.mrb[0].mxu0
        %v1365 = vadd.f32 %v1181, %v1364
        %v1366 = vpop.f32.mrb[0].mxu0
        %1367 = vmatprep.mubr.f32.mxu0 0.0
        %1368 = vmatmul.mubr.f32.gmra.mrb[0].mxu0 %v1144
        %v1369 = vpop.f32.mrb[0].mxu0
        %v1370 = vadd.f32 %v1181, %v1369
        %v1371 = vpop.f32.mrb[0].mxu0
        %1372 = vmatprep.mubr.f32.mxu0 0.0
        %1373 = vmatmul.mubr.f32.gmra.mrb[0].mxu0 %v1146
        %v1374 = vpop.f32.mrb[0].mxu0
        %v1375 = vadd.f32 %v1181, %v1374
        %v1376 = vpop.f32.mrb[0].mxu0
        %1377 = vmatprep.mubr.f32.mxu0 0.0
        %1378 = vmatmul.mubr.f32.gmra.mrb[0].mxu0 %v1148
        %v1379 = vpop.f32.mrb[0].mxu0
        %v1380 = vadd.f32 %v1181, %v1379
        %v1381 = vpop.f32.mrb[0].mxu0
        %1382 = vmatprep.mubr.f32.mxu0 0.0
        %1383 = vmatmul.mubr.f32.gmra.mrb[0].mxu0 %v1150
        %v1384 = vpop.f32.mrb[0].mxu0
        %v1385 = vadd.f32 %v1181, %v1384
        %v1386 = vpop.f32.mrb[0].mxu0
        %1387 = vmatprep.mubr.f32.mxu0 0.0
        %1388 = vmatmul.mubr.f32.gmra.mrb[0].mxu0 %v1152
        %v1389 = vpop.f32.mrb[0].mxu0
        %v1390 = vadd.f32 %v1181, %v1389
        %v1391 = vpop.f32.mrb[0].mxu0
        %1392 = vmatprep.mubr.f32.mxu0 0.0
        %1393 = vmatmul.mubr.f32.gmra.mrb[0].mxu0 %v1154
        %v1394 = vpop.f32.mrb[0].mxu0
        %v1395 = vadd.f32 %v1181, %v1394
        %v1396 = vpop.f32.mrb[0].mxu0
        %1397 = vmatprep.mubr.f32.mxu0 0.0
        %1398 = vmatmul.mubr.f32.gmra.mrb[0].mxu0 %v1156
        %v1399 = vpop.f32.mrb[0].mxu0
        %v1400 = vadd.f32 %v1181, %v1399
        %v1401 = vpop.f32.mrb[0].mxu0
        %1402 = vmatprep.mubr.f32.mxu0 0.0
        %1403 = vmatmul.mubr.f32.gmra.mrb[0].mxu0 %v1158
        %v1404 = vpop.f32.mrb[0].mxu0
        %v1405 = vadd.f32 %v1181, %v1404
        %v1406 = vpop.f32.mrb[0].mxu0
        %1407 = vdwg.mxu0
        %v1408 = vsub.f32 0.0, %v1250
        %v1409 = vsub.f32 0.0, %v1255
        %v1410 = vsub.f32 0.0, %v1260
        %v1411 = vsub.f32 0.0, %v1265
        %v1412 = vsub.f32 0.0, %v1270
        %v1413 = vsub.f32 0.0, %v1275
        %v1414 = vsub.f32 0.0, %v1280
        %v1415 = vsub.f32 0.0, %v1285
        %v1416 = vsub.f32 0.0, %v1290
        %v1417 = vsub.f32 0.0, %v1295
        %v1418 = vsub.f32 0.0, %v1300
        %v1419 = vsub.f32 0.0, %v1305
        %v1420 = vsub.f32 0.0, %v1310
        %v1421 = vsub.f32 0.0, %v1315
        %v1422 = vsub.f32 0.0, %v1320
        %v1423 = vsub.f32 0.0, %v1325
        %v1424 = vsub.f32 0.0, %v1330
        %v1425 = vsub.f32 0.0, %v1335
        %v1426 = vsub.f32 0.0, %v1340
        %v1427 = vsub.f32 0.0, %v1345
        %v1428 = vsub.f32 0.0, %v1350
        %v1429 = vsub.f32 0.0, %v1355
        %v1430 = vsub.f32 0.0, %v1360
        %v1431 = vsub.f32 0.0, %v1365
        %v1432 = vsub.f32 0.0, %v1370
        %v1433 = vsub.f32 0.0, %v1375
        %v1434 = vsub.f32 0.0, %v1380
        %v1435 = vsub.f32 0.0, %v1385
        %v1436 = vsub.f32 0.0, %v1390
        %v1437 = vsub.f32 0.0, %v1395
        %v1438 = vsub.f32 0.0, %v1400
        %v1439 = vsub.f32 0.0, %v1405
        %v1440 = vmul.f32 %v1408, 1.442695
        %v1441 = vpow.pop %v1440
        %v1442 = vmul.f32 %v1409, 1.442695
        %v1443 = vpow.pop %v1442
        %v1444 = vmul.f32 %v1410, 1.442695
        %v1445 = vpow.pop %v1444
        %v1446 = vmul.f32 %v1411, 1.442695
        %v1447 = vpow.pop %v1446
        %v1448 = vmul.f32 %v1412, 1.442695
        %v1449 = vpow.pop %v1448
        %v1450 = vmul.f32 %v1413, 1.442695
        %v1451 = vpow.pop %v1450
        %v1452 = vmul.f32 %v1414, 1.442695
        %v1453 = vpow.pop %v1452
        %v1454 = vmul.f32 %v1415, 1.442695
        %v1455 = vpow.pop %v1454
        %v1456 = vmul.f32 %v1416, 1.442695
        %v1457 = vpow.pop %v1456
        %v1458 = vmul.f32 %v1417, 1.442695
        %v1459 = vpow.pop %v1458
        %v1460 = vmul.f32 %v1418, 1.442695
        %v1461 = vpow.pop %v1460
        %v1462 = vmul.f32 %v1419, 1.442695
        %v1463 = vpow.pop %v1462
        %v1464 = vmul.f32 %v1420, 1.442695
        %v1465 = vpow.pop %v1464
        %v1466 = vmul.f32 %v1421, 1.442695
        %v1467 = vpow.pop %v1466
        %v1468 = vmul.f32 %v1422, 1.442695
        %v1469 = vpow.pop %v1468
        %v1470 = vmul.f32 %v1423, 1.442695
        %v1471 = vpow.pop %v1470
        %v1472 = vmul.f32 %v1424, 1.442695
        %v1473 = vpow.pop %v1472
        %v1474 = vmul.f32 %v1425, 1.442695
        %v1475 = vpow.pop %v1474
        %v1476 = vmul.f32 %v1426, 1.442695
        %v1477 = vpow.pop %v1476
        %v1478 = vmul.f32 %v1427, 1.442695
        %v1479 = vpow.pop %v1478
        %v1480 = vmul.f32 %v1428, 1.442695
        %v1481 = vpow.pop %v1480
        %v1482 = vmul.f32 %v1429, 1.442695
        %v1483 = vpow.pop %v1482
        %v1484 = vmul.f32 %v1430, 1.442695
        %v1485 = vpow.pop %v1484
        %v1486 = vmul.f32 %v1431, 1.442695
        %v1487 = vpow.pop %v1486
        %v1488 = vmul.f32 %v1432, 1.442695
        %v1489 = vpow.pop %v1488
        %v1490 = vmul.f32 %v1433, 1.442695
        %v1491 = vpow.pop %v1490
        %v1492 = vmul.f32 %v1434, 1.442695
        %v1493 = vpow.pop %v1492
        %v1494 = vmul.f32 %v1435, 1.442695
        %v1495 = vpow.pop %v1494
        %v1496 = vmul.f32 %v1436, 1.442695
        %v1497 = vpow.pop %v1496
        %v1498 = vmul.f32 %v1437, 1.442695
        %v1499 = vpow.pop %v1498
        %v1500 = vmul.f32 %v1438, 1.442695
        %v1501 = vpow.pop %v1500
        %v1502 = vmul.f32 %v1439, 1.442695
        %v1503 = vpow.pop %v1502
        %v1504 = vadd.f32 %v1441, 1.0
        %v1505 = vadd.f32 %v1443, 1.0
        %v1506 = vadd.f32 %v1445, 1.0
        %v1507 = vadd.f32 %v1447, 1.0
        %v1508 = vadd.f32 %v1449, 1.0
        %v1509 = vadd.f32 %v1451, 1.0
        %v1510 = vadd.f32 %v1453, 1.0
        %v1511 = vadd.f32 %v1455, 1.0
        %v1512 = vadd.f32 %v1457, 1.0
        %v1513 = vadd.f32 %v1459, 1.0
        %v1514 = vadd.f32 %v1461, 1.0
        %v1515 = vadd.f32 %v1463, 1.0
        %v1516 = vadd.f32 %v1465, 1.0
        %v1517 = vadd.f32 %v1467, 1.0
        %v1518 = vadd.f32 %v1469, 1.0
        %v1519 = vadd.f32 %v1471, 1.0
        %v1520 = vadd.f32 %v1473, 1.0
        %v1521 = vadd.f32 %v1475, 1.0
        %v1522 = vadd.f32 %v1477, 1.0
        %v1523 = vadd.f32 %v1479, 1.0
        %v1524 = vadd.f32 %v1481, 1.0
        %v1525 = vadd.f32 %v1483, 1.0
        %v1526 = vadd.f32 %v1485, 1.0
        %v1527 = vadd.f32 %v1487, 1.0
        %v1528 = vadd.f32 %v1489, 1.0
        %v1529 = vadd.f32 %v1491, 1.0
        %v1530 = vadd.f32 %v1493, 1.0
        %v1531 = vadd.f32 %v1495, 1.0
        %v1532 = vadd.f32 %v1497, 1.0
        %v1533 = vadd.f32 %v1499, 1.0
        %v1534 = vadd.f32 %v1501, 1.0
        %v1535 = vadd.f32 %v1503, 1.0
        %v1536 = vrcp.pop %v1504
        %v1537 = vrcp.pop %v1505
        %v1538 = vrcp.pop %v1506
        %v1539 = vrcp.pop %v1507
        %v1540 = vrcp.pop %v1508
        %v1541 = vrcp.pop %v1509
        %v1542 = vrcp.pop %v1510
        %v1543 = vrcp.pop %v1511
        %v1544 = vrcp.pop %v1512
        %v1545 = vrcp.pop %v1513
        %v1546 = vrcp.pop %v1514
        %v1547 = vrcp.pop %v1515
        %v1548 = vrcp.pop %v1516
        %v1549 = vrcp.pop %v1517
        %v1550 = vrcp.pop %v1518
        %v1551 = vrcp.pop %v1519
        %v1552 = vrcp.pop %v1520
        %v1553 = vrcp.pop %v1521
        %v1554 = vrcp.pop %v1522
        %v1555 = vrcp.pop %v1523
        %v1556 = vrcp.pop %v1524
        %v1557 = vrcp.pop %v1525
        %v1558 = vrcp.pop %v1526
        %v1559 = vrcp.pop %v1527
        %v1560 = vrcp.pop %v1528
        %v1561 = vrcp.pop %v1529
        %v1562 = vrcp.pop %v1530
        %v1563 = vrcp.pop %v1531
        %v1564 = vrcp.pop %v1532
        %v1565 = vrcp.pop %v1533
        %v1566 = vrcp.pop %v1534
        %v1567 = vrcp.pop %v1535
        %v1568 = vmul.f32 %v1250, %v1536
        %v1569 = vmul.f32 %v1255, %v1537
        %v1570 = vmul.f32 %v1260, %v1538
        %v1571 = vmul.f32 %v1265, %v1539
        %v1572 = vmul.f32 %v1270, %v1540
        %v1573 = vmul.f32 %v1275, %v1541
        %v1574 = vmul.f32 %v1280, %v1542
        %v1575 = vmul.f32 %v1285, %v1543
        %v1576 = vmul.f32 %v1290, %v1544
        %v1577 = vmul.f32 %v1295, %v1545
        %v1578 = vmul.f32 %v1300, %v1546
        %v1579 = vmul.f32 %v1305, %v1547
        %v1580 = vmul.f32 %v1310, %v1548
        %v1581 = vmul.f32 %v1315, %v1549
        %v1582 = vmul.f32 %v1320, %v1550
        %v1583 = vmul.f32 %v1325, %v1551
        %v1584 = vmul.f32 %v1330, %v1552
        %v1585 = vmul.f32 %v1335, %v1553
        %v1586 = vmul.f32 %v1340, %v1554
        %v1587 = vmul.f32 %v1345, %v1555
        %v1588 = vmul.f32 %v1350, %v1556
        %v1589 = vmul.f32 %v1355, %v1557
        %v1590 = vmul.f32 %v1360, %v1558
        %v1591 = vmul.f32 %v1365, %v1559
        %v1592 = vmul.f32 %v1370, %v1560
        %v1593 = vmul.f32 %v1375, %v1561
        %v1594 = vmul.f32 %v1380, %v1562
        %v1595 = vmul.f32 %v1385, %v1563
        %v1596 = vmul.f32 %v1390, %v1564
        %v1597 = vmul.f32 %v1395, %v1565
        %v1598 = vmul.f32 %v1400, %v1566
        %v1599 = vmul.f32 %v1405, %v1567
        %1600 = vst [vmem:[%s353] sm:$0xff] %v1568
        %1601 = vst [vmem:[%s353 + $0x8] sm:$0xff] %v1569
        %1602 = vst [vmem:[%s353 + $0x18] sm:$0xff] %v1570
        %1603 = vst [vmem:[%s353 + $0x20] sm:$0xff] %v1571
        %1604 = vst [vmem:[%s353 + $0x30] sm:$0xff] %v1572
        %1605 = vst [vmem:[%s353 + $0x38] sm:$0xff] %v1573
        %1606 = vst [vmem:[%s353 + $0x48] sm:$0xff] %v1574
        %1607 = vst [vmem:[%s353 + $0x50] sm:$0xff] %v1575
        %1608 = vst [vmem:[%s353 + $0x60] sm:$0xff] %v1576
        %1609 = vst [vmem:[%s353 + $0x68] sm:$0xff] %v1577
        %1610 = vst [vmem:[%s353 + $0x78] sm:$0xff] %v1578
        %1611 = vst [vmem:[%s353 + $0x80] sm:$0xff] %v1579
        %1612 = vst [vmem:[%s353 + $0x90] sm:$0xff] %v1580
        %1613 = vst [vmem:[%s353 + $0x98] sm:$0xff] %v1581
        %1614 = vst [vmem:[%s353 + $0xa8] sm:$0xff] %v1582
        %1615 = vst [vmem:[%s353 + $0xb0] sm:$0xff] %v1583
        %1616 = vst [vmem:[%s353 + $0xc0] sm:$0xff] %v1584
        %1617 = vst [vmem:[%s353 + $0xc8] sm:$0xff] %v1585
        %1618 = vst [vmem:[%s353 + $0xd8] sm:$0xff] %v1586
        %1619 = vst [vmem:[%s353 + $0xe0] sm:$0xff] %v1587
        %1620 = vst [vmem:[%s353 + $0xf0] sm:$0xff] %v1588
        %1621 = vst [vmem:[%s353 + $0xf8] sm:$0xff] %v1589
        %1622 = vst [vmem:[%s353 + $0x108] sm:$0xff] %v1590
        %1623 = vst [vmem:[%s353 + $0x110] sm:$0xff] %v1591
        %1624 = vst [vmem:[%s353 + $0x120] sm:$0xff] %v1592
        %1625 = vst [vmem:[%s353 + $0x128] sm:$0xff] %v1593
        %1626 = vst [vmem:[%s353 + $0x138] sm:$0xff] %v1594
        %1627 = vst [vmem:[%s353 + $0x140] sm:$0xff] %v1595
        %1628 = vst [vmem:[%s353 + $0x150] sm:$0xff] %v1596
        %1629 = vst [vmem:[%s353 + $0x158] sm:$0xff] %v1597
        %1630 = vst [vmem:[%s353 + $0x168] sm:$0xff] %v1598
        %1631 = vst [vmem:[%s353 + $0x170] sm:$0xff] %v1599
        %v1632 = vld [vmem:[#allocation2] sm:$0xff]
        %v1633 = vld [vmem:[#allocation2 + $0x8] sm:$0xff]
        %v1634 = vld [vmem:[#allocation2 + $0x10] sm:$0xff]
        %v1635 = vld [vmem:[#allocation2 + $0x18] sm:$0xff]
        %v1636 = vld [vmem:[#allocation2 + $0x20] sm:$0xff]
        %v1637 = vld [vmem:[#allocation2 + $0x28] sm:$0xff]
        %v1638 = vld [vmem:[#allocation2 + $0x30] sm:$0xff]
        %v1639 = vld [vmem:[#allocation2 + $0x38] sm:$0xff]
        %v1640 = vld [vmem:[#allocation2 + $0x40] sm:$0xff]
        %v1641 = vld [vmem:[#allocation2 + $0x48] sm:$0xff]
        %v1642 = vld [vmem:[#allocation2 + $0x50] sm:$0xff]
        %v1643 = vld [vmem:[#allocation2 + $0x58] sm:$0xff]
        %v1644 = vld [vmem:[#allocation2 + $0x60] sm:$0xff]
        %v1645 = vld [vmem:[#allocation2 + $0x68] sm:$0xff]
        %v1646 = vld [vmem:[#allocation2 + $0x70] sm:$0xff]
        %v1647 = vld [vmem:[#allocation2 + $0x78] sm:$0xff]
        %v1648 = vld [vmem:[#allocation2 + $0x80] sm:$0xff]
        %v1649 = vld [vmem:[#allocation2 + $0x88] sm:$0xff]
        %v1650 = vld [vmem:[#allocation2 + $0x90] sm:$0xff]
        %v1651 = vld [vmem:[#allocation2 + $0x98] sm:$0xff]
        %v1652 = vld [vmem:[#allocation2 + $0xa0] sm:$0xff]
        %v1653 = vld [vmem:[#allocation2 + $0xa8] sm:$0xff]
        %v1654 = vld [vmem:[#allocation2 + $0xb0] sm:$0xff]
        %v1655 = vld [vmem:[#allocation2 + $0xb8] sm:$0xff]
        %v1656 = vld [vmem:[#allocation2 + $0xc0] sm:$0xff]
        %v1657 = vld [vmem:[#allocation2 + $0xc8] sm:$0xff]
        %v1658 = vld [vmem:[#allocation2 + $0xd0] sm:$0xff]
        %v1659 = vld [vmem:[#allocation2 + $0xd8] sm:$0xff]
        %v1660 = vld [vmem:[#allocation2 + $0xe0] sm:$0xff]
        %v1661 = vld [vmem:[#allocation2 + $0xe8] sm:$0xff]
        %v1662 = vld [vmem:[#allocation2 + $0xf0] sm:$0xff]
        %v1663 = vld [vmem:[#allocation2 + $0xf8] sm:$0xff]
        %v1664 = vld [vmem:[#allocation2 + $0x100] sm:$0xff]
        %v1665 = vld [vmem:[#allocation2 + $0x108] sm:$0xff]
        %v1666 = vld [vmem:[#allocation2 + $0x110] sm:$0xff]
        %v1667 = vld [vmem:[#allocation2 + $0x118] sm:$0xff]
        %v1668 = vld [vmem:[#allocation2 + $0x120] sm:$0xff]
        %v1669 = vld [vmem:[#allocation2 + $0x128] sm:$0xff]
        %v1670 = vld [vmem:[#allocation2 + $0x130] sm:$0xff]
        %v1671 = vld [vmem:[#allocation2 + $0x138] sm:$0xff]
        %v1672 = vld [vmem:[#allocation2 + $0x140] sm:$0xff]
        %v1673 = vld [vmem:[#allocation2 + $0x148] sm:$0xff]
        %v1674 = vld [vmem:[#allocation2 + $0x150] sm:$0xff]
        %v1675 = vld [vmem:[#allocation2 + $0x158] sm:$0xff]
        %v1676 = vld [vmem:[#allocation2 + $0x160] sm:$0xff]
        %v1677 = vld [vmem:[#allocation2 + $0x168] sm:$0xff]
        %v1678 = vld [vmem:[#allocation2 + $0x170] sm:$0xff]
        %v1679 = vld [vmem:[#allocation2 + $0x178] sm:$0xff]
        %v1680 = vld [vmem:[%s353] sm:$0xff]
        %v1681 = vld [vmem:[%s353 + $0x8] sm:$0xff]
        %v1682 = vld [vmem:[%s353 + $0x10] sm:$0xff]
        %v1683 = vld [vmem:[%s353 + $0x18] sm:$0xff]
        %v1684 = vld [vmem:[%s353 + $0x20] sm:$0xff]
        %v1685 = vld [vmem:[%s353 + $0x28] sm:$0xff]
        %v1686 = vld [vmem:[%s353 + $0x30] sm:$0xff]
        %v1687 = vld [vmem:[%s353 + $0x38] sm:$0xff]
        %v1688 = vld [vmem:[%s353 + $0x40] sm:$0xff]
        %v1689 = vld [vmem:[%s353 + $0x48] sm:$0xff]
        %v1690 = vld [vmem:[%s353 + $0x50] sm:$0xff]
        %v1691 = vld [vmem:[%s353 + $0x58] sm:$0xff]
        %v1692 = vld [vmem:[%s353 + $0x60] sm:$0xff]
        %v1693 = vld [vmem:[%s353 + $0x68] sm:$0xff]
        %v1694 = vld [vmem:[%s353 + $0x70] sm:$0xff]
        %v1695 = vld [vmem:[%s353 + $0x78] sm:$0xff]
        %v1696 = vld [vmem:[%s353 + $0x80] sm:$0xff]
        %v1697 = vld [vmem:[%s353 + $0x88] sm:$0xff]
        %v1698 = vld [vmem:[%s353 + $0x90] sm:$0xff]
        %v1699 = vld [vmem:[%s353 + $0x98] sm:$0xff]
        %v1700 = vld [vmem:[%s353 + $0xa0] sm:$0xff]
        %v1701 = vld [vmem:[%s353 + $0xa8] sm:$0xff]
        %v1702 = vld [vmem:[%s353 + $0xb0] sm:$0xff]
        %v1703 = vld [vmem:[%s353 + $0xb8] sm:$0xff]
        %v1704 = vld [vmem:[%s353 + $0xc0] sm:$0xff]
        %v1705 = vld [vmem:[%s353 + $0xc8] sm:$0xff]
        %v1706 = vld [vmem:[%s353 + $0xd0] sm:$0xff]
        %v1707 = vld [vmem:[%s353 + $0xd8] sm:$0xff]
        %v1708 = vld [vmem:[%s353 + $0xe0] sm:$0xff]
        %v1709 = vld [vmem:[%s353 + $0xe8] sm:$0xff]
        %v1710 = vld [vmem:[%s353 + $0xf0] sm:$0xff]
        %v1711 = vld [vmem:[%s353 + $0xf8] sm:$0xff]
        %v1712 = vld [vmem:[%s353 + $0x100] sm:$0xff]
        %v1713 = vld [vmem:[%s353 + $0x108] sm:$0xff]
        %v1714 = vld [vmem:[%s353 + $0x110] sm:$0xff]
        %v1715 = vld [vmem:[%s353 + $0x118] sm:$0xff]
        %v1716 = vld [vmem:[%s353 + $0x120] sm:$0xff]
        %v1717 = vld [vmem:[%s353 + $0x128] sm:$0xff]
        %v1718 = vld [vmem:[%s353 + $0x130] sm:$0xff]
        %v1719 = vld [vmem:[%s353 + $0x138] sm:$0xff]
        %v1720 = vld [vmem:[%s353 + $0x140] sm:$0xff]
        %v1721 = vld [vmem:[%s353 + $0x148] sm:$0xff]
        %v1722 = vld [vmem:[%s353 + $0x150] sm:$0xff]
        %v1723 = vld [vmem:[%s353 + $0x158] sm:$0xff]
        %v1724 = vld [vmem:[%s353 + $0x160] sm:$0xff]
        %v1725 = vld [vmem:[%s353 + $0x168] sm:$0xff]
        %v1726 = vld [vmem:[%s353 + $0x170] sm:$0xff]
        %v1727 = vld [vmem:[%s353 + $0x178] sm:$0xff]
        %s1728 = scalar_lea.vmem [#allocation2], 48
        %v1729 = vld [vmem:[%s1728] sm:$0xff]
        %v1730 = vld [vmem:[%s1728 + $0x8] sm:$0xff]
        %v1731 = vld [vmem:[%s1728 + $0x10] sm:$0xff]
        %v1732 = vld [vmem:[%s1728 + $0x18] sm:$0xff]
        %v1733 = vld [vmem:[%s1728 + $0x20] sm:$0xff]
        %v1734 = vld [vmem:[%s1728 + $0x28] sm:$0xff]
        %v1735 = vld [vmem:[%s1728 + $0x30] sm:$0xff]
        %v1736 = vld [vmem:[%s1728 + $0x38] sm:$0xff]
        %v1737 = vld [vmem:[%s1728 + $0x40] sm:$0xff]
        %v1738 = vld [vmem:[%s1728 + $0x48] sm:$0xff]
        %v1739 = vld [vmem:[%s1728 + $0x50] sm:$0xff]
        %v1740 = vld [vmem:[%s1728 + $0x58] sm:$0xff]
        %v1741 = vld [vmem:[%s1728 + $0x60] sm:$0xff]
        %v1742 = vld [vmem:[%s1728 + $0x68] sm:$0xff]
        %v1743 = vld [vmem:[%s1728 + $0x70] sm:$0xff]
        %v1744 = vld [vmem:[%s1728 + $0x78] sm:$0xff]
        %v1745 = vld [vmem:[%s1728 + $0x80] sm:$0xff]
        %v1746 = vld [vmem:[%s1728 + $0x88] sm:$0xff]
        %v1747 = vld [vmem:[%s1728 + $0x90] sm:$0xff]
        %v1748 = vld [vmem:[%s1728 + $0x98] sm:$0xff]
        %v1749 = vld [vmem:[%s1728 + $0xa0] sm:$0xff]
        %v1750 = vld [vmem:[%s1728 + $0xa8] sm:$0xff]
        %v1751 = vld [vmem:[%s1728 + $0xb0] sm:$0xff]
        %v1752 = vld [vmem:[%s1728 + $0xb8] sm:$0xff]
        %v1753 = vld [vmem:[%s1728 + $0xc0] sm:$0xff]
        %v1754 = vld [vmem:[%s1728 + $0xc8] sm:$0xff]
        %v1755 = vld [vmem:[%s1728 + $0xd0] sm:$0xff]
        %v1756 = vld [vmem:[%s1728 + $0xd8] sm:$0xff]
        %v1757 = vld [vmem:[%s1728 + $0xe0] sm:$0xff]
        %v1758 = vld [vmem:[%s1728 + $0xe8] sm:$0xff]
        %v1759 = vld [vmem:[%s1728 + $0xf0] sm:$0xff]
        %v1760 = vld [vmem:[%s1728 + $0xf8] sm:$0xff]
        %v1761 = vld [vmem:[%s1728 + $0x100] sm:$0xff]
        %v1762 = vld [vmem:[%s1728 + $0x108] sm:$0xff]
        %v1763 = vld [vmem:[%s1728 + $0x110] sm:$0xff]
        %v1764 = vld [vmem:[%s1728 + $0x118] sm:$0xff]
        %v1765 = vld [vmem:[%s1728 + $0x120] sm:$0xff]
        %v1766 = vld [vmem:[%s1728 + $0x128] sm:$0xff]
        %v1767 = vld [vmem:[%s1728 + $0x130] sm:$0xff]
        %v1768 = vld [vmem:[%s1728 + $0x138] sm:$0xff]
        %v1769 = vld [vmem:[%s1728 + $0x140] sm:$0xff]
        %v1770 = vld [vmem:[%s1728 + $0x148] sm:$0xff]
        %v1771 = vld [vmem:[%s1728 + $0x150] sm:$0xff]
        %v1772 = vld [vmem:[%s1728 + $0x158] sm:$0xff]
        %v1773 = vld [vmem:[%s1728 + $0x160] sm:$0xff]
        %v1774 = vld [vmem:[%s1728 + $0x168] sm:$0xff]
        %v1775 = vld [vmem:[%s1728 + $0x170] sm:$0xff]
        %v1776 = vld [vmem:[%s1728 + $0x178] sm:$0xff]
        %v1777 = vld [vmem:[#allocation3] sm:$0xff]
        %v1778 = vld [vmem:[#allocation3 + $0x8] sm:$0xff]
        %v1779 = vld [vmem:[#allocation3 + $0x10] sm:$0xff]
        %v1780 = vld [vmem:[#allocation3 + $0x18] sm:$0xff]
        %v1781 = vld [vmem:[#allocation3 + $0x20] sm:$0xff]
        %v1782 = vld [vmem:[#allocation3 + $0x28] sm:$0xff]
        %v1783 = vld [vmem:[#allocation3 + $0x30] sm:$0xff]
        %v1784 = vld [vmem:[#allocation3 + $0x38] sm:$0xff]
        %v1785 = vld [vmem:[#allocation3 + $0x40] sm:$0xff]
        %v1786 = vld [vmem:[#allocation3 + $0x48] sm:$0xff]
        %v1787 = vld [vmem:[#allocation3 + $0x50] sm:$0xff]
        %v1788 = vld [vmem:[#allocation3 + $0x58] sm:$0xff]
        %v1789 = vld [vmem:[#allocation3 + $0x60] sm:$0xff]
        %v1790 = vld [vmem:[#allocation3 + $0x68] sm:$0xff]
        %v1791 = vld [vmem:[#allocation3 + $0x70] sm:$0xff]
        %v1792 = vld [vmem:[#allocation3 + $0x78] sm:$0xff]
        %v1793 = vld [vmem:[#allocation3 + $0x80] sm:$0xff]
        %v1794 = vld [vmem:[#allocation3 + $0x88] sm:$0xff]
        %v1795 = vld [vmem:[#allocation3 + $0x90] sm:$0xff]
        %v1796 = vld [vmem:[#allocation3 + $0x98] sm:$0xff]
        %v1797 = vld [vmem:[#allocation3 + $0xa0] sm:$0xff]
        %v1798 = vld [vmem:[#allocation3 + $0xa8] sm:$0xff]
        %v1799 = vld [vmem:[#allocation3 + $0xb0] sm:$0xff]
        %v1800 = vld [vmem:[#allocation3 + $0xb8] sm:$0xff]
        %v1801 = vld [vmem:[#allocation3 + $0xc0] sm:$0xff]
        %v1802 = vld [vmem:[#allocation3 + $0xc8] sm:$0xff]
        %v1803 = vld [vmem:[#allocation3 + $0xd0] sm:$0xff]
        %v1804 = vld [vmem:[#allocation3 + $0xd8] sm:$0xff]
        %v1805 = vld [vmem:[#allocation3 + $0xe0] sm:$0xff]
        %v1806 = vld [vmem:[#allocation3 + $0xe8] sm:$0xff]
        %v1807 = vld [vmem:[#allocation3 + $0xf0] sm:$0xff]
        %v1808 = vld [vmem:[#allocation3 + $0xf8] sm:$0xff]
        %v1809 = vld [vmem:[#allocation3 + $0x100] sm:$0xff]
        %v1810 = vld [vmem:[#allocation3 + $0x108] sm:$0xff]
        %v1811 = vld [vmem:[#allocation3 + $0x110] sm:$0xff]
        %v1812 = vld [vmem:[#allocation3 + $0x118] sm:$0xff]
        %v1813 = vld [vmem:[#allocation3 + $0x120] sm:$0xff]
        %v1814 = vld [vmem:[#allocation3 + $0x128] sm:$0xff]
        %v1815 = vld [vmem:[#allocation3 + $0x130] sm:$0xff]
        %v1816 = vld [vmem:[#allocation3 + $0x138] sm:$0xff]
        %v1817 = vld [vmem:[#allocation3 + $0x140] sm:$0xff]
        %v1818 = vld [vmem:[#allocation3 + $0x148] sm:$0xff]
        %v1819 = vld [vmem:[#allocation3 + $0x150] sm:$0xff]
        %v1820 = vld [vmem:[#allocation3 + $0x158] sm:$0xff]
        %v1821 = vld [vmem:[#allocation3 + $0x160] sm:$0xff]
        %v1822 = vld [vmem:[#allocation3 + $0x168] sm:$0xff]
        %v1823 = vld [vmem:[#allocation3 + $0x170] sm:$0xff]
        %v1824 = vld [vmem:[#allocation3 + $0x178] sm:$0xff]
        %v1825 = vld [vmem:[#allocation3 + $0x180] sm:$0xff]
        %v1826 = vld [vmem:[#allocation3 + $0x188] sm:$0xff]
        %v1827 = vld [vmem:[#allocation3 + $0x190] sm:$0xff]
        %v1828 = vld [vmem:[#allocation3 + $0x198] sm:$0xff]
        %v1829 = vld [vmem:[#allocation3 + $0x1a0] sm:$0xff]
        %v1830 = vld [vmem:[#allocation3 + $0x1a8] sm:$0xff]
        %v1831 = vld [vmem:[#allocation3 + $0x1b0] sm:$0xff]
        %v1832 = vld [vmem:[#allocation3 + $0x1b8] sm:$0xff]
        %v1833 = vld [vmem:[#allocation3 + $0x1c0] sm:$0xff]
        %v1834 = vld [vmem:[#allocation3 + $0x1c8] sm:$0xff]
        %v1835 = vld [vmem:[#allocation3 + $0x1d0] sm:$0xff]
        %v1836 = vld [vmem:[#allocation3 + $0x1d8] sm:$0xff]
        %v1837 = vld [vmem:[#allocation3 + $0x1e0] sm:$0xff]
        %v1838 = vld [vmem:[#allocation3 + $0x1e8] sm:$0xff]
        %v1839 = vld [vmem:[#allocation3 + $0x1f0] sm:$0xff]
        %v1840 = vld [vmem:[#allocation3 + $0x1f8] sm:$0xff]
        %v1841 = vld [vmem:[#allocation3 + $0x200] sm:$0xff]
        %v1842 = vld [vmem:[#allocation3 + $0x208] sm:$0xff]
        %v1843 = vld [vmem:[#allocation3 + $0x210] sm:$0xff]
        %v1844 = vld [vmem:[#allocation3 + $0x218] sm:$0xff]
        %v1845 = vld [vmem:[#allocation3 + $0x220] sm:$0xff]
        %v1846 = vld [vmem:[#allocation3 + $0x228] sm:$0xff]
        %v1847 = vld [vmem:[#allocation3 + $0x230] sm:$0xff]
        %v1848 = vld [vmem:[#allocation3 + $0x238] sm:$0xff]
        %v1849 = vld [vmem:[#allocation3 + $0x240] sm:$0xff]
        %v1850 = vld [vmem:[#allocation3 + $0x248] sm:$0xff]
        %v1851 = vld [vmem:[#allocation3 + $0x250] sm:$0xff]
        %v1852 = vld [vmem:[#allocation3 + $0x258] sm:$0xff]
        %v1853 = vld [vmem:[#allocation3 + $0x260] sm:$0xff]
        %v1854 = vld [vmem:[#allocation3 + $0x268] sm:$0xff]
        %v1855 = vld [vmem:[#allocation3 + $0x270] sm:$0xff]
        %v1856 = vld [vmem:[#allocation3 + $0x278] sm:$0xff]
        %v1857 = vld [vmem:[#allocation3 + $0x280] sm:$0xff]
        %v1858 = vld [vmem:[#allocation3 + $0x288] sm:$0xff]
        %v1859 = vld [vmem:[#allocation3 + $0x290] sm:$0xff]
        %v1860 = vld [vmem:[#allocation3 + $0x298] sm:$0xff]
        %v1861 = vld [vmem:[#allocation3 + $0x2a0] sm:$0xff]
        %v1862 = vld [vmem:[#allocation3 + $0x2a8] sm:$0xff]
        %v1863 = vld [vmem:[#allocation3 + $0x2b0] sm:$0xff]
        %v1864 = vld [vmem:[#allocation3 + $0x2b8] sm:$0xff]
        %v1865 = vld [vmem:[#allocation3 + $0x2c0] sm:$0xff]
        %v1866 = vld [vmem:[#allocation3 + $0x2c8] sm:$0xff]
        %v1867 = vld [vmem:[#allocation3 + $0x2d0] sm:$0xff]
        %v1868 = vld [vmem:[#allocation3 + $0x2d8] sm:$0xff]
        %v1869 = vld [vmem:[#allocation3 + $0x2e0] sm:$0xff]
        %v1870 = vld [vmem:[#allocation3 + $0x2e8] sm:$0xff]
        %v1871 = vld [vmem:[#allocation3 + $0x2f0] sm:$0xff]
        %v1872 = vld [vmem:[#allocation3 + $0x2f8] sm:$0xff]
        %v1873 = vld [vmem:[#allocation3 + $0x300] sm:$0xff]
        %v1874 = vld [vmem:[#allocation3 + $0x308] sm:$0xff]
        %v1875 = vld [vmem:[#allocation3 + $0x310] sm:$0xff]
        %v1876 = vld [vmem:[#allocation3 + $0x318] sm:$0xff]
        %v1877 = vld [vmem:[#allocation3 + $0x320] sm:$0xff]
        %v1878 = vld [vmem:[#allocation3 + $0x328] sm:$0xff]
        %v1879 = vld [vmem:[#allocation3 + $0x330] sm:$0xff]
        %v1880 = vld [vmem:[#allocation3 + $0x338] sm:$0xff]
        %v1881 = vld [vmem:[#allocation3 + $0x340] sm:$0xff]
        %v1882 = vld [vmem:[#allocation3 + $0x348] sm:$0xff]
        %v1883 = vld [vmem:[#allocation3 + $0x350] sm:$0xff]
        %v1884 = vld [vmem:[#allocation3 + $0x358] sm:$0xff]
        %v1885 = vld [vmem:[#allocation3 + $0x360] sm:$0xff]
        %v1886 = vld [vmem:[#allocation3 + $0x368] sm:$0xff]
        %v1887 = vld [vmem:[#allocation3 + $0x370] sm:$0xff]
        %v1888 = vld [vmem:[#allocation3 + $0x378] sm:$0xff]
        %v1889 = vld [vmem:[#allocation3 + $0x380] sm:$0xff]
        %v1890 = vld [vmem:[#allocation3 + $0x388] sm:$0xff]
        %v1891 = vld [vmem:[#allocation3 + $0x390] sm:$0xff]
        %v1892 = vld [vmem:[#allocation3 + $0x398] sm:$0xff]
        %v1893 = vld [vmem:[#allocation3 + $0x3a0] sm:$0xff]
        %v1894 = vld [vmem:[#allocation3 + $0x3a8] sm:$0xff]
        %v1895 = vld [vmem:[#allocation3 + $0x3b0] sm:$0xff]
        %v1896 = vld [vmem:[#allocation3 + $0x3b8] sm:$0xff]
        %v1897 = vld [vmem:[#allocation3 + $0x3c0] sm:$0xff]
        %v1898 = vld [vmem:[#allocation3 + $0x3c8] sm:$0xff]
        %v1899 = vld [vmem:[#allocation3 + $0x3d0] sm:$0xff]
        %v1900 = vld [vmem:[#allocation3 + $0x3d8] sm:$0xff]
        %v1901 = vld [vmem:[#allocation3 + $0x3e0] sm:$0xff]
        %v1902 = vld [vmem:[#allocation3 + $0x3e8] sm:$0xff]
        %v1903 = vld [vmem:[#allocation3 + $0x3f0] sm:$0xff]
        %v1904 = vld [vmem:[#allocation3 + $0x3f8] sm:$0xff]
        %v1905 = vld [vmem:[#allocation3 + $0x400] sm:$0xff]
        %v1906 = vld [vmem:[#allocation3 + $0x408] sm:$0xff]
        %v1907 = vld [vmem:[#allocation3 + $0x410] sm:$0xff]
        %v1908 = vld [vmem:[#allocation3 + $0x418] sm:$0xff]
        %v1909 = vld [vmem:[#allocation3 + $0x420] sm:$0xff]
        %v1910 = vld [vmem:[#allocation3 + $0x428] sm:$0xff]
        %v1911 = vld [vmem:[#allocation3 + $0x430] sm:$0xff]
        %v1912 = vld [vmem:[#allocation3 + $0x438] sm:$0xff]
        %v1913 = vld [vmem:[#allocation3 + $0x440] sm:$0xff]
        %v1914 = vld [vmem:[#allocation3 + $0x448] sm:$0xff]
        %v1915 = vld [vmem:[#allocation3 + $0x450] sm:$0xff]
        %v1916 = vld [vmem:[#allocation3 + $0x458] sm:$0xff]
        %v1917 = vld [vmem:[#allocation3 + $0x460] sm:$0xff]
        %v1918 = vld [vmem:[#allocation3 + $0x468] sm:$0xff]
        %v1919 = vld [vmem:[#allocation3 + $0x470] sm:$0xff]
        %v1920 = vld [vmem:[#allocation3 + $0x478] sm:$0xff]
        %1921 = vmatprep.subr.mxu0 %v1778
        %1922 = vmatpush1.msra.mxu0 %v1777
        %1923 = vmatprep.subr.mxu0 %v1781
        %1924 = vmatpush1.msra.mxu0 %v1780
        %1925 = vmatprep.subr.mxu0 %v1784
        %1926 = vmatpush1.msra.mxu0 %v1783
        %1927 = vmatprep.subr.mxu0 %v1787
        %1928 = vmatpush1.msra.mxu0 %v1786
        %1929 = vmatprep.subr.mxu0 %v1790
        %1930 = vmatpush1.msra.mxu0 %v1789
        %1931 = vmatprep.subr.mxu0 %v1793
        %1932 = vmatpush1.msra.mxu0 %v1792
        %1933 = vmatprep.subr.mxu0 %v1796
        %1934 = vmatpush1.msra.mxu0 %v1795
        %1935 = vmatprep.subr.mxu0 %v1799
        %1936 = vmatpush1.msra.mxu0 %v1798
        %1937 = vmatprep.subr.mxu0 %v1802
        %1938 = vmatpush1.msra.mxu0 %v1801
        %1939 = vmatprep.subr.mxu0 %v1805
        %1940 = vmatpush1.msra.mxu0 %v1804
        %1941 = vmatprep.subr.mxu0 %v1808
        %1942 = vmatpush1.msra.mxu0 %v1807
        %1943 = vmatprep.subr.mxu0 %v1811
        %1944 = vmatpush1.msra.mxu0 %v1810
        %1945 = vmatprep.subr.mxu0 %v1814
        %1946 = vmatpush1.msra.mxu0 %v1813
        %1947 = vmatprep.subr.mxu0 %v1817
        %1948 = vmatpush1.msra.mxu0 %v1816
        %1949 = vmatprep.subr.mxu0 %v1820
        %1950 = vmatpush1.msra.mxu0 %v1819
        %1951 = vmatprep.subr.mxu0 %v1823
        %1952 = vmatpush1.msra.mxu0 %v1822
        %1953 = vmatprep.subr.mxu0 %v1826
        %1954 = vmatpush1.msra.mxu0 %v1825
        %1955 = vmatprep.subr.mxu0 %v1829
        %1956 = vmatpush1.msra.mxu0 %v1828
        %1957 = vmatprep.subr.mxu0 %v1832
        %1958 = vmatpush1.msra.mxu0 %v1831
        %1959 = vmatprep.subr.mxu0 %v1835
        %1960 = vmatpush1.msra.mxu0 %v1834
        %1961 = vmatprep.subr.mxu0 %v1838
        %1962 = vmatpush1.msra.mxu0 %v1837
        %1963 = vmatprep.subr.mxu0 %v1841
        %1964 = vmatpush1.msra.mxu0 %v1840
        %1965 = vmatprep.subr.mxu0 %v1844
        %1966 = vmatpush1.msra.mxu0 %v1843
        %1967 = vmatprep.subr.mxu0 %v1847
        %1968 = vmatpush1.msra.mxu0 %v1846
        %1969 = vmatprep.subr.mxu0 %v1850
        %1970 = vmatpush1.msra.mxu0 %v1849
        %1971 = vmatprep.subr.mxu0 %v1853
        %1972 = vmatpush1.msra.mxu0 %v1852
        %1973 = vmatprep.subr.mxu0 %v1856
        %1974 = vmatpush1.msra.mxu0 %v1855
        %1975 = vmatprep.subr.mxu0 %v1859
        %1976 = vmatpush1.msra.mxu0 %v1858
        %1977 = vmatprep.subr.mxu0 %v1862
        %1978 = vmatpush1.msra.mxu0 %v1861
        %1979 = vmatprep.subr.mxu0 %v1865
        %1980 = vmatpush1.msra.mxu0 %v1864
        %1981 = vmatprep.subr.mxu0 %v1868
        %1982 = vmatpush1.msra.mxu0 %v1867
        %1983 = vmatprep.subr.mxu0 %v1871
        %1984 = vmatpush1.msra.mxu0 %v1870
        %1985 = vmatprep.mubr.f32.mxu0 %v1680
        %1986 = vmatmul.mubr.f32.gmra.mrb[0].mxu0 %v1632
        %v1987 = vpop.f32.mrb[0].mxu0
        %v1988 = vadd.f32 0.0, %v1987
        %v1989 = vpop.f32.mrb[0].mxu0
        %v1990 = vadd.f32 0.0, %v1989
        %1991 = vmatprep.mubr.f32.mxu0 %v1681
        %1992 = vmatmul.mubr.f32.gmra.mrb[0].mxu0 %v1633
        %v1993 = vpop.f32.mrb[0].mxu0
        %v1994 = vadd.f32 0.0, %v1993
        %v1995 = vpop.f32.mrb[0].mxu0
        %v1996 = vadd.f32 0.0, %v1995
        %1997 = vmatprep.mubr.f32.mxu0 %v1682
        %1998 = vmatmul.mubr.f32.gmra.mrb[0].mxu0 %v1634
        %v1999 = vpop.f32.mrb[0].mxu0
        %v2000 = vadd.f32 0.0, %v1999
        %v2001 = vpop.f32.mrb[0].mxu0
        %2002 = vmatprep.mubr.f32.mxu0 %v1683
        %2003 = vmatmul.mubr.f32.gmra.mrb[0].mxu0 %v1635
        %v2004 = vpop.f32.mrb[0].mxu0
        %v2005 = vadd.f32 0.0, %v2004
        %v2006 = vpop.f32.mrb[0].mxu0
        %v2007 = vadd.f32 0.0, %v2006
        %2008 = vmatprep.mubr.f32.mxu0 %v1684
        %2009 = vmatmul.mubr.f32.gmra.mrb[0].mxu0 %v1636
        %v2010 = vpop.f32.mrb[0].mxu0
        %v2011 = vadd.f32 0.0, %v2010
        %v2012 = vpop.f32.mrb[0].mxu0
        %v2013 = vadd.f32 0.0, %v2012
        %2014 = vmatprep.mubr.f32.mxu0 %v1685
        %2015 = vmatmul.mubr.f32.gmra.mrb[0].mxu0 %v1637
        %v2016 = vpop.f32.mrb[0].mxu0
        %v2017 = vadd.f32 0.0, %v2016
        %v2018 = vpop.f32.mrb[0].mxu0
        %2019 = vmatprep.mubr.f32.mxu0 %v1686
        %2020 = vmatmul.mubr.f32.gmra.mrb[0].mxu0 %v1638
        %v2021 = vpop.f32.mrb[0].mxu0
        %v2022 = vadd.f32 0.0, %v2021
        %v2023 = vpop.f32.mrb[0].mxu0
        %v2024 = vadd.f32 0.0, %v2023
        %2025 = vmatprep.mubr.f32.mxu0 %v1687
        %2026 = vmatmul.mubr.f32.gmra.mrb[0].mxu0 %v1639
        %v2027 = vpop.f32.mrb[0].mxu0
        %v2028 = vadd.f32 0.0, %v2027
        %v2029 = vpop.f32.mrb[0].mxu0
        %v2030 = vadd.f32 0.0, %v2029
        %2031 = vmatprep.mubr.f32.mxu0 %v1688
        %2032 = vmatmul.mubr.f32.gmra.mrb[0].mxu0 %v1640
        %v2033 = vpop.f32.mrb[0].mxu0
        %v2034 = vadd.f32 0.0, %v2033
        %v2035 = vpop.f32.mrb[0].mxu0
        %2036 = vmatprep.mubr.f32.mxu0 %v1689
        %2037 = vmatmul.mubr.f32.gmra.mrb[0].mxu0 %v1641
        %v2038 = vpop.f32.mrb[0].mxu0
        %v2039 = vadd.f32 0.0, %v2038
        %v2040 = vpop.f32.mrb[0].mxu0
        %v2041 = vadd.f32 0.0, %v2040
        %2042 = vmatprep.mubr.f32.mxu0 %v1690
        %2043 = vmatmul.mubr.f32.gmra.mrb[0].mxu0 %v1642
        %v2044 = vpop.f32.mrb[0].mxu0
        %v2045 = vadd.f32 0.0, %v2044
        %v2046 = vpop.f32.mrb[0].mxu0
        %v2047 = vadd.f32 0.0, %v2046
        %2048 = vmatprep.mubr.f32.mxu0 %v1691
        %2049 = vmatmul.mubr.f32.gmra.mrb[0].mxu0 %v1643
        %v2050 = vpop.f32.mrb[0].mxu0
        %v2051 = vadd.f32 0.0, %v2050
        %v2052 = vpop.f32.mrb[0].mxu0
        %2053 = vmatprep.mubr.f32.mxu0 %v1692
        %2054 = vmatmul.mubr.f32.gmra.mrb[0].mxu0 %v1644
        %v2055 = vpop.f32.mrb[0].mxu0
        %v2056 = vadd.f32 0.0, %v2055
        %v2057 = vpop.f32.mrb[0].mxu0
        %v2058 = vadd.f32 0.0, %v2057
        %2059 = vmatprep.mubr.f32.mxu0 %v1693
        %2060 = vmatmul.mubr.f32.gmra.mrb[0].mxu0 %v1645
        %v2061 = vpop.f32.mrb[0].mxu0
        %v2062 = vadd.f32 0.0, %v2061
        %v2063 = vpop.f32.mrb[0].mxu0
        %v2064 = vadd.f32 0.0, %v2063
        %2065 = vmatprep.mubr.f32.mxu0 %v1694
        %2066 = vmatmul.mubr.f32.gmra.mrb[0].mxu0 %v1646
        %v2067 = vpop.f32.mrb[0].mxu0
        %v2068 = vadd.f32 0.0, %v2067
        %v2069 = vpop.f32.mrb[0].mxu0
        %2070 = vmatprep.mubr.f32.mxu0 %v1695
        %2071 = vmatmul.mubr.f32.gmra.mrb[0].mxu0 %v1647
        %v2072 = vpop.f32.mrb[0].mxu0
        %v2073 = vadd.f32 0.0, %v2072
        %v2074 = vpop.f32.mrb[0].mxu0
        %v2075 = vadd.f32 0.0, %v2074
        %2076 = vmatprep.mubr.f32.mxu0 %v1696
        %2077 = vmatmul.mubr.f32.gmra.mrb[0].mxu0 %v1648
        %v2078 = vpop.f32.mrb[0].mxu0
        %v2079 = vadd.f32 0.0, %v2078
        %v2080 = vpop.f32.mrb[0].mxu0
        %v2081 = vadd.f32 0.0, %v2080
        %2082 = vmatprep.mubr.f32.mxu0 %v1697
        %2083 = vmatmul.mubr.f32.gmra.mrb[0].mxu0 %v1649
        %v2084 = vpop.f32.mrb[0].mxu0
        %v2085 = vadd.f32 0.0, %v2084
        %v2086 = vpop.f32.mrb[0].mxu0
        %2087 = vmatprep.mubr.f32.mxu0 %v1698
        %2088 = vmatmul.mubr.f32.gmra.mrb[0].mxu0 %v1650
        %v2089 = vpop.f32.mrb[0].mxu0
        %v2090 = vadd.f32 0.0, %v2089
        %v2091 = vpop.f32.mrb[0].mxu0
        %v2092 = vadd.f32 0.0, %v2091
        %2093 = vmatprep.mubr.f32.mxu0 %v1699
        %2094 = vmatmul.mubr.f32.gmra.mrb[0].mxu0 %v1651
        %v2095 = vpop.f32.mrb[0].mxu0
        %v2096 = vadd.f32 0.0, %v2095
        %v2097 = vpop.f32.mrb[0].mxu0
        %v2098 = vadd.f32 0.0, %v2097
        %2099 = vmatprep.mubr.f32.mxu0 %v1700
        %2100 = vmatmul.mubr.f32.gmra.mrb[0].mxu0 %v1652
        %v2101 = vpop.f32.mrb[0].mxu0
        %v2102 = vadd.f32 0.0, %v2101
        %v2103 = vpop.f32.mrb[0].mxu0
        %2104 = vmatprep.mubr.f32.mxu0 %v1701
        %2105 = vmatmul.mubr.f32.gmra.mrb[0].mxu0 %v1653
        %v2106 = vpop.f32.mrb[0].mxu0
        %v2107 = vadd.f32 0.0, %v2106
        %v2108 = vpop.f32.mrb[0].mxu0
        %v2109 = vadd.f32 0.0, %v2108
        %2110 = vmatprep.mubr.f32.mxu0 %v1702
        %2111 = vmatmul.mubr.f32.gmra.mrb[0].mxu0 %v1654
        %v2112 = vpop.f32.mrb[0].mxu0
        %v2113 = vadd.f32 0.0, %v2112
        %v2114 = vpop.f32.mrb[0].mxu0
        %v2115 = vadd.f32 0.0, %v2114
        %2116 = vmatprep.mubr.f32.mxu0 %v1703
        %2117 = vmatmul.mubr.f32.gmra.mrb[0].mxu0 %v1655
        %v2118 = vpop.f32.mrb[0].mxu0
        %v2119 = vadd.f32 0.0, %v2118
        %v2120 = vpop.f32.mrb[0].mxu0
        %2121 = vmatprep.mubr.f32.mxu0 %v1704
        %2122 = vmatmul.mubr.f32.gmra.mrb[0].mxu0 %v1656
        %v2123 = vpop.f32.mrb[0].mxu0
        %v2124 = vadd.f32 0.0, %v2123
        %v2125 = vpop.f32.mrb[0].mxu0
        %v2126 = vadd.f32 0.0, %v2125
        %2127 = vmatprep.mubr.f32.mxu0 %v1705
        %2128 = vmatmul.mubr.f32.gmra.mrb[0].mxu0 %v1657
        %v2129 = vpop.f32.mrb[0].mxu0
        %v2130 = vadd.f32 0.0, %v2129
        %v2131 = vpop.f32.mrb[0].mxu0
        %v2132 = vadd.f32 0.0, %v2131
        %2133 = vmatprep.mubr.f32.mxu0 %v1706
        %2134 = vmatmul.mubr.f32.gmra.mrb[0].mxu0 %v1658
        %v2135 = vpop.f32.mrb[0].mxu0
        %v2136 = vadd.f32 0.0, %v2135
        %v2137 = vpop.f32.mrb[0].mxu0
        %2138 = vmatprep.mubr.f32.mxu0 %v1707
        %2139 = vmatmul.mubr.f32.gmra.mrb[0].mxu0 %v1659
        %v2140 = vpop.f32.mrb[0].mxu0
        %v2141 = vadd.f32 0.0, %v2140
        %v2142 = vpop.f32.mrb[0].mxu0
        %v2143 = vadd.f32 0.0, %v2142
        %2144 = vmatprep.mubr.f32.mxu0 %v1708
        %2145 = vmatmul.mubr.f32.gmra.mrb[0].mxu0 %v1660
        %v2146 = vpop.f32.mrb[0].mxu0
        %v2147 = vadd.f32 0.0, %v2146
        %v2148 = vpop.f32.mrb[0].mxu0
        %v2149 = vadd.f32 0.0, %v2148
        %2150 = vmatprep.mubr.f32.mxu0 %v1709
        %2151 = vmatmul.mubr.f32.gmra.mrb[0].mxu0 %v1661
        %v2152 = vpop.f32.mrb[0].mxu0
        %v2153 = vadd.f32 0.0, %v2152
        %v2154 = vpop.f32.mrb[0].mxu0
        %2155 = vmatprep.mubr.f32.mxu0 %v1710
        %2156 = vmatmul.mubr.f32.gmra.mrb[0].mxu0 %v1662
        %v2157 = vpop.f32.mrb[0].mxu0
        %v2158 = vadd.f32 0.0, %v2157
        %v2159 = vpop.f32.mrb[0].mxu0
        %v2160 = vadd.f32 0.0, %v2159
        %2161 = vmatprep.mubr.f32.mxu0 %v1711
        %2162 = vmatmul.mubr.f32.gmra.mrb[0].mxu0 %v1663
        %v2163 = vpop.f32.mrb[0].mxu0
        %v2164 = vadd.f32 0.0, %v2163
        %v2165 = vpop.f32.mrb[0].mxu0
        %v2166 = vadd.f32 0.0, %v2165
        %2167 = vmatprep.mubr.f32.mxu0 %v1712
        %2168 = vmatmul.mubr.f32.gmra.mrb[0].mxu0 %v1664
        %v2169 = vpop.f32.mrb[0].mxu0
        %v2170 = vadd.f32 0.0, %v2169
        %v2171 = vpop.f32.mrb[0].mxu0
        %2172 = vmatprep.mubr.f32.mxu0 %v1713
        %2173 = vmatmul.mubr.f32.gmra.mrb[0].mxu0 %v1665
        %v2174 = vpop.f32.mrb[0].mxu0
        %v2175 = vadd.f32 0.0, %v2174
        %v2176 = vpop.f32.mrb[0].mxu0
        %v2177 = vadd.f32 0.0, %v2176
        %2178 = vmatprep.mubr.f32.mxu0 %v1714
        %2179 = vmatmul.mubr.f32.gmra.mrb[0].mxu0 %v1666
        %v2180 = vpop.f32.mrb[0].mxu0
        %v2181 = vadd.f32 0.0, %v2180
        %v2182 = vpop.f32.mrb[0].mxu0
        %v2183 = vadd.f32 0.0, %v2182
        %2184 = vmatprep.mubr.f32.mxu0 %v1715
        %2185 = vmatmul.mubr.f32.gmra.mrb[0].mxu0 %v1667
        %v2186 = vpop.f32.mrb[0].mxu0
        %v2187 = vadd.f32 0.0, %v2186
        %v2188 = vpop.f32.mrb[0].mxu0
        %2189 = vmatprep.mubr.f32.mxu0 %v1716
        %2190 = vmatmul.mubr.f32.gmra.mrb[0].mxu0 %v1668
        %v2191 = vpop.f32.mrb[0].mxu0
        %v2192 = vadd.f32 0.0, %v2191
        %v2193 = vpop.f32.mrb[0].mxu0
        %v2194 = vadd.f32 0.0, %v2193
        %2195 = vmatprep.mubr.f32.mxu0 %v1717
        %2196 = vmatmul.mubr.f32.gmra.mrb[0].mxu0 %v1669
        %v2197 = vpop.f32.mrb[0].mxu0
        %v2198 = vadd.f32 0.0, %v2197
        %v2199 = vpop.f32.mrb[0].mxu0
        %v2200 = vadd.f32 0.0, %v2199
        %2201 = vmatprep.mubr.f32.mxu0 %v1718
        %2202 = vmatmul.mubr.f32.gmra.mrb[0].mxu0 %v1670
        %v2203 = vpop.f32.mrb[0].mxu0
        %v2204 = vadd.f32 0.0, %v2203
        %v2205 = vpop.f32.mrb[0].mxu0
        %2206 = vmatprep.mubr.f32.mxu0 %v1719
        %2207 = vmatmul.mubr.f32.gmra.mrb[0].mxu0 %v1671
        %v2208 = vpop.f32.mrb[0].mxu0
        %v2209 = vadd.f32 0.0, %v2208
        %v2210 = vpop.f32.mrb[0].mxu0
        %v2211 = vadd.f32 0.0, %v2210
        %2212 = vmatprep.mubr.f32.mxu0 %v1720
        %2213 = vmatmul.mubr.f32.gmra.mrb[0].mxu0 %v1672
        %v2214 = vpop.f32.mrb[0].mxu0
        %v2215 = vadd.f32 0.0, %v2214
        %v2216 = vpop.f32.mrb[0].mxu0
        %v2217 = vadd.f32 0.0, %v2216
        %2218 = vmatprep.mubr.f32.mxu0 %v1721
        %2219 = vmatmul.mubr.f32.gmra.mrb[0].mxu0 %v1673
        %v2220 = vpop.f32.mrb[0].mxu0
        %v2221 = vadd.f32 0.0, %v2220
        %v2222 = vpop.f32.mrb[0].mxu0
        %2223 = vmatprep.mubr.f32.mxu0 %v1722
        %2224 = vmatmul.mubr.f32.gmra.mrb[0].mxu0 %v1674
        %v2225 = vpop.f32.mrb[0].mxu0
        %v2226 = vadd.f32 0.0, %v2225
        %v2227 = vpop.f32.mrb[0].mxu0
        %v2228 = vadd.f32 0.0, %v2227
        %2229 = vmatprep.mubr.f32.mxu0 %v1723
        %2230 = vmatmul.mubr.f32.gmra.mrb[0].mxu0 %v1675
        %v2231 = vpop.f32.mrb[0].mxu0
        %v2232 = vadd.f32 0.0, %v2231
        %v2233 = vpop.f32.mrb[0].mxu0
        %v2234 = vadd.f32 0.0, %v2233
        %2235 = vmatprep.mubr.f32.mxu0 %v1724
        %2236 = vmatmul.mubr.f32.gmra.mrb[0].mxu0 %v1676
        %v2237 = vpop.f32.mrb[0].mxu0
        %v2238 = vadd.f32 0.0, %v2237
        %v2239 = vpop.f32.mrb[0].mxu0
        %2240 = vmatprep.mubr.f32.mxu0 %v1725
        %2241 = vmatmul.mubr.f32.gmra.mrb[0].mxu0 %v1677
        %v2242 = vpop.f32.mrb[0].mxu0
        %v2243 = vadd.f32 0.0, %v2242
        %v2244 = vpop.f32.mrb[0].mxu0
        %v2245 = vadd.f32 0.0, %v2244
        %2246 = vmatprep.mubr.f32.mxu0 %v1726
        %2247 = vmatmul.mubr.f32.gmra.mrb[0].mxu0 %v1678
        %v2248 = vpop.f32.mrb[0].mxu0
        %v2249 = vadd.f32 0.0, %v2248
        %v2250 = vpop.f32.mrb[0].mxu0
        %v2251 = vadd.f32 0.0, %v2250
        %2252 = vmatprep.mubr.f32.mxu0 %v1727
        %2253 = vmatmul.mubr.f32.gmra.mrb[0].mxu0 %v1679
        %v2254 = vpop.f32.mrb[0].mxu0
        %v2255 = vadd.f32 0.0, %v2254
        %v2256 = vpop.f32.mrb[0].mxu0
        %2257 = vdwg.mxu0
        %2258 = vmatprep.subr.mxu0 %v1874
        %2259 = vmatpush1.msra.mxu0 %v1873
        %2260 = vmatprep.subr.mxu0 %v1877
        %2261 = vmatpush1.msra.mxu0 %v1876
        %2262 = vmatprep.subr.mxu0 %v1880
        %2263 = vmatpush1.msra.mxu0 %v1879
        %2264 = vmatprep.subr.mxu0 %v1883
        %2265 = vmatpush1.msra.mxu0 %v1882
        %2266 = vmatprep.subr.mxu0 %v1886
        %2267 = vmatpush1.msra.mxu0 %v1885
        %2268 = vmatprep.subr.mxu0 %v1889
        %2269 = vmatpush1.msra.mxu0 %v1888
        %2270 = vmatprep.subr.mxu0 %v1892
        %2271 = vmatpush1.msra.mxu0 %v1891
        %2272 = vmatprep.subr.mxu0 %v1895
        %2273 = vmatpush1.msra.mxu0 %v1894
        %2274 = vmatprep.subr.mxu0 %v1898
        %2275 = vmatpush1.msra.mxu0 %v1897
        %2276 = vmatprep.subr.mxu0 %v1901
        %2277 = vmatpush1.msra.mxu0 %v1900
        %2278 = vmatprep.subr.mxu0 %v1904
        %2279 = vmatpush1.msra.mxu0 %v1903
        %2280 = vmatprep.subr.mxu0 %v1907
        %2281 = vmatpush1.msra.mxu0 %v1906
        %2282 = vmatprep.subr.mxu0 %v1910
        %2283 = vmatpush1.msra.mxu0 %v1909
        %2284 = vmatprep.subr.mxu0 %v1913
        %2285 = vmatpush1.msra.mxu0 %v1912
        %2286 = vmatprep.subr.mxu0 %v1916
        %2287 = vmatpush1.msra.mxu0 %v1915
        %2288 = vmatprep.subr.mxu0 %v1919
        %2289 = vmatpush1.msra.mxu0 %v1918
        %2290 = vmatprep.subr.mxu0 0.0
        %2291 = vmatpush1.msra.mxu0 0.0
        %2292 = vmatprep.subr.mxu0 0.0
        %2293 = vmatpush1.msra.mxu0 0.0
        %2294 = vmatprep.subr.mxu0 0.0
        %2295 = vmatpush1.msra.mxu0 0.0
        %2296 = vmatprep.subr.mxu0 0.0
        %2297 = vmatpush1.msra.mxu0 0.0
        %2298 = vmatprep.subr.mxu0 0.0
        %2299 = vmatpush1.msra.mxu0 0.0
        %2300 = vmatprep.subr.mxu0 0.0
        %2301 = vmatpush1.msra.mxu0 0.0
        %2302 = vmatprep.subr.mxu0 0.0
        %2303 = vmatpush1.msra.mxu0 0.0
        %2304 = vmatprep.subr.mxu0 0.0
        %2305 = vmatpush1.msra.mxu0 0.0
        %2306 = vmatprep.subr.mxu0 0.0
        %2307 = vmatpush1.msra.mxu0 0.0
        %2308 = vmatprep.subr.mxu0 0.0
        %2309 = vmatpush1.msra.mxu0 0.0
        %2310 = vmatprep.subr.mxu0 0.0
        %2311 = vmatpush1.msra.mxu0 0.0
        %2312 = vmatprep.subr.mxu0 0.0
        %2313 = vmatpush1.msra.mxu0 0.0
        %2314 = vmatprep.subr.mxu0 0.0
        %2315 = vmatpush1.msra.mxu0 0.0
        %2316 = vmatprep.subr.mxu0 0.0
        %2317 = vmatpush1.msra.mxu0 0.0
        %2318 = vmatprep.subr.mxu0 0.0
        %2319 = vmatpush1.msra.mxu0 0.0
        %2320 = vmatprep.subr.mxu0 0.0
        %2321 = vmatpush1.msra.mxu0 0.0
        %2322 = vmatprep.mubr.f32.mxu0 0.0
        %2323 = vmatmul.mubr.f32.gmra.mrb[0].mxu0 %v1729
        %v2324 = vpop.f32.mrb[0].mxu0
        %v2325 = vadd.f32 %v1988, %v2324
        %v2326 = vpop.f32.mrb[0].mxu0
        %v2327 = vadd.f32 %v1990, %v2326
        %2328 = vmatprep.mubr.f32.mxu0 0.0
        %2329 = vmatmul.mubr.f32.gmra.mrb[0].mxu0 %v1730
        %v2330 = vpop.f32.mrb[0].mxu0
        %v2331 = vadd.f32 %v1994, %v2330
        %v2332 = vpop.f32.mrb[0].mxu0
        %v2333 = vadd.f32 %v1996, %v2332
        %2334 = vmatprep.mubr.f32.mxu0 0.0
        %2335 = vmatmul.mubr.f32.gmra.mrb[0].mxu0 %v1731
        %v2336 = vpop.f32.mrb[0].mxu0
        %v2337 = vadd.f32 %v2000, %v2336
        %v2338 = vpop.f32.mrb[0].mxu0
        %2339 = vmatprep.mubr.f32.mxu0 0.0
        %2340 = vmatmul.mubr.f32.gmra.mrb[0].mxu0 %v1732
        %v2341 = vpop.f32.mrb[0].mxu0
        %v2342 = vadd.f32 %v2005, %v2341
        %v2343 = vpop.f32.mrb[0].mxu0
        %v2344 = vadd.f32 %v2007, %v2343
        %2345 = vmatprep.mubr.f32.mxu0 0.0
        %2346 = vmatmul.mubr.f32.gmra.mrb[0].mxu0 %v1733
        %v2347 = vpop.f32.mrb[0].mxu0
        %v2348 = vadd.f32 %v2011, %v2347
        %v2349 = vpop.f32.mrb[0].mxu0
        %v2350 = vadd.f32 %v2013, %v2349
        %2351 = vmatprep.mubr.f32.mxu0 0.0
        %2352 = vmatmul.mubr.f32.gmra.mrb[0].mxu0 %v1734
        %v2353 = vpop.f32.mrb[0].mxu0
        %v2354 = vadd.f32 %v2017, %v2353
        %v2355 = vpop.f32.mrb[0].mxu0
        %2356 = vmatprep.mubr.f32.mxu0 0.0
        %2357 = vmatmul.mubr.f32.gmra.mrb[0].mxu0 %v1735
        %v2358 = vpop.f32.mrb[0].mxu0
        %v2359 = vadd.f32 %v2022, %v2358
        %v2360 = vpop.f32.mrb[0].mxu0
        %v2361 = vadd.f32 %v2024, %v2360
        %2362 = vmatprep.mubr.f32.mxu0 0.0
        %2363 = vmatmul.mubr.f32.gmra.mrb[0].mxu0 %v1736
        %v2364 = vpop.f32.mrb[0].mxu0
        %v2365 = vadd.f32 %v2028, %v2364
        %v2366 = vpop.f32.mrb[0].mxu0
        %v2367 = vadd.f32 %v2030, %v2366
        %2368 = vmatprep.mubr.f32.mxu0 0.0
        %2369 = vmatmul.mubr.f32.gmra.mrb[0].mxu0 %v1737
        %v2370 = vpop.f32.mrb[0].mxu0
        %v2371 = vadd.f32 %v2034, %v2370
        %v2372 = vpop.f32.mrb[0].mxu0
        %2373 = vmatprep.mubr.f32.mxu0 0.0
        %2374 = vmatmul.mubr.f32.gmra.mrb[0].mxu0 %v1738
        %v2375 = vpop.f32.mrb[0].mxu0
        %v2376 = vadd.f32 %v2039, %v2375
        %v2377 = vpop.f32.mrb[0].mxu0
        %v2378 = vadd.f32 %v2041, %v2377
        %2379 = vmatprep.mubr.f32.mxu0 0.0
        %2380 = vmatmul.mubr.f32.gmra.mrb[0].mxu0 %v1739
        %v2381 = vpop.f32.mrb[0].mxu0
        %v2382 = vadd.f32 %v2045, %v2381
        %v2383 = vpop.f32.mrb[0].mxu0
        %v2384 = vadd.f32 %v2047, %v2383
        %2385 = vmatprep.mubr.f32.mxu0 0.0
        %2386 = vmatmul.mubr.f32.gmra.mrb[0].mxu0 %v1740
        %v2387 = vpop.f32.mrb[0].mxu0
        %v2388 = vadd.f32 %v2051, %v2387
        %v2389 = vpop.f32.mrb[0].mxu0
        %2390 = vmatprep.mubr.f32.mxu0 0.0
        %2391 = vmatmul.mubr.f32.gmra.mrb[0].mxu0 %v1741
        %v2392 = vpop.f32.mrb[0].mxu0
        %v2393 = vadd.f32 %v2056, %v2392
        %v2394 = vpop.f32.mrb[0].mxu0
        %v2395 = vadd.f32 %v2058, %v2394
        %2396 = vmatprep.mubr.f32.mxu0 0.0
        %2397 = vmatmul.mubr.f32.gmra.mrb[0].mxu0 %v1742
        %v2398 = vpop.f32.mrb[0].mxu0
        %v2399 = vadd.f32 %v2062, %v2398
        %v2400 = vpop.f32.mrb[0].mxu0
        %v2401 = vadd.f32 %v2064, %v2400
        %2402 = vmatprep.mubr.f32.mxu0 0.0
        %2403 = vmatmul.mubr.f32.gmra.mrb[0].mxu0 %v1743
        %v2404 = vpop.f32.mrb[0].mxu0
        %v2405 = vadd.f32 %v2068, %v2404
        %v2406 = vpop.f32.mrb[0].mxu0
        %2407 = vmatprep.mubr.f32.mxu0 0.0
        %2408 = vmatmul.mubr.f32.gmra.mrb[0].mxu0 %v1744
        %v2409 = vpop.f32.mrb[0].mxu0
        %v2410 = vadd.f32 %v2073, %v2409
        %v2411 = vpop.f32.mrb[0].mxu0
        %v2412 = vadd.f32 %v2075, %v2411
        %2413 = vmatprep.mubr.f32.mxu0 0.0
        %2414 = vmatmul.mubr.f32.gmra.mrb[0].mxu0 %v1745
        %v2415 = vpop.f32.mrb[0].mxu0
        %v2416 = vadd.f32 %v2079, %v2415
        %v2417 = vpop.f32.mrb[0].mxu0
        %v2418 = vadd.f32 %v2081, %v2417
        %2419 = vmatprep.mubr.f32.mxu0 0.0
        %2420 = vmatmul.mubr.f32.gmra.mrb[0].mxu0 %v1746
        %v2421 = vpop.f32.mrb[0].mxu0
        %v2422 = vadd.f32 %v2085, %v2421
        %v2423 = vpop.f32.mrb[0].mxu0
        %2424 = vmatprep.mubr.f32.mxu0 0.0
        %2425 = vmatmul.mubr.f32.gmra.mrb[0].mxu0 %v1747
        %v2426 = vpop.f32.mrb[0].mxu0
        %v2427 = vadd.f32 %v2090, %v2426
        %v2428 = vpop.f32.mrb[0].mxu0
        %v2429 = vadd.f32 %v2092, %v2428
        %2430 = vmatprep.mubr.f32.mxu0 0.0
        %2431 = vmatmul.mubr.f32.gmra.mrb[0].mxu0 %v1748
        %v2432 = vpop.f32.mrb[0].mxu0
        %v2433 = vadd.f32 %v2096, %v2432
        %v2434 = vpop.f32.mrb[0].mxu0
        %v2435 = vadd.f32 %v2098, %v2434
        %2436 = vmatprep.mubr.f32.mxu0 0.0
        %2437 = vmatmul.mubr.f32.gmra.mrb[0].mxu0 %v1749
        %v2438 = vpop.f32.mrb[0].mxu0
        %v2439 = vadd.f32 %v2102, %v2438
        %v2440 = vpop.f32.mrb[0].mxu0
        %2441 = vmatprep.mubr.f32.mxu0 0.0
        %2442 = vmatmul.mubr.f32.gmra.mrb[0].mxu0 %v1750
        %v2443 = vpop.f32.mrb[0].mxu0
        %v2444 = vadd.f32 %v2107, %v2443
        %v2445 = vpop.f32.mrb[0].mxu0
        %v2446 = vadd.f32 %v2109, %v2445
        %2447 = vmatprep.mubr.f32.mxu0 0.0
        %2448 = vmatmul.mubr.f32.gmra.mrb[0].mxu0 %v1751
        %v2449 = vpop.f32.mrb[0].mxu0
        %v2450 = vadd.f32 %v2113, %v2449
        %v2451 = vpop.f32.mrb[0].mxu0
        %v2452 = vadd.f32 %v2115, %v2451
        %2453 = vmatprep.mubr.f32.mxu0 0.0
        %2454 = vmatmul.mubr.f32.gmra.mrb[0].mxu0 %v1752
        %v2455 = vpop.f32.mrb[0].mxu0
        %v2456 = vadd.f32 %v2119, %v2455
        %v2457 = vpop.f32.mrb[0].mxu0
        %2458 = vmatprep.mubr.f32.mxu0 0.0
        %2459 = vmatmul.mubr.f32.gmra.mrb[0].mxu0 %v1753
        %v2460 = vpop.f32.mrb[0].mxu0
        %v2461 = vadd.f32 %v2124, %v2460
        %v2462 = vpop.f32.mrb[0].mxu0
        %v2463 = vadd.f32 %v2126, %v2462
        %2464 = vmatprep.mubr.f32.mxu0 0.0
        %2465 = vmatmul.mubr.f32.gmra.mrb[0].mxu0 %v1754
        %v2466 = vpop.f32.mrb[0].mxu0
        %v2467 = vadd.f32 %v2130, %v2466
        %v2468 = vpop.f32.mrb[0].mxu0
        %v2469 = vadd.f32 %v2132, %v2468
        %2470 = vmatprep.mubr.f32.mxu0 0.0
        %2471 = vmatmul.mubr.f32.gmra.mrb[0].mxu0 %v1755
        %v2472 = vpop.f32.mrb[0].mxu0
        %v2473 = vadd.f32 %v2136, %v2472
        %v2474 = vpop.f32.mrb[0].mxu0
        %2475 = vmatprep.mubr.f32.mxu0 0.0
        %2476 = vmatmul.mubr.f32.gmra.mrb[0].mxu0 %v1756
        %v2477 = vpop.f32.mrb[0].mxu0
        %v2478 = vadd.f32 %v2141, %v2477
        %v2479 = vpop.f32.mrb[0].mxu0
        %v2480 = vadd.f32 %v2143, %v2479
        %2481 = vmatprep.mubr.f32.mxu0 0.0
        %2482 = vmatmul.mubr.f32.gmra.mrb[0].mxu0 %v1757
        %v2483 = vpop.f32.mrb[0].mxu0
        %v2484 = vadd.f32 %v2147, %v2483
        %v2485 = vpop.f32.mrb[0].mxu0
        %v2486 = vadd.f32 %v2149, %v2485
        %2487 = vmatprep.mubr.f32.mxu0 0.0
        %2488 = vmatmul.mubr.f32.gmra.mrb[0].mxu0 %v1758
        %v2489 = vpop.f32.mrb[0].mxu0
        %v2490 = vadd.f32 %v2153, %v2489
        %v2491 = vpop.f32.mrb[0].mxu0
        %2492 = vmatprep.mubr.f32.mxu0 0.0
        %2493 = vmatmul.mubr.f32.gmra.mrb[0].mxu0 %v1759
        %v2494 = vpop.f32.mrb[0].mxu0
        %v2495 = vadd.f32 %v2158, %v2494
        %v2496 = vpop.f32.mrb[0].mxu0
        %v2497 = vadd.f32 %v2160, %v2496
        %2498 = vmatprep.mubr.f32.mxu0 0.0
        %2499 = vmatmul.mubr.f32.gmra.mrb[0].mxu0 %v1760
        %v2500 = vpop.f32.mrb[0].mxu0
        %v2501 = vadd.f32 %v2164, %v2500
        %v2502 = vpop.f32.mrb[0].mxu0
        %v2503 = vadd.f32 %v2166, %v2502
        %2504 = vmatprep.mubr.f32.mxu0 0.0
        %2505 = vmatmul.mubr.f32.gmra.mrb[0].mxu0 %v1761
        %v2506 = vpop.f32.mrb[0].mxu0
        %v2507 = vadd.f32 %v2170, %v2506
        %v2508 = vpop.f32.mrb[0].mxu0
        %2509 = vmatprep.mubr.f32.mxu0 0.0
        %2510 = vmatmul.mubr.f32.gmra.mrb[0].mxu0 %v1762
        %v2511 = vpop.f32.mrb[0].mxu0
        %v2512 = vadd.f32 %v2175, %v2511
        %v2513 = vpop.f32.mrb[0].mxu0
        %v2514 = vadd.f32 %v2177, %v2513
        %2515 = vmatprep.mubr.f32.mxu0 0.0
        %2516 = vmatmul.mubr.f32.gmra.mrb[0].mxu0 %v1763
        %v2517 = vpop.f32.mrb[0].mxu0
        %v2518 = vadd.f32 %v2181, %v2517
        %v2519 = vpop.f32.mrb[0].mxu0
        %v2520 = vadd.f32 %v2183, %v2519
        %2521 = vmatprep.mubr.f32.mxu0 0.0
        %2522 = vmatmul.mubr.f32.gmra.mrb[0].mxu0 %v1764
        %v2523 = vpop.f32.mrb[0].mxu0
        %v2524 = vadd.f32 %v2187, %v2523
        %v2525 = vpop.f32.mrb[0].mxu0
        %2526 = vmatprep.mubr.f32.mxu0 0.0
        %2527 = vmatmul.mubr.f32.gmra.mrb[0].mxu0 %v1765
        %v2528 = vpop.f32.mrb[0].mxu0
        %v2529 = vadd.f32 %v2192, %v2528
        %v2530 = vpop.f32.mrb[0].mxu0
        %v2531 = vadd.f32 %v2194, %v2530
        %2532 = vmatprep.mubr.f32.mxu0 0.0
        %2533 = vmatmul.mubr.f32.gmra.mrb[0].mxu0 %v1766
        %v2534 = vpop.f32.mrb[0].mxu0
        %v2535 = vadd.f32 %v2198, %v2534
        %v2536 = vpop.f32.mrb[0].mxu0
        %v2537 = vadd.f32 %v2200, %v2536
        %2538 = vmatprep.mubr.f32.mxu0 0.0
        %2539 = vmatmul.mubr.f32.gmra.mrb[0].mxu0 %v1767
        %v2540 = vpop.f32.mrb[0].mxu0
        %v2541 = vadd.f32 %v2204, %v2540
        %v2542 = vpop.f32.mrb[0].mxu0
        %2543 = vmatprep.mubr.f32.mxu0 0.0
        %2544 = vmatmul.mubr.f32.gmra.mrb[0].mxu0 %v1768
        %v2545 = vpop.f32.mrb[0].mxu0
        %v2546 = vadd.f32 %v2209, %v2545
        %v2547 = vpop.f32.mrb[0].mxu0
        %v2548 = vadd.f32 %v2211, %v2547
        %2549 = vmatprep.mubr.f32.mxu0 0.0
        %2550 = vmatmul.mubr.f32.gmra.mrb[0].mxu0 %v1769
        %v2551 = vpop.f32.mrb[0].mxu0
        %v2552 = vadd.f32 %v2215, %v2551
        %v2553 = vpop.f32.mrb[0].mxu0
        %v2554 = vadd.f32 %v2217, %v2553
        %2555 = vmatprep.mubr.f32.mxu0 0.0
        %2556 = vmatmul.mubr.f32.gmra.mrb[0].mxu0 %v1770
        %v2557 = vpop.f32.mrb[0].mxu0
        %v2558 = vadd.f32 %v2221, %v2557
        %v2559 = vpop.f32.mrb[0].mxu0
        %2560 = vmatprep.mubr.f32.mxu0 0.0
        %2561 = vmatmul.mubr.f32.gmra.mrb[0].mxu0 %v1771
        %v2562 = vpop.f32.mrb[0].mxu0
        %v2563 = vadd.f32 %v2226, %v2562
        %v2564 = vpop.f32.mrb[0].mxu0
        %v2565 = vadd.f32 %v2228, %v2564
        %2566 = vmatprep.mubr.f32.mxu0 0.0
        %2567 = vmatmul.mubr.f32.gmra.mrb[0].mxu0 %v1772
        %v2568 = vpop.f32.mrb[0].mxu0
        %v2569 = vadd.f32 %v2232, %v2568
        %v2570 = vpop.f32.mrb[0].mxu0
        %v2571 = vadd.f32 %v2234, %v2570
        %2572 = vmatprep.mubr.f32.mxu0 0.0
        %2573 = vmatmul.mubr.f32.gmra.mrb[0].mxu0 %v1773
        %v2574 = vpop.f32.mrb[0].mxu0
        %v2575 = vadd.f32 %v2238, %v2574
        %v2576 = vpop.f32.mrb[0].mxu0
        %2577 = vmatprep.mubr.f32.mxu0 0.0
        %2578 = vmatmul.mubr.f32.gmra.mrb[0].mxu0 %v1774
        %v2579 = vpop.f32.mrb[0].mxu0
        %v2580 = vadd.f32 %v2243, %v2579
        %v2581 = vpop.f32.mrb[0].mxu0
        %v2582 = vadd.f32 %v2245, %v2581
        %2583 = vmatprep.mubr.f32.mxu0 0.0
        %2584 = vmatmul.mubr.f32.gmra.mrb[0].mxu0 %v1775
        %v2585 = vpop.f32.mrb[0].mxu0
        %v2586 = vadd.f32 %v2249, %v2585
        %v2587 = vpop.f32.mrb[0].mxu0
        %v2588 = vadd.f32 %v2251, %v2587
        %2589 = vmatprep.mubr.f32.mxu0 0.0
        %2590 = vmatmul.mubr.f32.gmra.mrb[0].mxu0 %v1776
        %v2591 = vpop.f32.mrb[0].mxu0
        %v2592 = vadd.f32 %v2255, %v2591
        %v2593 = vpop.f32.mrb[0].mxu0
        %2594 = vdwg.mxu0
        %2595 = vmatprep.subr.mxu0 0.0
        %2596 = vmatpush1.msra.mxu0 %v1779
        %2597 = vmatprep.subr.mxu0 0.0
        %2598 = vmatpush1.msra.mxu0 %v1782
        %2599 = vmatprep.subr.mxu0 0.0
        %2600 = vmatpush1.msra.mxu0 %v1785
        %2601 = vmatprep.subr.mxu0 0.0
        %2602 = vmatpush1.msra.mxu0 %v1788
        %2603 = vmatprep.subr.mxu0 0.0
        %2604 = vmatpush1.msra.mxu0 %v1791
        %2605 = vmatprep.subr.mxu0 0.0
        %2606 = vmatpush1.msra.mxu0 %v1794
        %2607 = vmatprep.subr.mxu0 0.0
        %2608 = vmatpush1.msra.mxu0 %v1797
        %2609 = vmatprep.subr.mxu0 0.0
        %2610 = vmatpush1.msra.mxu0 %v1800
        %2611 = vmatprep.subr.mxu0 0.0
        %2612 = vmatpush1.msra.mxu0 %v1803
        %2613 = vmatprep.subr.mxu0 0.0
        %2614 = vmatpush1.msra.mxu0 %v1806
        %2615 = vmatprep.subr.mxu0 0.0
        %2616 = vmatpush1.msra.mxu0 %v1809
        %2617 = vmatprep.subr.mxu0 0.0
        %2618 = vmatpush1.msra.mxu0 %v1812
        %2619 = vmatprep.subr.mxu0 0.0
        %2620 = vmatpush1.msra.mxu0 %v1815
        %2621 = vmatprep.subr.mxu0 0.0
        %2622 = vmatpush1.msra.mxu0 %v1818
        %2623 = vmatprep.subr.mxu0 0.0
        %2624 = vmatpush1.msra.mxu0 %v1821
        %2625 = vmatprep.subr.mxu0 0.0
        %2626 = vmatpush1.msra.mxu0 %v1824
        %2627 = vmatprep.subr.mxu0 0.0
        %2628 = vmatpush1.msra.mxu0 %v1827
        %2629 = vmatprep.subr.mxu0 0.0
        %2630 = vmatpush1.msra.mxu0 %v1830
        %2631 = vmatprep.subr.mxu0 0.0
        %2632 = vmatpush1.msra.mxu0 %v1833
        %2633 = vmatprep.subr.mxu0 0.0
        %2634 = vmatpush1.msra.mxu0 %v1836
        %2635 = vmatprep.subr.mxu0 0.0
        %2636 = vmatpush1.msra.mxu0 %v1839
        %2637 = vmatprep.subr.mxu0 0.0
        %2638 = vmatpush1.msra.mxu0 %v1842
        %2639 = vmatprep.subr.mxu0 0.0
        %2640 = vmatpush1.msra.mxu0 %v1845
        %2641 = vmatprep.subr.mxu0 0.0
        %2642 = vmatpush1.msra.mxu0 %v1848
        %2643 = vmatprep.subr.mxu0 0.0
        %2644 = vmatpush1.msra.mxu0 %v1851
        %2645 = vmatprep.subr.mxu0 0.0
        %2646 = vmatpush1.msra.mxu0 %v1854
        %2647 = vmatprep.subr.mxu0 0.0
        %2648 = vmatpush1.msra.mxu0 %v1857
        %2649 = vmatprep.subr.mxu0 0.0
        %2650 = vmatpush1.msra.mxu0 %v1860
        %2651 = vmatprep.subr.mxu0 0.0
        %2652 = vmatpush1.msra.mxu0 %v1863
        %2653 = vmatprep.subr.mxu0 0.0
        %2654 = vmatpush1.msra.mxu0 %v1866
        %2655 = vmatprep.subr.mxu0 0.0
        %2656 = vmatpush1.msra.mxu0 %v1869
        %2657 = vmatprep.subr.mxu0 0.0
        %2658 = vmatpush1.msra.mxu0 %v1872
        %2659 = vmatprep.mubr.f32.mxu0 %v1680
        %2660 = vmatmul.mubr.f32.gmra.mrb[0].mxu0 %v1632
        %v2661 = vpop.f32.mrb[0].mxu0
        %v2662 = vadd.f32 0.0, %v2661
        %v2663 = vpop.f32.mrb[0].mxu0
        %2664 = vmatprep.mubr.f32.mxu0 %v1681
        %2665 = vmatmul.mubr.f32.gmra.mrb[0].mxu0 %v1633
        %v2666 = vpop.f32.mrb[0].mxu0
        %v2667 = vadd.f32 0.0, %v2666
        %v2668 = vpop.f32.mrb[0].mxu0
        %2669 = vmatprep.mubr.f32.mxu0 %v1682
        %2670 = vmatmul.mubr.f32.gmra.mrb[0].mxu0 %v1634
        %v2671 = vpop.f32.mrb[0].mxu0
        %v2672 = vadd.f32 0.0, %v2671
        %v2673 = vpop.f32.mrb[0].mxu0
        %2674 = vmatprep.mubr.f32.mxu0 %v1683
        %2675 = vmatmul.mubr.f32.gmra.mrb[0].mxu0 %v1635
        %v2676 = vpop.f32.mrb[0].mxu0
        %v2677 = vadd.f32 0.0, %v2676
        %v2678 = vpop.f32.mrb[0].mxu0
        %2679 = vmatprep.mubr.f32.mxu0 %v1684
        %2680 = vmatmul.mubr.f32.gmra.mrb[0].mxu0 %v1636
        %v2681 = vpop.f32.mrb[0].mxu0
        %v2682 = vadd.f32 0.0, %v2681
        %v2683 = vpop.f32.mrb[0].mxu0
        %2684 = vmatprep.mubr.f32.mxu0 %v1685
        %2685 = vmatmul.mubr.f32.gmra.mrb[0].mxu0 %v1637
        %v2686 = vpop.f32.mrb[0].mxu0
        %v2687 = vadd.f32 0.0, %v2686
        %v2688 = vpop.f32.mrb[0].mxu0
        %2689 = vmatprep.mubr.f32.mxu0 %v1686
        %2690 = vmatmul.mubr.f32.gmra.mrb[0].mxu0 %v1638
        %v2691 = vpop.f32.mrb[0].mxu0
        %v2692 = vadd.f32 0.0, %v2691
        %v2693 = vpop.f32.mrb[0].mxu0
        %2694 = vmatprep.mubr.f32.mxu0 %v1687
        %2695 = vmatmul.mubr.f32.gmra.mrb[0].mxu0 %v1639
        %v2696 = vpop.f32.mrb[0].mxu0
        %v2697 = vadd.f32 0.0, %v2696
        %v2698 = vpop.f32.mrb[0].mxu0
        %2699 = vmatprep.mubr.f32.mxu0 %v1688
        %2700 = vmatmul.mubr.f32.gmra.mrb[0].mxu0 %v1640
        %v2701 = vpop.f32.mrb[0].mxu0
        %v2702 = vadd.f32 0.0, %v2701
        %v2703 = vpop.f32.mrb[0].mxu0
        %2704 = vmatprep.mubr.f32.mxu0 %v1689
        %2705 = vmatmul.mubr.f32.gmra.mrb[0].mxu0 %v1641
        %v2706 = vpop.f32.mrb[0].mxu0
        %v2707 = vadd.f32 0.0, %v2706
        %v2708 = vpop.f32.mrb[0].mxu0
        %2709 = vmatprep.mubr.f32.mxu0 %v1690
        %2710 = vmatmul.mubr.f32.gmra.mrb[0].mxu0 %v1642
        %v2711 = vpop.f32.mrb[0].mxu0
        %v2712 = vadd.f32 0.0, %v2711
        %v2713 = vpop.f32.mrb[0].mxu0
        %2714 = vmatprep.mubr.f32.mxu0 %v1691
        %2715 = vmatmul.mubr.f32.gmra.mrb[0].mxu0 %v1643
        %v2716 = vpop.f32.mrb[0].mxu0
        %v2717 = vadd.f32 0.0, %v2716
        %v2718 = vpop.f32.mrb[0].mxu0
        %2719 = vmatprep.mubr.f32.mxu0 %v1692
        %2720 = vmatmul.mubr.f32.gmra.mrb[0].mxu0 %v1644
        %v2721 = vpop.f32.mrb[0].mxu0
        %v2722 = vadd.f32 0.0, %v2721
        %v2723 = vpop.f32.mrb[0].mxu0
        %2724 = vmatprep.mubr.f32.mxu0 %v1693
        %2725 = vmatmul.mubr.f32.gmra.mrb[0].mxu0 %v1645
        %v2726 = vpop.f32.mrb[0].mxu0
        %v2727 = vadd.f32 0.0, %v2726
        %v2728 = vpop.f32.mrb[0].mxu0
        %2729 = vmatprep.mubr.f32.mxu0 %v1694
        %2730 = vmatmul.mubr.f32.gmra.mrb[0].mxu0 %v1646
        %v2731 = vpop.f32.mrb[0].mxu0
        %v2732 = vadd.f32 0.0, %v2731
        %v2733 = vpop.f32.mrb[0].mxu0
        %2734 = vmatprep.mubr.f32.mxu0 %v1695
        %2735 = vmatmul.mubr.f32.gmra.mrb[0].mxu0 %v1647
        %v2736 = vpop.f32.mrb[0].mxu0
        %v2737 = vadd.f32 0.0, %v2736
        %v2738 = vpop.f32.mrb[0].mxu0
        %2739 = vmatprep.mubr.f32.mxu0 %v1696
        %2740 = vmatmul.mubr.f32.gmra.mrb[0].mxu0 %v1648
        %v2741 = vpop.f32.mrb[0].mxu0
        %v2742 = vadd.f32 0.0, %v2741
        %v2743 = vpop.f32.mrb[0].mxu0
        %2744 = vmatprep.mubr.f32.mxu0 %v1697
        %2745 = vmatmul.mubr.f32.gmra.mrb[0].mxu0 %v1649
        %v2746 = vpop.f32.mrb[0].mxu0
        %v2747 = vadd.f32 0.0, %v2746
        %v2748 = vpop.f32.mrb[0].mxu0
        %2749 = vmatprep.mubr.f32.mxu0 %v1698
        %2750 = vmatmul.mubr.f32.gmra.mrb[0].mxu0 %v1650
        %v2751 = vpop.f32.mrb[0].mxu0
        %v2752 = vadd.f32 0.0, %v2751
        %v2753 = vpop.f32.mrb[0].mxu0
        %2754 = vmatprep.mubr.f32.mxu0 %v1699
        %2755 = vmatmul.mubr.f32.gmra.mrb[0].mxu0 %v1651
        %v2756 = vpop.f32.mrb[0].mxu0
        %v2757 = vadd.f32 0.0, %v2756
        %v2758 = vpop.f32.mrb[0].mxu0
        %2759 = vmatprep.mubr.f32.mxu0 %v1700
        %2760 = vmatmul.mubr.f32.gmra.mrb[0].mxu0 %v1652
        %v2761 = vpop.f32.mrb[0].mxu0
        %v2762 = vadd.f32 0.0, %v2761
        %v2763 = vpop.f32.mrb[0].mxu0
        %2764 = vmatprep.mubr.f32.mxu0 %v1701
        %2765 = vmatmul.mubr.f32.gmra.mrb[0].mxu0 %v1653
        %v2766 = vpop.f32.mrb[0].mxu0
        %v2767 = vadd.f32 0.0, %v2766
        %v2768 = vpop.f32.mrb[0].mxu0
        %2769 = vmatprep.mubr.f32.mxu0 %v1702
        %2770 = vmatmul.mubr.f32.gmra.mrb[0].mxu0 %v1654
        %v2771 = vpop.f32.mrb[0].mxu0
        %v2772 = vadd.f32 0.0, %v2771
        %v2773 = vpop.f32.mrb[0].mxu0
        %2774 = vmatprep.mubr.f32.mxu0 %v1703
        %2775 = vmatmul.mubr.f32.gmra.mrb[0].mxu0 %v1655
        %v2776 = vpop.f32.mrb[0].mxu0
        %v2777 = vadd.f32 0.0, %v2776
        %v2778 = vpop.f32.mrb[0].mxu0
        %2779 = vmatprep.mubr.f32.mxu0 %v1704
        %2780 = vmatmul.mubr.f32.gmra.mrb[0].mxu0 %v1656
        %v2781 = vpop.f32.mrb[0].mxu0
        %v2782 = vadd.f32 0.0, %v2781
        %v2783 = vpop.f32.mrb[0].mxu0
        %2784 = vmatprep.mubr.f32.mxu0 %v1705
        %2785 = vmatmul.mubr.f32.gmra.mrb[0].mxu0 %v1657
        %v2786 = vpop.f32.mrb[0].mxu0
        %v2787 = vadd.f32 0.0, %v2786
        %v2788 = vpop.f32.mrb[0].mxu0
        %2789 = vmatprep.mubr.f32.mxu0 %v1706
        %2790 = vmatmul.mubr.f32.gmra.mrb[0].mxu0 %v1658
        %v2791 = vpop.f32.mrb[0].mxu0
        %v2792 = vadd.f32 0.0, %v2791
        %v2793 = vpop.f32.mrb[0].mxu0
        %2794 = vmatprep.mubr.f32.mxu0 %v1707
        %2795 = vmatmul.mubr.f32.gmra.mrb[0].mxu0 %v1659
        %v2796 = vpop.f32.mrb[0].mxu0
        %v2797 = vadd.f32 0.0, %v2796
        %v2798 = vpop.f32.mrb[0].mxu0
        %2799 = vmatprep.mubr.f32.mxu0 %v1708
        %2800 = vmatmul.mubr.f32.gmra.mrb[0].mxu0 %v1660
        %v2801 = vpop.f32.mrb[0].mxu0
        %v2802 = vadd.f32 0.0, %v2801
        %v2803 = vpop.f32.mrb[0].mxu0
        %2804 = vmatprep.mubr.f32.mxu0 %v1709
        %2805 = vmatmul.mubr.f32.gmra.mrb[0].mxu0 %v1661
        %v2806 = vpop.f32.mrb[0].mxu0
        %v2807 = vadd.f32 0.0, %v2806
        %v2808 = vpop.f32.mrb[0].mxu0
        %2809 = vmatprep.mubr.f32.mxu0 %v1710
        %2810 = vmatmul.mubr.f32.gmra.mrb[0].mxu0 %v1662
        %v2811 = vpop.f32.mrb[0].mxu0
        %v2812 = vadd.f32 0.0, %v2811
        %v2813 = vpop.f32.mrb[0].mxu0
        %2814 = vmatprep.mubr.f32.mxu0 %v1711
        %2815 = vmatmul.mubr.f32.gmra.mrb[0].mxu0 %v1663
        %v2816 = vpop.f32.mrb[0].mxu0
        %v2817 = vadd.f32 0.0, %v2816
        %v2818 = vpop.f32.mrb[0].mxu0
        %2819 = vmatprep.mubr.f32.mxu0 %v1712
        %2820 = vmatmul.mubr.f32.gmra.mrb[0].mxu0 %v1664
        %v2821 = vpop.f32.mrb[0].mxu0
        %v2822 = vadd.f32 0.0, %v2821
        %v2823 = vpop.f32.mrb[0].mxu0
        %2824 = vmatprep.mubr.f32.mxu0 %v1713
        %2825 = vmatmul.mubr.f32.gmra.mrb[0].mxu0 %v1665
        %v2826 = vpop.f32.mrb[0].mxu0
        %v2827 = vadd.f32 0.0, %v2826
        %v2828 = vpop.f32.mrb[0].mxu0
        %2829 = vmatprep.mubr.f32.mxu0 %v1714
        %2830 = vmatmul.mubr.f32.gmra.mrb[0].mxu0 %v1666
        %v2831 = vpop.f32.mrb[0].mxu0
        %v2832 = vadd.f32 0.0, %v2831
        %v2833 = vpop.f32.mrb[0].mxu0
        %2834 = vmatprep.mubr.f32.mxu0 %v1715
        %2835 = vmatmul.mubr.f32.gmra.mrb[0].mxu0 %v1667
        %v2836 = vpop.f32.mrb[0].mxu0
        %v2837 = vadd.f32 0.0, %v2836
        %v2838 = vpop.f32.mrb[0].mxu0
        %2839 = vmatprep.mubr.f32.mxu0 %v1716
        %2840 = vmatmul.mubr.f32.gmra.mrb[0].mxu0 %v1668
        %v2841 = vpop.f32.mrb[0].mxu0
        %v2842 = vadd.f32 0.0, %v2841
        %v2843 = vpop.f32.mrb[0].mxu0
        %2844 = vmatprep.mubr.f32.mxu0 %v1717
        %2845 = vmatmul.mubr.f32.gmra.mrb[0].mxu0 %v1669
        %v2846 = vpop.f32.mrb[0].mxu0
        %v2847 = vadd.f32 0.0, %v2846
        %v2848 = vpop.f32.mrb[0].mxu0
        %2849 = vmatprep.mubr.f32.mxu0 %v1718
        %2850 = vmatmul.mubr.f32.gmra.mrb[0].mxu0 %v1670
        %v2851 = vpop.f32.mrb[0].mxu0
        %v2852 = vadd.f32 0.0, %v2851
        %v2853 = vpop.f32.mrb[0].mxu0
        %2854 = vmatprep.mubr.f32.mxu0 %v1719
        %2855 = vmatmul.mubr.f32.gmra.mrb[0].mxu0 %v1671
        %v2856 = vpop.f32.mrb[0].mxu0
        %v2857 = vadd.f32 0.0, %v2856
        %v2858 = vpop.f32.mrb[0].mxu0
        %2859 = vmatprep.mubr.f32.mxu0 %v1720
        %2860 = vmatmul.mubr.f32.gmra.mrb[0].mxu0 %v1672
        %v2861 = vpop.f32.mrb[0].mxu0
        %v2862 = vadd.f32 0.0, %v2861
        %v2863 = vpop.f32.mrb[0].mxu0
        %2864 = vmatprep.mubr.f32.mxu0 %v1721
        %2865 = vmatmul.mubr.f32.gmra.mrb[0].mxu0 %v1673
        %v2866 = vpop.f32.mrb[0].mxu0
        %v2867 = vadd.f32 0.0, %v2866
        %v2868 = vpop.f32.mrb[0].mxu0
        %2869 = vmatprep.mubr.f32.mxu0 %v1722
        %2870 = vmatmul.mubr.f32.gmra.mrb[0].mxu0 %v1674
        %v2871 = vpop.f32.mrb[0].mxu0
        %v2872 = vadd.f32 0.0, %v2871
        %v2873 = vpop.f32.mrb[0].mxu0
        %2874 = vmatprep.mubr.f32.mxu0 %v1723
        %2875 = vmatmul.mubr.f32.gmra.mrb[0].mxu0 %v1675
        %v2876 = vpop.f32.mrb[0].mxu0
        %v2877 = vadd.f32 0.0, %v2876
        %v2878 = vpop.f32.mrb[0].mxu0
        %2879 = vmatprep.mubr.f32.mxu0 %v1724
        %2880 = vmatmul.mubr.f32.gmra.mrb[0].mxu0 %v1676
        %v2881 = vpop.f32.mrb[0].mxu0
        %v2882 = vadd.f32 0.0, %v2881
        %v2883 = vpop.f32.mrb[0].mxu0
        %2884 = vmatprep.mubr.f32.mxu0 %v1725
        %2885 = vmatmul.mubr.f32.gmra.mrb[0].mxu0 %v1677
        %v2886 = vpop.f32.mrb[0].mxu0
        %v2887 = vadd.f32 0.0, %v2886
        %v2888 = vpop.f32.mrb[0].mxu0
        %2889 = vmatprep.mubr.f32.mxu0 %v1726
        %2890 = vmatmul.mubr.f32.gmra.mrb[0].mxu0 %v1678
        %v2891 = vpop.f32.mrb[0].mxu0
        %v2892 = vadd.f32 0.0, %v2891
        %v2893 = vpop.f32.mrb[0].mxu0
        %2894 = vmatprep.mubr.f32.mxu0 %v1727
        %2895 = vmatmul.mubr.f32.gmra.mrb[0].mxu0 %v1679
        %v2896 = vpop.f32.mrb[0].mxu0
        %v2897 = vadd.f32 0.0, %v2896
        %v2898 = vpop.f32.mrb[0].mxu0
        %2899 = vdwg.mxu0
        %2900 = vmatprep.subr.mxu0 0.0
        %2901 = vmatpush1.msra.mxu0 %v1875
        %2902 = vmatprep.subr.mxu0 0.0
        %2903 = vmatpush1.msra.mxu0 %v1878
        %2904 = vmatprep.subr.mxu0 0.0
        %2905 = vmatpush1.msra.mxu0 %v1881
        %2906 = vmatprep.subr.mxu0 0.0
        %2907 = vmatpush1.msra.mxu0 %v1884
        %2908 = vmatprep.subr.mxu0 0.0
        %2909 = vmatpush1.msra.mxu0 %v1887
        %2910 = vmatprep.subr.mxu0 0.0
        %2911 = vmatpush1.msra.mxu0 %v1890
        %2912 = vmatprep.subr.mxu0 0.0
        %2913 = vmatpush1.msra.mxu0 %v1893
        %2914 = vmatprep.subr.mxu0 0.0
        %2915 = vmatpush1.msra.mxu0 %v1896
        %2916 = vmatprep.subr.mxu0 0.0
        %2917 = vmatpush1.msra.mxu0 %v1899
        %2918 = vmatprep.subr.mxu0 0.0
        %2919 = vmatpush1.msra.mxu0 %v1902
        %2920 = vmatprep.subr.mxu0 0.0
        %2921 = vmatpush1.msra.mxu0 %v1905
        %2922 = vmatprep.subr.mxu0 0.0
        %2923 = vmatpush1.msra.mxu0 %v1908
        %2924 = vmatprep.subr.mxu0 0.0
        %2925 = vmatpush1.msra.mxu0 %v1911
        %2926 = vmatprep.subr.mxu0 0.0
        %2927 = vmatpush1.msra.mxu0 %v1914
        %2928 = vmatprep.subr.mxu0 0.0
        %2929 = vmatpush1.msra.mxu0 %v1917
        %2930 = vmatprep.subr.mxu0 0.0
        %2931 = vmatpush1.msra.mxu0 %v1920
        %2932 = vmatprep.subr.mxu0 0.0
        %2933 = vmatpush1.msra.mxu0 0.0
        %2934 = vmatprep.subr.mxu0 0.0
        %2935 = vmatpush1.msra.mxu0 0.0
        %2936 = vmatprep.subr.mxu0 0.0
        %2937 = vmatpush1.msra.mxu0 0.0
        %2938 = vmatprep.subr.mxu0 0.0
        %2939 = vmatpush1.msra.mxu0 0.0
        %2940 = vmatprep.subr.mxu0 0.0
        %2941 = vmatpush1.msra.mxu0 0.0
        %2942 = vmatprep.subr.mxu0 0.0
        %2943 = vmatpush1.msra.mxu0 0.0
        %2944 = vmatprep.subr.mxu0 0.0
        %2945 = vmatpush1.msra.mxu0 0.0
        %2946 = vmatprep.subr.mxu0 0.0
        %2947 = vmatpush1.msra.mxu0 0.0
        %2948 = vmatprep.subr.mxu0 0.0
        %2949 = vmatpush1.msra.mxu0 0.0
        %2950 = vmatprep.subr.mxu0 0.0
        %2951 = vmatpush1.msra.mxu0 0.0
        %2952 = vmatprep.subr.mxu0 0.0
        %2953 = vmatpush1.msra.mxu0 0.0
        %2954 = vmatprep.subr.mxu0 0.0
        %2955 = vmatpush1.msra.mxu0 0.0
        %2956 = vmatprep.subr.mxu0 0.0
        %2957 = vmatpush1.msra.mxu0 0.0
        %2958 = vmatprep.subr.mxu0 0.0
        %2959 = vmatpush1.msra.mxu0 0.0
        %2960 = vmatprep.subr.mxu0 0.0
        %2961 = vmatpush1.msra.mxu0 0.0
        %2962 = vmatprep.subr.mxu0 0.0
        %2963 = vmatpush1.msra.mxu0 0.0
        %2964 = vmatprep.mubr.f32.mxu0 0.0
        %2965 = vmatmul.mubr.f32.gmra.mrb[0].mxu0 %v1729
        %v2966 = vpop.f32.mrb[0].mxu0
        %v2967 = vadd.f32 %v2662, %v2966
        %v2968 = vpop.f32.mrb[0].mxu0
        %2969 = vmatprep.mubr.f32.mxu0 0.0
        %2970 = vmatmul.mubr.f32.gmra.mrb[0].mxu0 %v1730
        %v2971 = vpop.f32.mrb[0].mxu0
        %v2972 = vadd.f32 %v2667, %v2971
        %v2973 = vpop.f32.mrb[0].mxu0
        %2974 = vmatprep.mubr.f32.mxu0 0.0
        %2975 = vmatmul.mubr.f32.gmra.mrb[0].mxu0 %v1731
        %v2976 = vpop.f32.mrb[0].mxu0
        %v2977 = vadd.f32 %v2672, %v2976
        %v2978 = vpop.f32.mrb[0].mxu0
        %2979 = vmatprep.mubr.f32.mxu0 0.0
        %2980 = vmatmul.mubr.f32.gmra.mrb[0].mxu0 %v1732
        %v2981 = vpop.f32.mrb[0].mxu0
        %v2982 = vadd.f32 %v2677, %v2981
        %v2983 = vpop.f32.mrb[0].mxu0
        %2984 = vmatprep.mubr.f32.mxu0 0.0
        %2985 = vmatmul.mubr.f32.gmra.mrb[0].mxu0 %v1733
        %v2986 = vpop.f32.mrb[0].mxu0
        %v2987 = vadd.f32 %v2682, %v2986
        %v2988 = vpop.f32.mrb[0].mxu0
        %2989 = vmatprep.mubr.f32.mxu0 0.0
        %2990 = vmatmul.mubr.f32.gmra.mrb[0].mxu0 %v1734
        %v2991 = vpop.f32.mrb[0].mxu0
        %v2992 = vadd.f32 %v2687, %v2991
        %v2993 = vpop.f32.mrb[0].mxu0
        %2994 = vmatprep.mubr.f32.mxu0 0.0
        %2995 = vmatmul.mubr.f32.gmra.mrb[0].mxu0 %v1735
        %v2996 = vpop.f32.mrb[0].mxu0
        %v2997 = vadd.f32 %v2692, %v2996
        %v2998 = vpop.f32.mrb[0].mxu0
        %2999 = vmatprep.mubr.f32.mxu0 0.0
        %3000 = vmatmul.mubr.f32.gmra.mrb[0].mxu0 %v1736
        %v3001 = vpop.f32.mrb[0].mxu0
        %v3002 = vadd.f32 %v2697, %v3001
        %v3003 = vpop.f32.mrb[0].mxu0
        %3004 = vmatprep.mubr.f32.mxu0 0.0
        %3005 = vmatmul.mubr.f32.gmra.mrb[0].mxu0 %v1737
        %v3006 = vpop.f32.mrb[0].mxu0
        %v3007 = vadd.f32 %v2702, %v3006
        %v3008 = vpop.f32.mrb[0].mxu0
        %3009 = vmatprep.mubr.f32.mxu0 0.0
        %3010 = vmatmul.mubr.f32.gmra.mrb[0].mxu0 %v1738
        %v3011 = vpop.f32.mrb[0].mxu0
        %v3012 = vadd.f32 %v2707, %v3011
        %v3013 = vpop.f32.mrb[0].mxu0
        %3014 = vmatprep.mubr.f32.mxu0 0.0
        %3015 = vmatmul.mubr.f32.gmra.mrb[0].mxu0 %v1739
        %v3016 = vpop.f32.mrb[0].mxu0
        %v3017 = vadd.f32 %v2712, %v3016
        %v3018 = vpop.f32.mrb[0].mxu0
        %3019 = vmatprep.mubr.f32.mxu0 0.0
        %3020 = vmatmul.mubr.f32.gmra.mrb[0].mxu0 %v1740
        %v3021 = vpop.f32.mrb[0].mxu0
        %v3022 = vadd.f32 %v2717, %v3021
        %v3023 = vpop.f32.mrb[0].mxu0
        %3024 = vmatprep.mubr.f32.mxu0 0.0
        %3025 = vmatmul.mubr.f32.gmra.mrb[0].mxu0 %v1741
        %v3026 = vpop.f32.mrb[0].mxu0
        %v3027 = vadd.f32 %v2722, %v3026
        %v3028 = vpop.f32.mrb[0].mxu0
        %3029 = vmatprep.mubr.f32.mxu0 0.0
        %3030 = vmatmul.mubr.f32.gmra.mrb[0].mxu0 %v1742
        %v3031 = vpop.f32.mrb[0].mxu0
        %v3032 = vadd.f32 %v2727, %v3031
        %v3033 = vpop.f32.mrb[0].mxu0
        %3034 = vmatprep.mubr.f32.mxu0 0.0
        %3035 = vmatmul.mubr.f32.gmra.mrb[0].mxu0 %v1743
        %v3036 = vpop.f32.mrb[0].mxu0
        %v3037 = vadd.f32 %v2732, %v3036
        %v3038 = vpop.f32.mrb[0].mxu0
        %3039 = vmatprep.mubr.f32.mxu0 0.0
        %3040 = vmatmul.mubr.f32.gmra.mrb[0].mxu0 %v1744
        %v3041 = vpop.f32.mrb[0].mxu0
        %v3042 = vadd.f32 %v2737, %v3041
        %v3043 = vpop.f32.mrb[0].mxu0
        %3044 = vmatprep.mubr.f32.mxu0 0.0
        %3045 = vmatmul.mubr.f32.gmra.mrb[0].mxu0 %v1745
        %v3046 = vpop.f32.mrb[0].mxu0
        %v3047 = vadd.f32 %v2742, %v3046
        %v3048 = vpop.f32.mrb[0].mxu0
        %3049 = vmatprep.mubr.f32.mxu0 0.0
        %3050 = vmatmul.mubr.f32.gmra.mrb[0].mxu0 %v1746
        %v3051 = vpop.f32.mrb[0].mxu0
        %v3052 = vadd.f32 %v2747, %v3051
        %v3053 = vpop.f32.mrb[0].mxu0
        %3054 = vmatprep.mubr.f32.mxu0 0.0
        %3055 = vmatmul.mubr.f32.gmra.mrb[0].mxu0 %v1747
        %v3056 = vpop.f32.mrb[0].mxu0
        %v3057 = vadd.f32 %v2752, %v3056
        %v3058 = vpop.f32.mrb[0].mxu0
        %3059 = vmatprep.mubr.f32.mxu0 0.0
        %3060 = vmatmul.mubr.f32.gmra.mrb[0].mxu0 %v1748
        %v3061 = vpop.f32.mrb[0].mxu0
        %v3062 = vadd.f32 %v2757, %v3061
        %v3063 = vpop.f32.mrb[0].mxu0
        %3064 = vmatprep.mubr.f32.mxu0 0.0
        %3065 = vmatmul.mubr.f32.gmra.mrb[0].mxu0 %v1749
        %v3066 = vpop.f32.mrb[0].mxu0
        %v3067 = vadd.f32 %v2762, %v3066
        %v3068 = vpop.f32.mrb[0].mxu0
        %3069 = vmatprep.mubr.f32.mxu0 0.0
        %3070 = vmatmul.mubr.f32.gmra.mrb[0].mxu0 %v1750
        %v3071 = vpop.f32.mrb[0].mxu0
        %v3072 = vadd.f32 %v2767, %v3071
        %v3073 = vpop.f32.mrb[0].mxu0
        %3074 = vmatprep.mubr.f32.mxu0 0.0
        %3075 = vmatmul.mubr.f32.gmra.mrb[0].mxu0 %v1751
        %v3076 = vpop.f32.mrb[0].mxu0
        %v3077 = vadd.f32 %v2772, %v3076
        %v3078 = vpop.f32.mrb[0].mxu0
        %3079 = vmatprep.mubr.f32.mxu0 0.0
        %3080 = vmatmul.mubr.f32.gmra.mrb[0].mxu0 %v1752
        %v3081 = vpop.f32.mrb[0].mxu0
        %v3082 = vadd.f32 %v2777, %v3081
        %v3083 = vpop.f32.mrb[0].mxu0
        %3084 = vmatprep.mubr.f32.mxu0 0.0
        %3085 = vmatmul.mubr.f32.gmra.mrb[0].mxu0 %v1753
        %v3086 = vpop.f32.mrb[0].mxu0
        %v3087 = vadd.f32 %v2782, %v3086
        %v3088 = vpop.f32.mrb[0].mxu0
        %3089 = vmatprep.mubr.f32.mxu0 0.0
        %3090 = vmatmul.mubr.f32.gmra.mrb[0].mxu0 %v1754
        %v3091 = vpop.f32.mrb[0].mxu0
        %v3092 = vadd.f32 %v2787, %v3091
        %v3093 = vpop.f32.mrb[0].mxu0
        %3094 = vmatprep.mubr.f32.mxu0 0.0
        %3095 = vmatmul.mubr.f32.gmra.mrb[0].mxu0 %v1755
        %v3096 = vpop.f32.mrb[0].mxu0
        %v3097 = vadd.f32 %v2792, %v3096
        %v3098 = vpop.f32.mrb[0].mxu0
        %3099 = vmatprep.mubr.f32.mxu0 0.0
        %3100 = vmatmul.mubr.f32.gmra.mrb[0].mxu0 %v1756
        %v3101 = vpop.f32.mrb[0].mxu0
        %v3102 = vadd.f32 %v2797, %v3101
        %v3103 = vpop.f32.mrb[0].mxu0
        %3104 = vmatprep.mubr.f32.mxu0 0.0
        %3105 = vmatmul.mubr.f32.gmra.mrb[0].mxu0 %v1757
        %v3106 = vpop.f32.mrb[0].mxu0
        %v3107 = vadd.f32 %v2802, %v3106
        %v3108 = vpop.f32.mrb[0].mxu0
        %3109 = vmatprep.mubr.f32.mxu0 0.0
        %3110 = vmatmul.mubr.f32.gmra.mrb[0].mxu0 %v1758
        %v3111 = vpop.f32.mrb[0].mxu0
        %v3112 = vadd.f32 %v2807, %v3111
        %v3113 = vpop.f32.mrb[0].mxu0
        %3114 = vmatprep.mubr.f32.mxu0 0.0
        %3115 = vmatmul.mubr.f32.gmra.mrb[0].mxu0 %v1759
        %v3116 = vpop.f32.mrb[0].mxu0
        %v3117 = vadd.f32 %v2812, %v3116
        %v3118 = vpop.f32.mrb[0].mxu0
        %3119 = vmatprep.mubr.f32.mxu0 0.0
        %3120 = vmatmul.mubr.f32.gmra.mrb[0].mxu0 %v1760
        %v3121 = vpop.f32.mrb[0].mxu0
        %v3122 = vadd.f32 %v2817, %v3121
        %v3123 = vpop.f32.mrb[0].mxu0
        %3124 = vmatprep.mubr.f32.mxu0 0.0
        %3125 = vmatmul.mubr.f32.gmra.mrb[0].mxu0 %v1761
        %v3126 = vpop.f32.mrb[0].mxu0
        %v3127 = vadd.f32 %v2822, %v3126
        %v3128 = vpop.f32.mrb[0].mxu0
        %3129 = vmatprep.mubr.f32.mxu0 0.0
        %3130 = vmatmul.mubr.f32.gmra.mrb[0].mxu0 %v1762
        %v3131 = vpop.f32.mrb[0].mxu0
        %v3132 = vadd.f32 %v2827, %v3131
        %v3133 = vpop.f32.mrb[0].mxu0
        %3134 = vmatprep.mubr.f32.mxu0 0.0
        %3135 = vmatmul.mubr.f32.gmra.mrb[0].mxu0 %v1763
        %v3136 = vpop.f32.mrb[0].mxu0
        %v3137 = vadd.f32 %v2832, %v3136
        %v3138 = vpop.f32.mrb[0].mxu0
        %3139 = vmatprep.mubr.f32.mxu0 0.0
        %3140 = vmatmul.mubr.f32.gmra.mrb[0].mxu0 %v1764
        %v3141 = vpop.f32.mrb[0].mxu0
        %v3142 = vadd.f32 %v2837, %v3141
        %v3143 = vpop.f32.mrb[0].mxu0
        %3144 = vmatprep.mubr.f32.mxu0 0.0
        %3145 = vmatmul.mubr.f32.gmra.mrb[0].mxu0 %v1765
        %v3146 = vpop.f32.mrb[0].mxu0
        %v3147 = vadd.f32 %v2842, %v3146
        %v3148 = vpop.f32.mrb[0].mxu0
        %3149 = vmatprep.mubr.f32.mxu0 0.0
        %3150 = vmatmul.mubr.f32.gmra.mrb[0].mxu0 %v1766
        %v3151 = vpop.f32.mrb[0].mxu0
        %v3152 = vadd.f32 %v2847, %v3151
        %v3153 = vpop.f32.mrb[0].mxu0
        %3154 = vmatprep.mubr.f32.mxu0 0.0
        %3155 = vmatmul.mubr.f32.gmra.mrb[0].mxu0 %v1767
        %v3156 = vpop.f32.mrb[0].mxu0
        %v3157 = vadd.f32 %v2852, %v3156
        %v3158 = vpop.f32.mrb[0].mxu0
        %3159 = vmatprep.mubr.f32.mxu0 0.0
        %3160 = vmatmul.mubr.f32.gmra.mrb[0].mxu0 %v1768
        %v3161 = vpop.f32.mrb[0].mxu0
        %v3162 = vadd.f32 %v2857, %v3161
        %v3163 = vpop.f32.mrb[0].mxu0
        %3164 = vmatprep.mubr.f32.mxu0 0.0
        %3165 = vmatmul.mubr.f32.gmra.mrb[0].mxu0 %v1769
        %v3166 = vpop.f32.mrb[0].mxu0
        %v3167 = vadd.f32 %v2862, %v3166
        %v3168 = vpop.f32.mrb[0].mxu0
        %3169 = vmatprep.mubr.f32.mxu0 0.0
        %3170 = vmatmul.mubr.f32.gmra.mrb[0].mxu0 %v1770
        %v3171 = vpop.f32.mrb[0].mxu0
        %v3172 = vadd.f32 %v2867, %v3171
        %v3173 = vpop.f32.mrb[0].mxu0
        %3174 = vmatprep.mubr.f32.mxu0 0.0
        %3175 = vmatmul.mubr.f32.gmra.mrb[0].mxu0 %v1771
        %v3176 = vpop.f32.mrb[0].mxu0
        %v3177 = vadd.f32 %v2872, %v3176
        %v3178 = vpop.f32.mrb[0].mxu0
        %3179 = vmatprep.mubr.f32.mxu0 0.0
        %3180 = vmatmul.mubr.f32.gmra.mrb[0].mxu0 %v1772
        %v3181 = vpop.f32.mrb[0].mxu0
        %v3182 = vadd.f32 %v2877, %v3181
        %v3183 = vpop.f32.mrb[0].mxu0
        %3184 = vmatprep.mubr.f32.mxu0 0.0
        %3185 = vmatmul.mubr.f32.gmra.mrb[0].mxu0 %v1773
        %v3186 = vpop.f32.mrb[0].mxu0
        %v3187 = vadd.f32 %v2882, %v3186
        %v3188 = vpop.f32.mrb[0].mxu0
        %3189 = vmatprep.mubr.f32.mxu0 0.0
        %3190 = vmatmul.mubr.f32.gmra.mrb[0].mxu0 %v1774
        %v3191 = vpop.f32.mrb[0].mxu0
        %v3192 = vadd.f32 %v2887, %v3191
        %v3193 = vpop.f32.mrb[0].mxu0
        %3194 = vmatprep.mubr.f32.mxu0 0.0
        %3195 = vmatmul.mubr.f32.gmra.mrb[0].mxu0 %v1775
        %v3196 = vpop.f32.mrb[0].mxu0
        %v3197 = vadd.f32 %v2892, %v3196
        %v3198 = vpop.f32.mrb[0].mxu0
        %3199 = vmatprep.mubr.f32.mxu0 0.0
        %3200 = vmatmul.mubr.f32.gmra.mrb[0].mxu0 %v1776
        %v3201 = vpop.f32.mrb[0].mxu0
        %v3202 = vadd.f32 %v2897, %v3201
        %v3203 = vpop.f32.mrb[0].mxu0
        %3204 = vdwg.mxu0
        %v3205 = vrot.slane %v2325, 7
        %v3206 = vrot.slane %v2331, 7
        %v3207 = vrot.slane %v2337, 7
        %v3208 = vrot.slane %v2342, 7
        %v3209 = vrot.slane %v2348, 7
        %v3210 = vrot.slane %v2354, 7
        %v3211 = vrot.slane %v2359, 7
        %v3212 = vrot.slane %v2365, 7
        %v3213 = vrot.slane %v2371, 7
        %v3214 = vrot.slane %v2376, 7
        %v3215 = vrot.slane %v2382, 7
        %v3216 = vrot.slane %v2388, 7
        %v3217 = vrot.slane %v2393, 7
        %v3218 = vrot.slane %v2399, 7
        %v3219 = vrot.slane %v2405, 7
        %v3220 = vrot.slane %v2410, 7
        %v3221 = vrot.slane %v2416, 7
        %v3222 = vrot.slane %v2422, 7
        %v3223 = vrot.slane %v2427, 7
        %v3224 = vrot.slane %v2433, 7
        %v3225 = vrot.slane %v2439, 7
        %v3226 = vrot.slane %v2444, 7
        %v3227 = vrot.slane %v2450, 7
        %v3228 = vrot.slane %v2456, 7
        %v3229 = vrot.slane %v2461, 7
        %v3230 = vrot.slane %v2467, 7
        %v3231 = vrot.slane %v2473, 7
        %v3232 = vrot.slane %v2478, 7
        %v3233 = vrot.slane %v2484, 7
        %v3234 = vrot.slane %v2490, 7
        %v3235 = vrot.slane %v2495, 7
        %v3236 = vrot.slane %v2501, 7
        %v3237 = vrot.slane %v2507, 7
        %v3238 = vrot.slane %v2512, 7
        %v3239 = vrot.slane %v2518, 7
        %v3240 = vrot.slane %v2524, 7
        %v3241 = vrot.slane %v2529, 7
        %v3242 = vrot.slane %v2535, 7
        %v3243 = vrot.slane %v2541, 7
        %v3244 = vrot.slane %v2546, 7
        %v3245 = vrot.slane %v2552, 7
        %v3246 = vrot.slane %v2558, 7
        %v3247 = vrot.slane %v2563, 7
        %v3248 = vrot.slane %v2569, 7
        %v3249 = vrot.slane %v2575, 7
        %v3250 = vrot.slane %v2580, 7
        %v3251 = vrot.slane %v2586, 7
        %v3252 = vrot.slane %v2592, 7
        %v3253 = vlaneseq
        %v3254 = vshrl.u32 %v3253, 7
        %vm3255 = vcmp.lt.s32.totalorder %v3254, 1
        %v3256 = vsel %vm3255, %v3250, %v3251
        %v3257 = vsel %vm3255, %v3249, %v3250
        %v3258 = vsel %vm3255, %v3247, %v3248
        %v3259 = vsel %vm3255, %v3246, %v3247
        %v3260 = vsel %vm3255, %v3244, %v3245
        %v3261 = vsel %vm3255, %v3243, %v3244
        %v3262 = vsel %vm3255, %v3241, %v3242
        %v3263 = vsel %vm3255, %v3240, %v3241
        %v3264 = vsel %vm3255, %v3238, %v3239
        %v3265 = vsel %vm3255, %v3237, %v3238
        %v3266 = vsel %vm3255, %v3235, %v3236
        %v3267 = vsel %vm3255, %v3234, %v3235
        %v3268 = vsel %vm3255, %v3232, %v3233
        %v3269 = vsel %vm3255, %v3231, %v3232
        %v3270 = vsel %vm3255, %v3229, %v3230
        %v3271 = vsel %vm3255, %v3228, %v3229
        %v3272 = vsel %vm3255, %v3226, %v3227
        %v3273 = vsel %vm3255, %v3225, %v3226
        %v3274 = vsel %vm3255, %v3223, %v3224
        %v3275 = vsel %vm3255, %v3222, %v3223
        %v3276 = vsel %vm3255, %v3220, %v3221
        %v3277 = vsel %vm3255, %v3219, %v3220
        %v3278 = vsel %vm3255, %v3217, %v3218
        %v3279 = vsel %vm3255, %v3216, %v3217
        %v3280 = vsel %vm3255, %v3214, %v3215
        %v3281 = vsel %vm3255, %v3213, %v3214
        %v3282 = vsel %vm3255, %v3211, %v3212
        %v3283 = vsel %vm3255, %v3210, %v3211
        %v3284 = vsel %vm3255, %v3208, %v3209
        %v3285 = vsel %vm3255, %v3207, %v3208
        %v3286 = vsel %vm3255, %v3205, %v3206
        %v3287 = vsel %vm3255, %v3252, %v3205
        %v3288 = vadd.f32 %v2327, %v3287
        %v3289 = vadd.f32 %v2333, %v3286
        %v3290 = vadd.f32 %v2344, %v3285
        %v3291 = vadd.f32 %v2350, %v3284
        %v3292 = vadd.f32 %v2361, %v3283
        %v3293 = vadd.f32 %v2367, %v3282
        %v3294 = vadd.f32 %v2378, %v3281
        %v3295 = vadd.f32 %v2384, %v3280
        %v3296 = vadd.f32 %v2395, %v3279
        %v3297 = vadd.f32 %v2401, %v3278
        %v3298 = vadd.f32 %v2412, %v3277
        %v3299 = vadd.f32 %v2418, %v3276
        %v3300 = vadd.f32 %v2429, %v3275
        %v3301 = vadd.f32 %v2435, %v3274
        %v3302 = vadd.f32 %v2446, %v3273
        %v3303 = vadd.f32 %v2452, %v3272
        %v3304 = vadd.f32 %v2463, %v3271
        %v3305 = vadd.f32 %v2469, %v3270
        %v3306 = vadd.f32 %v2480, %v3269
        %v3307 = vadd.f32 %v2486, %v3268
        %v3308 = vadd.f32 %v2497, %v3267
        %v3309 = vadd.f32 %v2503, %v3266
        %v3310 = vadd.f32 %v2514, %v3265
        %v3311 = vadd.f32 %v2520, %v3264
        %v3312 = vadd.f32 %v2531, %v3263
        %v3313 = vadd.f32 %v2537, %v3262
        %v3314 = vadd.f32 %v2548, %v3261
        %v3315 = vadd.f32 %v2554, %v3260
        %v3316 = vadd.f32 %v2565, %v3259
        %v3317 = vadd.f32 %v2571, %v3258
        %v3318 = vadd.f32 %v2582, %v3257
        %v3319 = vadd.f32 %v2588, %v3256
        %v3320 = vrot.slane %v2967, 1
        %v3321 = vrot.slane %v2972, 1
        %v3322 = vrot.slane %v2977, 1
        %v3323 = vrot.slane %v2982, 1
        %v3324 = vrot.slane %v2987, 1
        %v3325 = vrot.slane %v2992, 1
        %v3326 = vrot.slane %v2997, 1
        %v3327 = vrot.slane %v3002, 1
        %v3328 = vrot.slane %v3007, 1
        %v3329 = vrot.slane %v3012, 1
        %v3330 = vrot.slane %v3017, 1
        %v3331 = vrot.slane %v3022, 1
        %v3332 = vrot.slane %v3027, 1
        %v3333 = vrot.slane %v3032, 1
        %v3334 = vrot.slane %v3037, 1
        %v3335 = vrot.slane %v3042, 1
        %v3336 = vrot.slane %v3047, 1
        %v3337 = vrot.slane %v3052, 1
        %v3338 = vrot.slane %v3057, 1
        %v3339 = vrot.slane %v3062, 1
        %v3340 = vrot.slane %v3067, 1
        %v3341 = vrot.slane %v3072, 1
        %v3342 = vrot.slane %v3077, 1
        %v3343 = vrot.slane %v3082, 1
        %v3344 = vrot.slane %v3087, 1
        %v3345 = vrot.slane %v3092, 1
        %v3346 = vrot.slane %v3097, 1
        %v3347 = vrot.slane %v3102, 1
        %v3348 = vrot.slane %v3107, 1
        %v3349 = vrot.slane %v3112, 1
        %v3350 = vrot.slane %v3117, 1
        %v3351 = vrot.slane %v3122, 1
        %v3352 = vrot.slane %v3127, 1
        %v3353 = vrot.slane %v3132, 1
        %v3354 = vrot.slane %v3137, 1
        %v3355 = vrot.slane %v3142, 1
        %v3356 = vrot.slane %v3147, 1
        %v3357 = vrot.slane %v3152, 1
        %v3358 = vrot.slane %v3157, 1
        %v3359 = vrot.slane %v3162, 1
        %v3360 = vrot.slane %v3167, 1
        %v3361 = vrot.slane %v3172, 1
        %v3362 = vrot.slane %v3177, 1
        %v3363 = vrot.slane %v3182, 1
        %v3364 = vrot.slane %v3187, 1
        %v3365 = vrot.slane %v3192, 1
        %v3366 = vrot.slane %v3197, 1
        %v3367 = vrot.slane %v3202, 1
        %vm3368 = vcmp.lt.s32.totalorder %v3254, 7
        %v3369 = vsel %vm3368, %v3366, %v3367
        %v3370 = vsel %vm3368, %v3365, %v3366
        %v3371 = vsel %vm3368, %v3363, %v3364
        %v3372 = vsel %vm3368, %v3362, %v3363
        %v3373 = vsel %vm3368, %v3360, %v3361
        %v3374 = vsel %vm3368, %v3359, %v3360
        %v3375 = vsel %vm3368, %v3357, %v3358
        %v3376 = vsel %vm3368, %v3356, %v3357
        %v3377 = vsel %vm3368, %v3354, %v3355
        %v3378 = vsel %vm3368, %v3353, %v3354
        %v3379 = vsel %vm3368, %v3351, %v3352
        %v3380 = vsel %vm3368, %v3350, %v3351
        %v3381 = vsel %vm3368, %v3348, %v3349
        %v3382 = vsel %vm3368, %v3347, %v3348
        %v3383 = vsel %vm3368, %v3345, %v3346
        %v3384 = vsel %vm3368, %v3344, %v3345
        %v3385 = vsel %vm3368, %v3342, %v3343
        %v3386 = vsel %vm3368, %v3341, %v3342
        %v3387 = vsel %vm3368, %v3339, %v3340
        %v3388 = vsel %vm3368, %v3338, %v3339
        %v3389 = vsel %vm3368, %v3336, %v3337
        %v3390 = vsel %vm3368, %v3335, %v3336
        %v3391 = vsel %vm3368, %v3333, %v3334
        %v3392 = vsel %vm3368, %v3332, %v3333
        %v3393 = vsel %vm3368, %v3330, %v3331
        %v3394 = vsel %vm3368, %v3329, %v3330
        %v3395 = vsel %vm3368, %v3327, %v3328
        %v3396 = vsel %vm3368, %v3326, %v3327
        %v3397 = vsel %vm3368, %v3324, %v3325
        %v3398 = vsel %vm3368, %v3323, %v3324
        %v3399 = vsel %vm3368, %v3321, %v3322
        %v3400 = vsel %vm3368, %v3320, %v3321
        %v3401 = vadd.f32 %v3288, %v3400
        %v3402 = vadd.f32 %v3289, %v3399
        %v3403 = vadd.f32 %v3290, %v3398
        %v3404 = vadd.f32 %v3291, %v3397
        %v3405 = vadd.f32 %v3292, %v3396
        %v3406 = vadd.f32 %v3293, %v3395
        %v3407 = vadd.f32 %v3294, %v3394
        %v3408 = vadd.f32 %v3295, %v3393
        %v3409 = vadd.f32 %v3296, %v3392
        %v3410 = vadd.f32 %v3297, %v3391
        %v3411 = vadd.f32 %v3298, %v3390
        %v3412 = vadd.f32 %v3299, %v3389
        %v3413 = vadd.f32 %v3300, %v3388
        %v3414 = vadd.f32 %v3301, %v3387
        %v3415 = vadd.f32 %v3302, %v3386
        %v3416 = vadd.f32 %v3303, %v3385
        %v3417 = vadd.f32 %v3304, %v3384
        %v3418 = vadd.f32 %v3305, %v3383
        %v3419 = vadd.f32 %v3306, %v3382
        %v3420 = vadd.f32 %v3307, %v3381
        %v3421 = vadd.f32 %v3308, %v3380
        %v3422 = vadd.f32 %v3309, %v3379
        %v3423 = vadd.f32 %v3310, %v3378
        %v3424 = vadd.f32 %v3311, %v3377
        %v3425 = vadd.f32 %v3312, %v3376
        %v3426 = vadd.f32 %v3313, %v3375
        %v3427 = vadd.f32 %v3314, %v3374
        %v3428 = vadd.f32 %v3315, %v3373
        %v3429 = vadd.f32 %v3316, %v3372
        %v3430 = vadd.f32 %v3317, %v3371
        %v3431 = vadd.f32 %v3318, %v3370
        %v3432 = vadd.f32 %v3319, %v3369
        %v3433 = vld [vmem:[%s6] sm:$0x1]
        %v3435 = vlaneseq
        %v3436 = vshrl.u32 %v3435, 7
        %v3437 = vsub.s32 0, %v3436
        %v3438 = vrot.slane %v3433, %v3437
        %v3440 = vadd.f32 %v3401, %v3438
        %v3441 = vadd.f32 %v3402, %v3438
        %v3442 = vadd.f32 %v3403, %v3438
        %v3443 = vadd.f32 %v3404, %v3438
        %v3444 = vadd.f32 %v3405, %v3438
        %v3445 = vadd.f32 %v3406, %v3438
        %v3446 = vadd.f32 %v3407, %v3438
        %v3447 = vadd.f32 %v3408, %v3438
        %v3448 = vadd.f32 %v3409, %v3438
        %v3449 = vadd.f32 %v3410, %v3438
        %v3450 = vadd.f32 %v3411, %v3438
        %v3451 = vadd.f32 %v3412, %v3438
        %v3452 = vadd.f32 %v3413, %v3438
        %v3453 = vadd.f32 %v3414, %v3438
        %v3454 = vadd.f32 %v3415, %v3438
        %v3455 = vadd.f32 %v3416, %v3438
        %v3456 = vadd.f32 %v3417, %v3438
        %v3457 = vadd.f32 %v3418, %v3438
        %v3458 = vadd.f32 %v3419, %v3438
        %v3459 = vadd.f32 %v3420, %v3438
        %v3460 = vadd.f32 %v3421, %v3438
        %v3461 = vadd.f32 %v3422, %v3438
        %v3462 = vadd.f32 %v3423, %v3438
        %v3463 = vadd.f32 %v3424, %v3438
        %v3464 = vadd.f32 %v3425, %v3438
        %v3465 = vadd.f32 %v3426, %v3438
        %v3466 = vadd.f32 %v3427, %v3438
        %v3467 = vadd.f32 %v3428, %v3438
        %v3468 = vadd.f32 %v3429, %v3438
        %v3469 = vadd.f32 %v3430, %v3438
        %v3470 = vadd.f32 %v3431, %v3438
        %v3471 = vadd.f32 %v3432, %v3438
        %v3472 = vsub.f32 0.0, %v3440
        %v3473 = vsub.f32 0.0, %v3441
        %v3474 = vsub.f32 0.0, %v3442
        %v3475 = vsub.f32 0.0, %v3443
        %v3476 = vsub.f32 0.0, %v3444
        %v3477 = vsub.f32 0.0, %v3445
        %v3478 = vsub.f32 0.0, %v3446
        %v3479 = vsub.f32 0.0, %v3447
        %v3480 = vsub.f32 0.0, %v3448
        %v3481 = vsub.f32 0.0, %v3449
        %v3482 = vsub.f32 0.0, %v3450
        %v3483 = vsub.f32 0.0, %v3451
        %v3484 = vsub.f32 0.0, %v3452
        %v3485 = vsub.f32 0.0, %v3453
        %v3486 = vsub.f32 0.0, %v3454
        %v3487 = vsub.f32 0.0, %v3455
        %v3488 = vsub.f32 0.0, %v3456
        %v3489 = vsub.f32 0.0, %v3457
        %v3490 = vsub.f32 0.0, %v3458
        %v3491 = vsub.f32 0.0, %v3459
        %v3492 = vsub.f32 0.0, %v3460
        %v3493 = vsub.f32 0.0, %v3461
        %v3494 = vsub.f32 0.0, %v3462
        %v3495 = vsub.f32 0.0, %v3463
        %v3496 = vsub.f32 0.0, %v3464
        %v3497 = vsub.f32 0.0, %v3465
        %v3498 = vsub.f32 0.0, %v3466
        %v3499 = vsub.f32 0.0, %v3467
        %v3500 = vsub.f32 0.0, %v3468
        %v3501 = vsub.f32 0.0, %v3469
        %v3502 = vsub.f32 0.0, %v3470
        %v3503 = vsub.f32 0.0, %v3471
        %v3504 = vmul.f32 %v3472, 1.442695
        %v3505 = vpow.pop %v3504
        %v3506 = vmul.f32 %v3473, 1.442695
        %v3507 = vpow.pop %v3506
        %v3508 = vmul.f32 %v3474, 1.442695
        %v3509 = vpow.pop %v3508
        %v3510 = vmul.f32 %v3475, 1.442695
        %v3511 = vpow.pop %v3510
        %v3512 = vmul.f32 %v3476, 1.442695
        %v3513 = vpow.pop %v3512
        %v3514 = vmul.f32 %v3477, 1.442695
        %v3515 = vpow.pop %v3514
        %v3516 = vmul.f32 %v3478, 1.442695
        %v3517 = vpow.pop %v3516
        %v3518 = vmul.f32 %v3479, 1.442695
        %v3519 = vpow.pop %v3518
        %v3520 = vmul.f32 %v3480, 1.442695
        %v3521 = vpow.pop %v3520
        %v3522 = vmul.f32 %v3481, 1.442695
        %v3523 = vpow.pop %v3522
        %v3524 = vmul.f32 %v3482, 1.442695
        %v3525 = vpow.pop %v3524
        %v3526 = vmul.f32 %v3483, 1.442695
        %v3527 = vpow.pop %v3526
        %v3528 = vmul.f32 %v3484, 1.442695
        %v3529 = vpow.pop %v3528
        %v3530 = vmul.f32 %v3485, 1.442695
        %v3531 = vpow.pop %v3530
        %v3532 = vmul.f32 %v3486, 1.442695
        %v3533 = vpow.pop %v3532
        %v3534 = vmul.f32 %v3487, 1.442695
        %v3535 = vpow.pop %v3534
        %v3536 = vmul.f32 %v3488, 1.442695
        %v3537 = vpow.pop %v3536
        %v3538 = vmul.f32 %v3489, 1.442695
        %v3539 = vpow.pop %v3538
        %v3540 = vmul.f32 %v3490, 1.442695
        %v3541 = vpow.pop %v3540
        %v3542 = vmul.f32 %v3491, 1.442695
        %v3543 = vpow.pop %v3542
        %v3544 = vmul.f32 %v3492, 1.442695
        %v3545 = vpow.pop %v3544
        %v3546 = vmul.f32 %v3493, 1.442695
        %v3547 = vpow.pop %v3546
        %v3548 = vmul.f32 %v3494, 1.442695
        %v3549 = vpow.pop %v3548
        %v3550 = vmul.f32 %v3495, 1.442695
        %v3551 = vpow.pop %v3550
        %v3552 = vmul.f32 %v3496, 1.442695
        %v3553 = vpow.pop %v3552
        %v3554 = vmul.f32 %v3497, 1.442695
        %v3555 = vpow.pop %v3554
        %v3556 = vmul.f32 %v3498, 1.442695
        %v3557 = vpow.pop %v3556
        %v3558 = vmul.f32 %v3499, 1.442695
        %v3559 = vpow.pop %v3558
        %v3560 = vmul.f32 %v3500, 1.442695
        %v3561 = vpow.pop %v3560
        %v3562 = vmul.f32 %v3501, 1.442695
        %v3563 = vpow.pop %v3562
        %v3564 = vmul.f32 %v3502, 1.442695
        %v3565 = vpow.pop %v3564
        %v3566 = vmul.f32 %v3503, 1.442695
        %v3567 = vpow.pop %v3566
        %v3568 = vadd.f32 %v3505, 1.0
        %v3569 = vadd.f32 %v3507, 1.0
        %v3570 = vadd.f32 %v3509, 1.0
        %v3571 = vadd.f32 %v3511, 1.0
        %v3572 = vadd.f32 %v3513, 1.0
        %v3573 = vadd.f32 %v3515, 1.0
        %v3574 = vadd.f32 %v3517, 1.0
        %v3575 = vadd.f32 %v3519, 1.0
        %v3576 = vadd.f32 %v3521, 1.0
        %v3577 = vadd.f32 %v3523, 1.0
        %v3578 = vadd.f32 %v3525, 1.0
        %v3579 = vadd.f32 %v3527, 1.0
        %v3580 = vadd.f32 %v3529, 1.0
        %v3581 = vadd.f32 %v3531, 1.0
        %v3582 = vadd.f32 %v3533, 1.0
        %v3583 = vadd.f32 %v3535, 1.0
        %v3584 = vadd.f32 %v3537, 1.0
        %v3585 = vadd.f32 %v3539, 1.0
        %v3586 = vadd.f32 %v3541, 1.0
        %v3587 = vadd.f32 %v3543, 1.0
        %v3588 = vadd.f32 %v3545, 1.0
        %v3589 = vadd.f32 %v3547, 1.0
        %v3590 = vadd.f32 %v3549, 1.0
        %v3591 = vadd.f32 %v3551, 1.0
        %v3592 = vadd.f32 %v3553, 1.0
        %v3593 = vadd.f32 %v3555, 1.0
        %v3594 = vadd.f32 %v3557, 1.0
        %v3595 = vadd.f32 %v3559, 1.0
        %v3596 = vadd.f32 %v3561, 1.0
        %v3597 = vadd.f32 %v3563, 1.0
        %v3598 = vadd.f32 %v3565, 1.0
        %v3599 = vadd.f32 %v3567, 1.0
        %v3600 = vrcp.pop %v3568
        %v3601 = vrcp.pop %v3569
        %v3602 = vrcp.pop %v3570
        %v3603 = vrcp.pop %v3571
        %v3604 = vrcp.pop %v3572
        %v3605 = vrcp.pop %v3573
        %v3606 = vrcp.pop %v3574
        %v3607 = vrcp.pop %v3575
        %v3608 = vrcp.pop %v3576
        %v3609 = vrcp.pop %v3577
        %v3610 = vrcp.pop %v3578
        %v3611 = vrcp.pop %v3579
        %v3612 = vrcp.pop %v3580
        %v3613 = vrcp.pop %v3581
        %v3614 = vrcp.pop %v3582
        %v3615 = vrcp.pop %v3583
        %v3616 = vrcp.pop %v3584
        %v3617 = vrcp.pop %v3585
        %v3618 = vrcp.pop %v3586
        %v3619 = vrcp.pop %v3587
        %v3620 = vrcp.pop %v3588
        %v3621 = vrcp.pop %v3589
        %v3622 = vrcp.pop %v3590
        %v3623 = vrcp.pop %v3591
        %v3624 = vrcp.pop %v3592
        %v3625 = vrcp.pop %v3593
        %v3626 = vrcp.pop %v3594
        %v3627 = vrcp.pop %v3595
        %v3628 = vrcp.pop %v3596
        %v3629 = vrcp.pop %v3597
        %v3630 = vrcp.pop %v3598
        %v3631 = vrcp.pop %v3599
        %v3632 = vmul.f32 %v3440, %v3600
        %v3633 = vmul.f32 %v3441, %v3601
        %v3634 = vmul.f32 %v3442, %v3602
        %v3635 = vmul.f32 %v3443, %v3603
        %v3636 = vmul.f32 %v3444, %v3604
        %v3637 = vmul.f32 %v3445, %v3605
        %v3638 = vmul.f32 %v3446, %v3606
        %v3639 = vmul.f32 %v3447, %v3607
        %v3640 = vmul.f32 %v3448, %v3608
        %v3641 = vmul.f32 %v3449, %v3609
        %v3642 = vmul.f32 %v3450, %v3610
        %v3643 = vmul.f32 %v3451, %v3611
        %v3644 = vmul.f32 %v3452, %v3612
        %v3645 = vmul.f32 %v3453, %v3613
        %v3646 = vmul.f32 %v3454, %v3614
        %v3647 = vmul.f32 %v3455, %v3615
        %v3648 = vmul.f32 %v3456, %v3616
        %v3649 = vmul.f32 %v3457, %v3617
        %v3650 = vmul.f32 %v3458, %v3618
        %v3651 = vmul.f32 %v3459, %v3619
        %v3652 = vmul.f32 %v3460, %v3620
        %v3653 = vmul.f32 %v3461, %v3621
        %v3654 = vmul.f32 %v3462, %v3622
        %v3655 = vmul.f32 %v3463, %v3623
        %v3656 = vmul.f32 %v3464, %v3624
        %v3657 = vmul.f32 %v3465, %v3625
        %v3658 = vmul.f32 %v3466, %v3626
        %v3659 = vmul.f32 %v3467, %v3627
        %v3660 = vmul.f32 %v3468, %v3628
        %v3661 = vmul.f32 %v3469, %v3629
        %v3662 = vmul.f32 %v3470, %v3630
        %v3663 = vmul.f32 %v3471, %v3631
        %v3664 = vadd.f32 %v1096, %v3632
        %v3665 = vadd.f32 %v1098, %v3633
        %v3666 = vadd.f32 %v1100, %v3634
        %v3667 = vadd.f32 %v1102, %v3635
        %v3668 = vadd.f32 %v1104, %v3636
        %v3669 = vadd.f32 %v1106, %v3637
        %v3670 = vadd.f32 %v1108, %v3638
        %v3671 = vadd.f32 %v1110, %v3639
        %v3672 = vadd.f32 %v1112, %v3640
        %v3673 = vadd.f32 %v1114, %v3641
        %v3674 = vadd.f32 %v1116, %v3642
        %v3675 = vadd.f32 %v1118, %v3643
        %v3676 = vadd.f32 %v1120, %v3644
        %v3677 = vadd.f32 %v1122, %v3645
        %v3678 = vadd.f32 %v1124, %v3646
        %v3679 = vadd.f32 %v1126, %v3647
        %v3680 = vadd.f32 %v1128, %v3648
        %v3681 = vadd.f32 %v1130, %v3649
        %v3682 = vadd.f32 %v1132, %v3650
        %v3683 = vadd.f32 %v1134, %v3651
        %v3684 = vadd.f32 %v1136, %v3652
        %v3685 = vadd.f32 %v1138, %v3653
        %v3686 = vadd.f32 %v1140, %v3654
        %v3687 = vadd.f32 %v1142, %v3655
        %v3688 = vadd.f32 %v1144, %v3656
        %v3689 = vadd.f32 %v1146, %v3657
        %v3690 = vadd.f32 %v1148, %v3658
        %v3691 = vadd.f32 %v1150, %v3659
        %v3692 = vadd.f32 %v1152, %v3660
        %v3693 = vadd.f32 %v1154, %v3661
        %v3694 = vadd.f32 %v1156, %v3662
        %v3695 = vadd.f32 %v1158, %v3663
        %v3696 = vld [vmem:[%s7] sm:$0xff]
        %v3697 = vld [vmem:[%s7 + $0x8] sm:$0xff]
        %v3698 = vld [vmem:[%s7 + $0x10] sm:$0xff]
        %v3699 = vld [vmem:[%s7 + $0x18] sm:$0xff]
        %v3700 = vld [vmem:[%s7 + $0x20] sm:$0xff]
        %v3701 = vld [vmem:[%s7 + $0x28] sm:$0xff]
        %v3702 = vld [vmem:[%s7 + $0x30] sm:$0xff]
        %v3703 = vld [vmem:[%s7 + $0x38] sm:$0xff]
        %v3704 = vld [vmem:[%s7 + $0x40] sm:$0xff]
        %v3705 = vld [vmem:[%s7 + $0x48] sm:$0xff]
        %v3706 = vld [vmem:[%s7 + $0x50] sm:$0xff]
        %v3707 = vld [vmem:[%s7 + $0x58] sm:$0xff]
        %v3708 = vld [vmem:[%s7 + $0x60] sm:$0xff]
        %v3709 = vld [vmem:[%s7 + $0x68] sm:$0xff]
        %v3710 = vld [vmem:[%s7 + $0x70] sm:$0xff]
        %v3711 = vld [vmem:[%s7 + $0x78] sm:$0xff]
        %v3712 = vld [vmem:[%s7 + $0x80] sm:$0xff]
        %v3713 = vld [vmem:[%s7 + $0x88] sm:$0xff]
        %v3714 = vld [vmem:[%s7 + $0x90] sm:$0xff]
        %v3715 = vld [vmem:[%s7 + $0x98] sm:$0xff]
        %v3716 = vld [vmem:[%s7 + $0xa0] sm:$0xff]
        %v3717 = vld [vmem:[%s7 + $0xa8] sm:$0xff]
        %v3718 = vld [vmem:[%s7 + $0xb0] sm:$0xff]
        %v3719 = vld [vmem:[%s7 + $0xb8] sm:$0xff]
        %v3720 = vld [vmem:[%s7 + $0xc0] sm:$0xff]
        %v3721 = vld [vmem:[%s7 + $0xc8] sm:$0xff]
        %v3722 = vld [vmem:[%s7 + $0xd0] sm:$0xff]
        %v3723 = vld [vmem:[%s7 + $0xd8] sm:$0xff]
        %v3724 = vld [vmem:[%s7 + $0xe0] sm:$0xff]
        %v3725 = vld [vmem:[%s7 + $0xe8] sm:$0xff]
        %v3726 = vld [vmem:[%s7 + $0xf0] sm:$0xff]
        %v3727 = vld [vmem:[%s7 + $0xf8] sm:$0xff]
        %v3728 = vld [vmem:[%s8] sm:$0x1]
        %v3730 = vlaneseq
        %v3731 = vshrl.u32 %v3730, 7
        %v3732 = vsub.s32 0, %v3731
        %v3733 = vrot.slane %v3728, %v3732
        %3735 = vmatprep.subr.mxu0 0.0
        %3736 = vmatpush1.msra.mxu0 %v3696
        %3737 = vmatprep.subr.mxu0 0.0
        %3738 = vmatpush1.msra.mxu0 %v3697
        %3739 = vmatprep.subr.mxu0 0.0
        %3740 = vmatpush1.msra.mxu0 %v3698
        %3741 = vmatprep.subr.mxu0 0.0
        %3742 = vmatpush1.msra.mxu0 %v3699
        %3743 = vmatprep.subr.mxu0 0.0
        %3744 = vmatpush1.msra.mxu0 %v3700
        %3745 = vmatprep.subr.mxu0 0.0
        %3746 = vmatpush1.msra.mxu0 %v3701
        %3747 = vmatprep.subr.mxu0 0.0
        %3748 = vmatpush1.msra.mxu0 %v3702
        %3749 = vmatprep.subr.mxu0 0.0
        %3750 = vmatpush1.msra.mxu0 %v3703
        %3751 = vmatprep.subr.mxu0 0.0
        %3752 = vmatpush1.msra.mxu0 %v3704
        %3753 = vmatprep.subr.mxu0 0.0
        %3754 = vmatpush1.msra.mxu0 %v3705
        %3755 = vmatprep.subr.mxu0 0.0
        %3756 = vmatpush1.msra.mxu0 %v3706
        %3757 = vmatprep.subr.mxu0 0.0
        %3758 = vmatpush1.msra.mxu0 %v3707
        %3759 = vmatprep.subr.mxu0 0.0
        %3760 = vmatpush1.msra.mxu0 %v3708
        %3761 = vmatprep.subr.mxu0 0.0
        %3762 = vmatpush1.msra.mxu0 %v3709
        %3763 = vmatprep.subr.mxu0 0.0
        %3764 = vmatpush1.msra.mxu0 %v3710
        %3765 = vmatprep.subr.mxu0 0.0
        %3766 = vmatpush1.msra.mxu0 %v3711
        %3767 = vmatprep.subr.mxu0 0.0
        %3768 = vmatpush1.msra.mxu0 %v3712
        %3769 = vmatprep.subr.mxu0 0.0
        %3770 = vmatpush1.msra.mxu0 %v3713
        %3771 = vmatprep.subr.mxu0 0.0
        %3772 = vmatpush1.msra.mxu0 %v3714
        %3773 = vmatprep.subr.mxu0 0.0
        %3774 = vmatpush1.msra.mxu0 %v3715
        %3775 = vmatprep.subr.mxu0 0.0
        %3776 = vmatpush1.msra.mxu0 %v3716
        %3777 = vmatprep.subr.mxu0 0.0
        %3778 = vmatpush1.msra.mxu0 %v3717
        %3779 = vmatprep.subr.mxu0 0.0
        %3780 = vmatpush1.msra.mxu0 %v3718
        %3781 = vmatprep.subr.mxu0 0.0
        %3782 = vmatpush1.msra.mxu0 %v3719
        %3783 = vmatprep.subr.mxu0 0.0
        %3784 = vmatpush1.msra.mxu0 %v3720
        %3785 = vmatprep.subr.mxu0 0.0
        %3786 = vmatpush1.msra.mxu0 %v3721
        %3787 = vmatprep.subr.mxu0 0.0
        %3788 = vmatpush1.msra.mxu0 %v3722
        %3789 = vmatprep.subr.mxu0 0.0
        %3790 = vmatpush1.msra.mxu0 %v3723
        %3791 = vmatprep.subr.mxu0 0.0
        %3792 = vmatpush1.msra.mxu0 %v3724
        %3793 = vmatprep.subr.mxu0 0.0
        %3794 = vmatpush1.msra.mxu0 %v3725
        %3795 = vmatprep.subr.mxu0 0.0
        %3796 = vmatpush1.msra.mxu0 %v3726
        %3797 = vmatprep.subr.mxu0 0.0
        %3798 = vmatpush1.msra.mxu0 %v3727
        %3799 = vmatprep.mubr.f32.mxu0 %v1097
        %3800 = vmatmul.mubr.f32.gmra.mrb[0].mxu0 %v3664
        %v3801 = vpop.f32.mrb[0].mxu0
        %v3802 = vadd.f32 %v3733, %v3801
        %v3803 = vpop.f32.mrb[0].mxu0
        %3804 = vmatprep.mubr.f32.mxu0 %v1099
        %3805 = vmatmul.mubr.f32.gmra.mrb[0].mxu0 %v3665
        %v3806 = vpop.f32.mrb[0].mxu0
        %v3807 = vadd.f32 %v3733, %v3806
        %v3808 = vpop.f32.mrb[0].mxu0
        %3809 = vmatprep.mubr.f32.mxu0 %v1101
        %3810 = vmatmul.mubr.f32.gmra.mrb[0].mxu0 %v3666
        %v3811 = vpop.f32.mrb[0].mxu0
        %v3812 = vadd.f32 %v3733, %v3811
        %v3813 = vpop.f32.mrb[0].mxu0
        %3814 = vmatprep.mubr.f32.mxu0 %v1103
        %3815 = vmatmul.mubr.f32.gmra.mrb[0].mxu0 %v3667
        %v3816 = vpop.f32.mrb[0].mxu0
        %v3817 = vadd.f32 %v3733, %v3816
        %v3818 = vpop.f32.mrb[0].mxu0
        %3819 = vmatprep.mubr.f32.mxu0 %v1105
        %3820 = vmatmul.mubr.f32.gmra.mrb[0].mxu0 %v3668
        %v3821 = vpop.f32.mrb[0].mxu0
        %v3822 = vadd.f32 %v3733, %v3821
        %v3823 = vpop.f32.mrb[0].mxu0
        %3824 = vmatprep.mubr.f32.mxu0 %v1107
        %3825 = vmatmul.mubr.f32.gmra.mrb[0].mxu0 %v3669
        %v3826 = vpop.f32.mrb[0].mxu0
        %v3827 = vadd.f32 %v3733, %v3826
        %v3828 = vpop.f32.mrb[0].mxu0
        %3829 = vmatprep.mubr.f32.mxu0 %v1109
        %3830 = vmatmul.mubr.f32.gmra.mrb[0].mxu0 %v3670
        %v3831 = vpop.f32.mrb[0].mxu0
        %v3832 = vadd.f32 %v3733, %v3831
        %v3833 = vpop.f32.mrb[0].mxu0
        %3834 = vmatprep.mubr.f32.mxu0 %v1111
        %3835 = vmatmul.mubr.f32.gmra.mrb[0].mxu0 %v3671
        %v3836 = vpop.f32.mrb[0].mxu0
        %v3837 = vadd.f32 %v3733, %v3836
        %v3838 = vpop.f32.mrb[0].mxu0
        %3839 = vmatprep.mubr.f32.mxu0 %v1113
        %3840 = vmatmul.mubr.f32.gmra.mrb[0].mxu0 %v3672
        %v3841 = vpop.f32.mrb[0].mxu0
        %v3842 = vadd.f32 %v3733, %v3841
        %v3843 = vpop.f32.mrb[0].mxu0
        %3844 = vmatprep.mubr.f32.mxu0 %v1115
        %3845 = vmatmul.mubr.f32.gmra.mrb[0].mxu0 %v3673
        %v3846 = vpop.f32.mrb[0].mxu0
        %v3847 = vadd.f32 %v3733, %v3846
        %v3848 = vpop.f32.mrb[0].mxu0
        %3849 = vmatprep.mubr.f32.mxu0 %v1117
        %3850 = vmatmul.mubr.f32.gmra.mrb[0].mxu0 %v3674
        %v3851 = vpop.f32.mrb[0].mxu0
        %v3852 = vadd.f32 %v3733, %v3851
        %v3853 = vpop.f32.mrb[0].mxu0
        %3854 = vmatprep.mubr.f32.mxu0 %v1119
        %3855 = vmatmul.mubr.f32.gmra.mrb[0].mxu0 %v3675
        %v3856 = vpop.f32.mrb[0].mxu0
        %v3857 = vadd.f32 %v3733, %v3856
        %v3858 = vpop.f32.mrb[0].mxu0
        %3859 = vmatprep.mubr.f32.mxu0 %v1121
        %3860 = vmatmul.mubr.f32.gmra.mrb[0].mxu0 %v3676
        %v3861 = vpop.f32.mrb[0].mxu0
        %v3862 = vadd.f32 %v3733, %v3861
        %v3863 = vpop.f32.mrb[0].mxu0
        %3864 = vmatprep.mubr.f32.mxu0 %v1123
        %3865 = vmatmul.mubr.f32.gmra.mrb[0].mxu0 %v3677
        %v3866 = vpop.f32.mrb[0].mxu0
        %v3867 = vadd.f32 %v3733, %v3866
        %v3868 = vpop.f32.mrb[0].mxu0
        %3869 = vmatprep.mubr.f32.mxu0 %v1125
        %3870 = vmatmul.mubr.f32.gmra.mrb[0].mxu0 %v3678
        %v3871 = vpop.f32.mrb[0].mxu0
        %v3872 = vadd.f32 %v3733, %v3871
        %v3873 = vpop.f32.mrb[0].mxu0
        %3874 = vmatprep.mubr.f32.mxu0 %v1127
        %3875 = vmatmul.mubr.f32.gmra.mrb[0].mxu0 %v3679
        %v3876 = vpop.f32.mrb[0].mxu0
        %v3877 = vadd.f32 %v3733, %v3876
        %v3878 = vpop.f32.mrb[0].mxu0
        %3879 = vmatprep.mubr.f32.mxu0 %v1129
        %3880 = vmatmul.mubr.f32.gmra.mrb[0].mxu0 %v3680
        %v3881 = vpop.f32.mrb[0].mxu0
        %v3882 = vadd.f32 %v3733, %v3881
        %v3883 = vpop.f32.mrb[0].mxu0
        %3884 = vmatprep.mubr.f32.mxu0 %v1131
        %3885 = vmatmul.mubr.f32.gmra.mrb[0].mxu0 %v3681
        %v3886 = vpop.f32.mrb[0].mxu0
        %v3887 = vadd.f32 %v3733, %v3886
        %v3888 = vpop.f32.mrb[0].mxu0
        %3889 = vmatprep.mubr.f32.mxu0 %v1133
        %3890 = vmatmul.mubr.f32.gmra.mrb[0].mxu0 %v3682
        %v3891 = vpop.f32.mrb[0].mxu0
        %v3892 = vadd.f32 %v3733, %v3891
        %v3893 = vpop.f32.mrb[0].mxu0
        %3894 = vmatprep.mubr.f32.mxu0 %v1135
        %3895 = vmatmul.mubr.f32.gmra.mrb[0].mxu0 %v3683
        %v3896 = vpop.f32.mrb[0].mxu0
        %v3897 = vadd.f32 %v3733, %v3896
        %v3898 = vpop.f32.mrb[0].mxu0
        %3899 = vmatprep.mubr.f32.mxu0 %v1137
        %3900 = vmatmul.mubr.f32.gmra.mrb[0].mxu0 %v3684
        %v3901 = vpop.f32.mrb[0].mxu0
        %v3902 = vadd.f32 %v3733, %v3901
        %v3903 = vpop.f32.mrb[0].mxu0
        %3904 = vmatprep.mubr.f32.mxu0 %v1139
        %3905 = vmatmul.mubr.f32.gmra.mrb[0].mxu0 %v3685
        %v3906 = vpop.f32.mrb[0].mxu0
        %v3907 = vadd.f32 %v3733, %v3906
        %v3908 = vpop.f32.mrb[0].mxu0
        %3909 = vmatprep.mubr.f32.mxu0 %v1141
        %3910 = vmatmul.mubr.f32.gmra.mrb[0].mxu0 %v3686
        %v3911 = vpop.f32.mrb[0].mxu0
        %v3912 = vadd.f32 %v3733, %v3911
        %v3913 = vpop.f32.mrb[0].mxu0
        %3914 = vmatprep.mubr.f32.mxu0 %v1143
        %3915 = vmatmul.mubr.f32.gmra.mrb[0].mxu0 %v3687
        %v3916 = vpop.f32.mrb[0].mxu0
        %v3917 = vadd.f32 %v3733, %v3916
        %v3918 = vpop.f32.mrb[0].mxu0
        %3919 = vmatprep.mubr.f32.mxu0 %v1145
        %3920 = vmatmul.mubr.f32.gmra.mrb[0].mxu0 %v3688
        %v3921 = vpop.f32.mrb[0].mxu0
        %v3922 = vadd.f32 %v3733, %v3921
        %v3923 = vpop.f32.mrb[0].mxu0
        %3924 = vmatprep.mubr.f32.mxu0 %v1147
        %3925 = vmatmul.mubr.f32.gmra.mrb[0].mxu0 %v3689
        %v3926 = vpop.f32.mrb[0].mxu0
        %v3927 = vadd.f32 %v3733, %v3926
        %v3928 = vpop.f32.mrb[0].mxu0
        %3929 = vmatprep.mubr.f32.mxu0 %v1149
        %3930 = vmatmul.mubr.f32.gmra.mrb[0].mxu0 %v3690
        %v3931 = vpop.f32.mrb[0].mxu0
        %v3932 = vadd.f32 %v3733, %v3931
        %v3933 = vpop.f32.mrb[0].mxu0
        %3934 = vmatprep.mubr.f32.mxu0 %v1151
        %3935 = vmatmul.mubr.f32.gmra.mrb[0].mxu0 %v3691
        %v3936 = vpop.f32.mrb[0].mxu0
        %v3937 = vadd.f32 %v3733, %v3936
        %v3938 = vpop.f32.mrb[0].mxu0
        %3939 = vmatprep.mubr.f32.mxu0 %v1153
        %3940 = vmatmul.mubr.f32.gmra.mrb[0].mxu0 %v3692
        %v3941 = vpop.f32.mrb[0].mxu0
        %v3942 = vadd.f32 %v3733, %v3941
        %v3943 = vpop.f32.mrb[0].mxu0
        %3944 = vmatprep.mubr.f32.mxu0 %v1155
        %3945 = vmatmul.mubr.f32.gmra.mrb[0].mxu0 %v3693
        %v3946 = vpop.f32.mrb[0].mxu0
        %v3947 = vadd.f32 %v3733, %v3946
        %v3948 = vpop.f32.mrb[0].mxu0
        %3949 = vmatprep.mubr.f32.mxu0 %v1157
        %3950 = vmatmul.mubr.f32.gmra.mrb[0].mxu0 %v3694
        %v3951 = vpop.f32.mrb[0].mxu0
        %v3952 = vadd.f32 %v3733, %v3951
        %v3953 = vpop.f32.mrb[0].mxu0
        %3954 = vmatprep.mubr.f32.mxu0 %v1159
        %3955 = vmatmul.mubr.f32.gmra.mrb[0].mxu0 %v3695
        %v3956 = vpop.f32.mrb[0].mxu0
        %v3957 = vadd.f32 %v3733, %v3956
        %v3958 = vpop.f32.mrb[0].mxu0
        %3959 = vdwg.mxu0
        %v3960 = vsub.f32 0.0, %v3802
        %v3961 = vsub.f32 0.0, %v3807
        %v3962 = vsub.f32 0.0, %v3812
        %v3963 = vsub.f32 0.0, %v3817
        %v3964 = vsub.f32 0.0, %v3822
        %v3965 = vsub.f32 0.0, %v3827
        %v3966 = vsub.f32 0.0, %v3832
        %v3967 = vsub.f32 0.0, %v3837
        %v3968 = vsub.f32 0.0, %v3842
        %v3969 = vsub.f32 0.0, %v3847
        %v3970 = vsub.f32 0.0, %v3852
        %v3971 = vsub.f32 0.0, %v3857
        %v3972 = vsub.f32 0.0, %v3862
        %v3973 = vsub.f32 0.0, %v3867
        %v3974 = vsub.f32 0.0, %v3872
        %v3975 = vsub.f32 0.0, %v3877
        %v3976 = vsub.f32 0.0, %v3882
        %v3977 = vsub.f32 0.0, %v3887
        %v3978 = vsub.f32 0.0, %v3892
        %v3979 = vsub.f32 0.0, %v3897
        %v3980 = vsub.f32 0.0, %v3902
        %v3981 = vsub.f32 0.0, %v3907
        %v3982 = vsub.f32 0.0, %v3912
        %v3983 = vsub.f32 0.0, %v3917
        %v3984 = vsub.f32 0.0, %v3922
        %v3985 = vsub.f32 0.0, %v3927
        %v3986 = vsub.f32 0.0, %v3932
        %v3987 = vsub.f32 0.0, %v3937
        %v3988 = vsub.f32 0.0, %v3942
        %v3989 = vsub.f32 0.0, %v3947
        %v3990 = vsub.f32 0.0, %v3952
        %v3991 = vsub.f32 0.0, %v3957
        %v3992 = vmul.f32 %v3960, 1.442695
        %v3993 = vpow.pop %v3992
        %v3994 = vmul.f32 %v3961, 1.442695
        %v3995 = vpow.pop %v3994
        %v3996 = vmul.f32 %v3962, 1.442695
        %v3997 = vpow.pop %v3996
        %v3998 = vmul.f32 %v3963, 1.442695
        %v3999 = vpow.pop %v3998
        %v4000 = vmul.f32 %v3964, 1.442695
        %v4001 = vpow.pop %v4000
        %v4002 = vmul.f32 %v3965, 1.442695
        %v4003 = vpow.pop %v4002
        %v4004 = vmul.f32 %v3966, 1.442695
        %v4005 = vpow.pop %v4004
        %v4006 = vmul.f32 %v3967, 1.442695
        %v4007 = vpow.pop %v4006
        %v4008 = vmul.f32 %v3968, 1.442695
        %v4009 = vpow.pop %v4008
        %v4010 = vmul.f32 %v3969, 1.442695
        %v4011 = vpow.pop %v4010
        %v4012 = vmul.f32 %v3970, 1.442695
        %v4013 = vpow.pop %v4012
        %v4014 = vmul.f32 %v3971, 1.442695
        %v4015 = vpow.pop %v4014
        %v4016 = vmul.f32 %v3972, 1.442695
        %v4017 = vpow.pop %v4016
        %v4018 = vmul.f32 %v3973, 1.442695
        %v4019 = vpow.pop %v4018
        %v4020 = vmul.f32 %v3974, 1.442695
        %v4021 = vpow.pop %v4020
        %v4022 = vmul.f32 %v3975, 1.442695
        %v4023 = vpow.pop %v4022
        %v4024 = vmul.f32 %v3976, 1.442695
        %v4025 = vpow.pop %v4024
        %v4026 = vmul.f32 %v3977, 1.442695
        %v4027 = vpow.pop %v4026
        %v4028 = vmul.f32 %v3978, 1.442695
        %v4029 = vpow.pop %v4028
        %v4030 = vmul.f32 %v3979, 1.442695
        %v4031 = vpow.pop %v4030
        %v4032 = vmul.f32 %v3980, 1.442695
        %v4033 = vpow.pop %v4032
        %v4034 = vmul.f32 %v3981, 1.442695
        %v4035 = vpow.pop %v4034
        %v4036 = vmul.f32 %v3982, 1.442695
        %v4037 = vpow.pop %v4036
        %v4038 = vmul.f32 %v3983, 1.442695
        %v4039 = vpow.pop %v4038
        %v4040 = vmul.f32 %v3984, 1.442695
        %v4041 = vpow.pop %v4040
        %v4042 = vmul.f32 %v3985, 1.442695
        %v4043 = vpow.pop %v4042
        %v4044 = vmul.f32 %v3986, 1.442695
        %v4045 = vpow.pop %v4044
        %v4046 = vmul.f32 %v3987, 1.442695
        %v4047 = vpow.pop %v4046
        %v4048 = vmul.f32 %v3988, 1.442695
        %v4049 = vpow.pop %v4048
        %v4050 = vmul.f32 %v3989, 1.442695
        %v4051 = vpow.pop %v4050
        %v4052 = vmul.f32 %v3990, 1.442695
        %v4053 = vpow.pop %v4052
        %v4054 = vmul.f32 %v3991, 1.442695
        %v4055 = vpow.pop %v4054
        %v4056 = vadd.f32 %v3993, 1.0
        %v4057 = vadd.f32 %v3995, 1.0
        %v4058 = vadd.f32 %v3997, 1.0
        %v4059 = vadd.f32 %v3999, 1.0
        %v4060 = vadd.f32 %v4001, 1.0
        %v4061 = vadd.f32 %v4003, 1.0
        %v4062 = vadd.f32 %v4005, 1.0
        %v4063 = vadd.f32 %v4007, 1.0
        %v4064 = vadd.f32 %v4009, 1.0
        %v4065 = vadd.f32 %v4011, 1.0
        %v4066 = vadd.f32 %v4013, 1.0
        %v4067 = vadd.f32 %v4015, 1.0
        %v4068 = vadd.f32 %v4017, 1.0
        %v4069 = vadd.f32 %v4019, 1.0
        %v4070 = vadd.f32 %v4021, 1.0
        %v4071 = vadd.f32 %v4023, 1.0
        %v4072 = vadd.f32 %v4025, 1.0
        %v4073 = vadd.f32 %v4027, 1.0
        %v4074 = vadd.f32 %v4029, 1.0
        %v4075 = vadd.f32 %v4031, 1.0
        %v4076 = vadd.f32 %v4033, 1.0
        %v4077 = vadd.f32 %v4035, 1.0
        %v4078 = vadd.f32 %v4037, 1.0
        %v4079 = vadd.f32 %v4039, 1.0
        %v4080 = vadd.f32 %v4041, 1.0
        %v4081 = vadd.f32 %v4043, 1.0
        %v4082 = vadd.f32 %v4045, 1.0
        %v4083 = vadd.f32 %v4047, 1.0
        %v4084 = vadd.f32 %v4049, 1.0
        %v4085 = vadd.f32 %v4051, 1.0
        %v4086 = vadd.f32 %v4053, 1.0
        %v4087 = vadd.f32 %v4055, 1.0
        %v4088 = vrcp.pop %v4056
        %v4089 = vrcp.pop %v4057
        %v4090 = vrcp.pop %v4058
        %v4091 = vrcp.pop %v4059
        %v4092 = vrcp.pop %v4060
        %v4093 = vrcp.pop %v4061
        %v4094 = vrcp.pop %v4062
        %v4095 = vrcp.pop %v4063
        %v4096 = vrcp.pop %v4064
        %v4097 = vrcp.pop %v4065
        %v4098 = vrcp.pop %v4066
        %v4099 = vrcp.pop %v4067
        %v4100 = vrcp.pop %v4068
        %v4101 = vrcp.pop %v4069
        %v4102 = vrcp.pop %v4070
        %v4103 = vrcp.pop %v4071
        %v4104 = vrcp.pop %v4072
        %v4105 = vrcp.pop %v4073
        %v4106 = vrcp.pop %v4074
        %v4107 = vrcp.pop %v4075
        %v4108 = vrcp.pop %v4076
        %v4109 = vrcp.pop %v4077
        %v4110 = vrcp.pop %v4078
        %v4111 = vrcp.pop %v4079
        %v4112 = vrcp.pop %v4080
        %v4113 = vrcp.pop %v4081
        %v4114 = vrcp.pop %v4082
        %v4115 = vrcp.pop %v4083
        %v4116 = vrcp.pop %v4084
        %v4117 = vrcp.pop %v4085
        %v4118 = vrcp.pop %v4086
        %v4119 = vrcp.pop %v4087
        %v4120 = vmul.f32 %v3802, %v4088
        %v4121 = vmul.f32 %v3807, %v4089
        %v4122 = vmul.f32 %v3812, %v4090
        %v4123 = vmul.f32 %v3817, %v4091
        %v4124 = vmul.f32 %v3822, %v4092
        %v4125 = vmul.f32 %v3827, %v4093
        %v4126 = vmul.f32 %v3832, %v4094
        %v4127 = vmul.f32 %v3837, %v4095
        %v4128 = vmul.f32 %v3842, %v4096
        %v4129 = vmul.f32 %v3847, %v4097
        %v4130 = vmul.f32 %v3852, %v4098
        %v4131 = vmul.f32 %v3857, %v4099
        %v4132 = vmul.f32 %v3862, %v4100
        %v4133 = vmul.f32 %v3867, %v4101
        %v4134 = vmul.f32 %v3872, %v4102
        %v4135 = vmul.f32 %v3877, %v4103
        %v4136 = vmul.f32 %v3882, %v4104
        %v4137 = vmul.f32 %v3887, %v4105
        %v4138 = vmul.f32 %v3892, %v4106
        %v4139 = vmul.f32 %v3897, %v4107
        %v4140 = vmul.f32 %v3902, %v4108
        %v4141 = vmul.f32 %v3907, %v4109
        %v4142 = vmul.f32 %v3912, %v4110
        %v4143 = vmul.f32 %v3917, %v4111
        %v4144 = vmul.f32 %v3922, %v4112
        %v4145 = vmul.f32 %v3927, %v4113
        %v4146 = vmul.f32 %v3932, %v4114
        %v4147 = vmul.f32 %v3937, %v4115
        %v4148 = vmul.f32 %v3942, %v4116
        %v4149 = vmul.f32 %v3947, %v4117
        %v4150 = vmul.f32 %v3952, %v4118
        %v4151 = vmul.f32 %v3957, %v4119
        %4152 = vst [vmem:[%s340] sm:$0xff] %v4120
        %4153 = vst [vmem:[%s340 + $0x8] sm:$0xff] %v4121
        %4154 = vst [vmem:[%s340 + $0x10] sm:$0xff] %v4122
        %4155 = vst [vmem:[%s340 + $0x18] sm:$0xff] %v4123
        %4156 = vst [vmem:[%s340 + $0x20] sm:$0xff] %v4124
        %4157 = vst [vmem:[%s340 + $0x28] sm:$0xff] %v4125
        %4158 = vst [vmem:[%s340 + $0x30] sm:$0xff] %v4126
        %4159 = vst [vmem:[%s340 + $0x38] sm:$0xff] %v4127
        %4160 = vst [vmem:[%s340 + $0x40] sm:$0xff] %v4128
        %4161 = vst [vmem:[%s340 + $0x48] sm:$0xff] %v4129
        %4162 = vst [vmem:[%s340 + $0x50] sm:$0xff] %v4130
        %4163 = vst [vmem:[%s340 + $0x58] sm:$0xff] %v4131
        %4164 = vst [vmem:[%s340 + $0x60] sm:$0xff] %v4132
        %4165 = vst [vmem:[%s340 + $0x68] sm:$0xff] %v4133
        %4166 = vst [vmem:[%s340 + $0x70] sm:$0xff] %v4134
        %4167 = vst [vmem:[%s340 + $0x78] sm:$0xff] %v4135
        %4168 = vst [vmem:[%s340 + $0x80] sm:$0xff] %v4136
        %4169 = vst [vmem:[%s340 + $0x88] sm:$0xff] %v4137
        %4170 = vst [vmem:[%s340 + $0x90] sm:$0xff] %v4138
        %4171 = vst [vmem:[%s340 + $0x98] sm:$0xff] %v4139
        %4172 = vst [vmem:[%s340 + $0xa0] sm:$0xff] %v4140
        %4173 = vst [vmem:[%s340 + $0xa8] sm:$0xff] %v4141
        %4174 = vst [vmem:[%s340 + $0xb0] sm:$0xff] %v4142
        %4175 = vst [vmem:[%s340 + $0xb8] sm:$0xff] %v4143
        %4176 = vst [vmem:[%s340 + $0xc0] sm:$0xff] %v4144
        %4177 = vst [vmem:[%s340 + $0xc8] sm:$0xff] %v4145
        %4178 = vst [vmem:[%s340 + $0xd0] sm:$0xff] %v4146
        %4179 = vst [vmem:[%s340 + $0xd8] sm:$0xff] %v4147
        %4180 = vst [vmem:[%s340 + $0xe0] sm:$0xff] %v4148
        %4181 = vst [vmem:[%s340 + $0xe8] sm:$0xff] %v4149
        %4182 = vst [vmem:[%s340 + $0xf0] sm:$0xff] %v4150
        %4183 = vst [vmem:[%s340 + $0xf8] sm:$0xff] %v4151
        %s4184 = sand.u32 %s226, 1
        %s4185 = scalar_lea.sflag [#allocation5], %s4184
        %s4186 = sand.u32 %s226, 1
        %s4187 = smul.addr %s4186, 256
        %s4188 = scalar_lea.vmem [#allocation6], %s4187
        // Predicated region
        $region61: #{tpu_custom_call.1} parent=55 // pred_check
          %p4189 = pneg %p236
        $region62: #{tpu_custom_call.1} parent=55 // pred_check_branch
          %4191 = sbr.rel (%p4189) target = $region64
        $region63: #{tpu_custom_call.1} parent=55 // pred_region
          %s4193 = ssub.s32 4096, 4096
          %4194 = vsyncadd %s4185, %s4193
          %s4195 = smul.addr %s24, 32
          %s4196 = smul.addr %s4195, 128
          %s4197 = scalar_lea.hbm %s9, %s4196
          %s4198 = sshll.u32 %s4188, 4
          %s4199 = int_to_ptr.vmem [resolvable:$true] %s4198
          %4204 = dma.vmem_to_hbm [thread:$0]  %s4199, 4096, %s4197, %s4185, 128, 128, 8
        $region64: #{tpu_custom_call.1} parent=55 // pred_fallthru
          _
      $region56: #{tpu_custom_call.1} parent=5 // pred_fallthru
        _
      %p4205 = scmp.le.s32.totalorder 2, %s19
      // Predicated region
      $region65: #{tpu_custom_call.1} parent=5 // pred_check
        %p4206 = pneg %p4205
      $region66: #{tpu_custom_call.1} parent=5 // pred_check_branch
        %4208 = sbr.rel (%p4206) target = $region68
      $region67: #{tpu_custom_call.1} parent=5 // pred_region
        %s4209 = ssub.s32 %s19, 2
        // Predicated region
        $region69: #{tpu_custom_call.1} parent=67 // pred_check
          %p4210 = pneg %p242
        $region70: #{tpu_custom_call.1} parent=67 // pred_check_branch
          %4212 = sbr.rel (%p4210) target = $region72
        $region71: #{tpu_custom_call.1} parent=67 // pred_region
          %s4213 = sand.u32 %s227, 1
          %s4214 = scalar_lea.sflag [#allocation5], %s4213
          %s4215 = sand.u32 %s227, 1
          %s4216 = smul.addr %s4215, 256
          %s4217 = scalar_lea.vmem [#allocation6], %s4216
          %4218 = dma.done %s4214, 4096
        $region72: #{tpu_custom_call.1} parent=67 // pred_fallthru
          _
      $region68: #{tpu_custom_call.1} parent=5 // pred_fallthru
        _
    $region6: #{tpu_custom_call.1} parent=1 // loop_footer
      %s23 = sadd.s32 1, %s19
    $region7: #{tpu_custom_call.1} parent=1 // loop_footer_branch
      %18 = sbr.rel target = $region3
    $region8: #{tpu_custom_call.1} parent=1 // loop_exit
      _
    %4219 = vsyncpa [#allocation4], 1
    %s4220 = scalar_lea.sflag [#allocation4], 1
    %4221 = vsyncpa %s4220, 1
    %4222 = vsyncpa [#allocation5], 1
    %s4223 = scalar_lea.sflag [#allocation5], 1
    %4224 = vsyncpa %s4223, 1

</llo_original>
